<compile_context>
chip_gen: v5e
topology: v5e:2x2
jax: 0.10.0
libtpu: 0.0.40
codegen_flags: <defaults>
</compile_context>

<pallas_src>
import functools

import numpy as np

import jax
import jax.numpy as jnp
from jax.experimental import pallas as pl
from jax.experimental.pallas import tpu as pltpu

BN_EPS = 1e-5
EXPANSION = 4


def _round_up(x, m):
    return (x + m - 1) // m * m


def _vmem_capacity_bytes():
    try:
        return int(pltpu.get_tpu_info().vmem_capacity_bytes)
    except Exception:  # pragma: no cover - depends on jax build / backend
        return 64 * 1024 * 1024  # v7x-safe assumption


_VMEM_CAP = _vmem_capacity_bytes()
_VMEM_LIMIT = min(int(_VMEM_CAP * 3 // 4), 100 * 1024 * 1024)


# ----------------------------------------------------------------------------
# Fused bottleneck kernel (one pallas_call, grid over batch)
# ----------------------------------------------------------------------------
def _bottleneck_fused_kernel(*refs, H, W, stride, has_sc):
    x_ref, w1_ref, bn1_ref, w2_ref, bn2_ref, w3_ref, bn3_ref = refs[:7]
    i = 7
    d_ref = None
    if stride > 1:
        d_ref = refs[i]
        i += 1
    if has_sc:
        wsc_ref, bnsc_ref = refs[i], refs[i + 1]
        i += 2
    o_ref, t1p_ref = refs[i], refs[i + 1]

    HW = H * W
    C = w1_ref.shape[1]

    x2d = x_ref[0]  # [HW, Cin] bf16

    # ---- conv1 (1x1) + BN + ReLU, written into zero-halo VMEM scratch -------
    t1 = jnp.dot(x2d, w1_ref[...], preferred_element_type=jnp.float32)
    t1 = jnp.maximum(t1 * bn1_ref[0:1, :] + bn1_ref[1:2, :], 0.0)
    t1p_ref[...] = jnp.zeros(t1p_ref.shape, t1p_ref.dtype)
    t1p_ref[1:H + 1, 1:W + 1, :] = t1.astype(t1p_ref.dtype).reshape(H, W, C)

    # ---- conv2 (3x3, 'same'): 9 shifted-window matmuls (tap accumulation) ----
    acc = jnp.zeros((HW, C), jnp.float32)
    for di in range(3):
        for dj in range(3):
            win = t1p_ref[di:di + H, dj:dj + W, :]
            acc = acc + jnp.dot(win.reshape(HW, C), w2_ref[di * 3 + dj],
                                preferred_element_type=jnp.float32)
    t2 = jnp.maximum(acc * bn2_ref[0:1, :] + bn2_ref[1:2, :], 0.0)
    t2 = t2.astype(jnp.bfloat16)

    # ---- stride > 1: exact spatial decimation via a 0/1 selection matmul ----
    if stride > 1:
        t2 = jnp.dot(d_ref[...], t2,
                     preferred_element_type=jnp.float32).astype(jnp.bfloat16)

    # ---- conv3 (1x1) + BN ----------------------------------------------------
    y = jnp.dot(t2, w3_ref[...], preferred_element_type=jnp.float32)
    y = y * bn3_ref[0:1, :] + bn3_ref[1:2, :]

    # ---- shortcut ------------------------------------------------------------
    if has_sc:
        xs = x2d
        if stride > 1:
            xs = jnp.dot(d_ref[...], x2d,
                         preferred_element_type=jnp.float32).astype(jnp.bfloat16)
        sc = jnp.dot(xs, wsc_ref[...], preferred_element_type=jnp.float32)
        sc = sc * bnsc_ref[0:1, :] + bnsc_ref[1:2, :]
    else:
        sc = x2d.astype(jnp.float32)

    # ---- residual add + final ReLU in f32, single lane-dense store ----------
    o_ref[0] = jnp.maximum(y + sc, 0.0).astype(o_ref.dtype)


def _bottleneck_fused(x2d, folded, H, W, stride, has_sc):
    B, HW, Cin = x2d.shape
    C = folded["w1"].shape[1]
    OC = folded["w3"].shape[1]
    OH = (H - 1) // stride + 1
    OW = (W - 1) // stride + 1
    OHW = OH * OW

    inputs = [x2d, folded["w1"], folded["bn1"], folded["w2"], folded["bn2"],
              folded["w3"], folded["bn3"]]
    in_specs = [
        pl.BlockSpec((1, HW, Cin), lambda b: (b, 0, 0)),
        pl.BlockSpec((Cin, C), lambda b: (0, 0)),
        pl.BlockSpec((2, C), lambda b: (0, 0)),
        pl.BlockSpec((9, C, C), lambda b: (0, 0, 0)),
        pl.BlockSpec((2, C), lambda b: (0, 0)),
        pl.BlockSpec((C, OC), lambda b: (0, 0)),
        pl.BlockSpec((2, OC), lambda b: (0, 0)),
    ]
    if stride > 1:
        # constant one-hot row-selection matrix: picks rows (s*oh)*W + s*ow
        rows = (np.arange(OH)[:, None] * stride * W
                + np.arange(OW)[None, :] * stride).reshape(-1)
        d = np.zeros((OHW, HW), np.float32)
        d[np.arange(OHW), rows] = 1.0
        inputs.append(jnp.asarray(d, jnp.bfloat16))
        in_specs.append(pl.BlockSpec((OHW, HW), lambda b: (0, 0)))
    if has_sc:
        inputs += [folded["wsc"], folded["bnsc"]]
        in_specs += [pl.BlockSpec((Cin, OC), lambda b: (0, 0)),
                     pl.BlockSpec((2, OC), lambda b: (0, 0))]

    kernel = functools.partial(_bottleneck_fused_kernel,
                               H=H, W=W, stride=stride, has_sc=has_sc)
    return pl.pallas_call(
        kernel,
        out_shape=jax.ShapeDtypeStruct((B, OHW, OC), jnp.float32),
        grid=(B,),
        in_specs=in_specs,
        out_specs=pl.BlockSpec((1, OHW, OC), lambda b: (b, 0, 0)),
        scratch_shapes=[pltpu.VMEM((H + 2, W + 2, C), jnp.bfloat16)],
        compiler_params=pltpu.CompilerParams(
            dimension_semantics=("parallel",),
            vmem_limit_bytes=_VMEM_LIMIT,
        ),
    )(*inputs)


def _fused_fits(B, H, W, Cin, C, OC, stride):
    """Conservative VMEM estimate for the fused path (per grid step + weights)."""
    HW = H * W
    OHW = ((H - 1) // stride + 1) * ((W - 1) // stride + 1)
    weights = (Cin * C + 9 * C * C + C * OC + Cin * OC + 4 * (C + OC)) * 2
    if stride > 1:
        weights += OHW * HW * 2
    blocks = 2 * (HW * Cin * 2 + OHW * OC * 4) + 2 * weights
    scratch = (H + 2) * (W + 2) * C * 2
    live = 10 * HW * max(Cin, C, 32) * 4 + 4 * OHW * OC * 4
    return blocks + scratch + live < _VMEM_CAP // 3


# ----------------------------------------------------------------------------
# Fallback: per-conv fused matmul+BN(+res,+ReLU) kernel (single K step)
# ----------------------------------------------------------------------------
def _matmul_bn_kernel(a_ref, b_ref, bn_ref, *rest, relu, use_res):
    if use_res:
        res_ref, o_ref = rest
    else:
        (o_ref,) = rest
    acc = jnp.dot(a_ref[...], b_ref[...], preferred_element_type=jnp.float32)
    acc = acc * bn_ref[0:1, :] + bn_ref[1:2, :]
    if use_res:
        acc = acc + res_ref[...].astype(jnp.float32)
    if relu:
        acc = jnp.maximum(acc, 0.0)
    o_ref[...] = acc.astype(o_ref.dtype)


def _matmul_bn(a, b, bn, res=None, relu=True, out_dtype=jnp.bfloat16):
    """maybe_relu((a @ b) * scale + shift (+ res)); a,b,res bf16, bn (2,N) f32."""
    M, K = a.shape
    _, N = b.shape
    use_res = res is not None

    tn = min(512, _round_up(N, 128))
    tm = min(1024, max(128, _round_up(M, 8)))

    def footprint(tm_):
        blocks = tm_ * K * 2 + K * tn * 2 + tm_ * tn * 4
        if use_res:
            blocks += tm_ * tn * 2
        return 2 * blocks  # double buffered

    while tm > 128 and footprint(tm) > _VMEM_LIMIT // 3:
        tm //= 2
    Mp, Np = _round_up(M, tm), _round_up(N, tn)

    # TODO(synk): M-padding / trailing slice could be removed by picking tm
    # from divisors of M; acceptable for the fallback path.
    a_p = jnp.pad(a, ((0, Mp - M), (0, 0)))
    b_p = jnp.pad(b, ((0, 0), (0, Np - N)))
    bn_p = jnp.pad(bn, ((0, 0), (0, Np - N)))
    args = [a_p, b_p, bn_p]
    in_specs = [
        pl.BlockSpec((tm, K), lambda i, j: (i, 0)),
        pl.BlockSpec((K, tn), lambda i, j: (0, j)),
        pl.BlockSpec((2, tn), lambda i, j: (0, j)),
    ]
    if use_res:
        args.append(jnp.pad(res, ((0, Mp - M), (0, Np - N))))
        in_specs.append(pl.BlockSpec((tm, tn), lambda i, j: (i, j)))

    kernel = functools.partial(_matmul_bn_kernel, relu=relu, use_res=use_res)
    out = pl.pallas_call(
        kernel,
        out_shape=jax.ShapeDtypeStruct((Mp, Np), out_dtype),
        grid=(Mp // tm, Np // tn),
        in_specs=in_specs,
        out_specs=pl.BlockSpec((tm, tn), lambda i, j: (i, j)),
        compiler_params=pltpu.CompilerParams(
            dimension_semantics=("parallel", "parallel"),
            vmem_limit_bytes=_VMEM_LIMIT,
        ),
    )(*args)
    return out[:M, :N]


def _conv1x1_bn(x, w, bn, stride=1, relu=True, res=None, out_dtype=jnp.bfloat16):
    if stride > 1:
        x = x[:, ::stride, ::stride, :]
    B, H, W, Cin = x.shape
    N = w.shape[1]
    r = res.reshape(B * H * W, N) if res is not None else None
    out = _matmul_bn(x.reshape(B * H * W, Cin), w, bn, res=r, relu=relu,
                     out_dtype=out_dtype)
    return out.reshape(B, H, W, N)


def _conv3x3_bn(x, w9, bn, stride=1, relu=True):
    # TODO(synk): this fallback still materializes a bf16 im2col tensor in HBM.
    B, H, W, C = x.shape
    OC = w9.shape[-1]
    OH = (H - 1) // stride + 1
    OW = (W - 1) // stride + 1
    xp = jnp.pad(x, ((0, 0), (1, 1), (1, 1), (0, 0)))
    taps = [xp[:, i:i + stride * (OH - 1) + 1:stride,
               j:j + stride * (OW - 1) + 1:stride, :]
            for i in range(3) for j in range(3)]
    patches = jnp.stack(taps, axis=3).reshape(B * OH * OW, 9 * C)
    out = _matmul_bn(patches, w9.reshape(9 * C, OC), bn, relu=relu)
    return out.reshape(B, OH, OW, OC)


def _bottleneck_tiled(x, folded, stride):
    has_sc = "wsc" in folded
    t1 = _conv1x1_bn(x, folded["w1"], folded["bn1"], relu=True)
    t2 = _conv3x3_bn(t1, folded["w2"], folded["bn2"], stride=stride, relu=True)
    idt = (_conv1x1_bn(x, folded["wsc"], folded["bnsc"], stride=stride, relu=False)
           if has_sc else x)
    return _conv1x1_bn(t2, folded["w3"], folded["bn3"], relu=True, res=idt,
                       out_dtype=jnp.float32)


# ----------------------------------------------------------------------------
# Parameters: synthetic init (PyTorch layouts) + one-time kernel-ready folding
# ----------------------------------------------------------------------------
def init_conv(key, oc, ic, kh, kw):
    fan_in = ic * kh * kw
    return jax.random.normal(key, (oc, ic, kh, kw), jnp.float32) * (2.0 / fan_in) ** 0.5


def init_bn(key, c):
    k1, k2, k3, k4 = jax.random.split(key, 4)
    return (1.0 + 0.1 * jax.random.normal(k1, (c,), jnp.float32),   # gamma
            0.1 * jax.random.normal(k2, (c,), jnp.float32),         # beta
            0.1 * jax.random.normal(k3, (c,), jnp.float32),         # running mean
            1.0 + 0.1 * jax.random.uniform(k4, (c,), jnp.float32))  # running var


def init_bottleneck_params(key, in_c, out_c, stride):
    exp_c = out_c * EXPANSION
    ks = jax.random.split(key, 8)
    p = {
        "conv1_w": init_conv(ks[0], out_c, in_c, 1, 1),
        "bn1": init_bn(ks[1], out_c),
        "conv2_w": init_conv(ks[2], out_c, out_c, 3, 3),
        "bn2": init_bn(ks[3], out_c),
        "conv3_w": init_conv(ks[4], exp_c, out_c, 1, 1),
        "bn3": init_bn(ks[5], exp_c),
    }
    if stride != 1 or in_c != exp_c:
        p["sc_conv_w"] = init_conv(ks[6], exp_c, in_c, 1, 1)
        p["sc_bn"] = init_bn(ks[7], exp_c)
    return p


def fold_bottleneck_params(params):
    """One-time prep of kernel-ready weights (outside the jitted forward)."""
    def fold_bn(bn):
        gamma, beta, mean, var = bn
        scale = gamma / jnp.sqrt(var + BN_EPS)
        return jnp.stack([scale, beta - mean * scale]).astype(jnp.float32)  # (2, C)

    w1, w2, w3 = params["conv1_w"], params["conv2_w"], params["conv3_w"]
    C, Cin = w1.shape[0], w1.shape[1]
    OC = w3.shape[0]
    folded = {
        "w1": jnp.transpose(w1.reshape(C, Cin), (1, 0)).astype(jnp.bfloat16),
        "bn1": fold_bn(params["bn1"]),
        # tap-major [9, IC, OC]
        "w2": jnp.transpose(w2, (2, 3, 1, 0)).reshape(9, C, C).astype(jnp.bfloat16),
        "bn2": fold_bn(params["bn2"]),
        "w3": jnp.transpose(w3.reshape(OC, C), (1, 0)).astype(jnp.bfloat16),
        "bn3": fold_bn(params["bn3"]),
    }
    if "sc_conv_w" in params:
        wsc = params["sc_conv_w"]
        folded["wsc"] = jnp.transpose(wsc.reshape(OC, Cin), (1, 0)).astype(jnp.bfloat16)
        folded["bnsc"] = fold_bn(params["sc_bn"])
    return folded


# ----------------------------------------------------------------------------
# Bottleneck forward (matches the PyTorch module, eval mode)
# ----------------------------------------------------------------------------
def bottleneck_forward(x_nchw, folded, stride):
    B, Cin, H, W = x_nchw.shape
    C = folded["w1"].shape[1]
    OC = folded["w3"].shape[1]
    has_sc = "wsc" in folded
    OH = (H - 1) // stride + 1
    OW = (W - 1) // stride + 1

    # single fused pass: NCHW f32 -> NHWC bf16
    x = jnp.transpose(x_nchw, (0, 2, 3, 1)).astype(jnp.bfloat16)

    if _fused_fits(B, H, W, Cin, C, OC, stride):
        out2d = _bottleneck_fused(x.reshape(B, H * W, Cin), folded,
                                  H=H, W=W, stride=stride, has_sc=has_sc)
        out = out2d.reshape(B, OH, OW, OC)
    else:
        out = _bottleneck_tiled(x, folded, stride).astype(jnp.float32)

    # back to NCHW to match the PyTorch module's output layout
    return jnp.transpose(out, (0, 3, 1, 2))


# ----------------------------------------------------------------------------
# Pure-JAX reference (lax.conv) for a loose mixed-precision check
# ----------------------------------------------------------------------------
def reference_forward(x, params, stride):
    def bnorm(y, bn):
        gamma, beta, mean, var = bn
        inv = gamma / jnp.sqrt(var + BN_EPS)
        return y * inv[None, :, None, None] + (beta - mean * inv)[None, :, None, None]

    def conv(y, w, s, pad):
        return jax.lax.conv_general_dilated(
            y, w, (s, s), [(pad, pad), (pad, pad)],
            dimension_numbers=("NCHW", "OIHW", "NCHW"))

    out = jax.nn.relu(bnorm(conv(x, params["conv1_w"], 1, 0), params["bn1"]))
    out = jax.nn.relu(bnorm(conv(out, params["conv2_w"], stride, 1), params["bn2"]))
    out = bnorm(conv(out, params["conv3_w"], 1, 0), params["bn3"])
    if "sc_conv_w" in params:
        idt = bnorm(conv(x, params["sc_conv_w"], stride, 0), params["sc_bn"])
    else:
        idt = x
    return jax.nn.relu(out + idt)


if __name__ == "__main__":
    key = jax.random.PRNGKey(0)
    pkey, xkey = jax.random.split(key)

    batch, in_channels, out_channels, stride, hw = 2, 64, 32, 2, 16
    params = init_bottleneck_params(pkey, in_channels, out_channels, stride)
    folded = fold_bottleneck_params(params)  # one-time weight prep

    # Input follows the PyTorch NCHW convention: [batch, channels, H, W].
    x = jax.random.normal(xkey, (batch, in_channels, hw, hw), jnp.float32)

    fwd = jax.jit(bottleneck_forward, static_argnums=2)
    out = fwd(x, folded, stride)
    jax.block_until_ready(out)

    oh = (hw - 1) // stride + 1
    assert out.shape == (batch, out_channels * EXPANSION, oh, oh), out.shape
    assert bool(jnp.all(jnp.isfinite(out)))

    # loose tolerance: kernel runs matmuls in bf16 (f32 accumulate/epilogue)
    ref = reference_forward(x, params, stride)
    err = float(jnp.max(jnp.abs(out - ref)))
    scale = float(jnp.max(jnp.abs(ref)))
    assert err <= 0.05 * scale + 0.05, (err, scale)

    print("KERNEL_OK")
</pallas_src>

<mosaic_0001>
module attributes {stable_mosaic.version = 11 : i64} {
  func.func @_bottleneck_fused_kernel(%arg0: i32, %arg1: memref<1x256x64xbf16, #tpu.memory_space<vmem>>, %arg2: memref<64x32xbf16, #tpu.memory_space<vmem>>, %arg3: memref<2x32xf32, #tpu.memory_space<vmem>>, %arg4: memref<9x32x32xbf16, #tpu.memory_space<vmem>>, %arg5: memref<2x32xf32, #tpu.memory_space<vmem>>, %arg6: memref<32x128xbf16, #tpu.memory_space<vmem>>, %arg7: memref<2x128xf32, #tpu.memory_space<vmem>>, %arg8: memref<64x256xbf16, #tpu.memory_space<vmem>>, %arg9: memref<64x128xbf16, #tpu.memory_space<vmem>>, %arg10: memref<2x128xf32, #tpu.memory_space<vmem>>, %arg11: memref<1x64x128xf32, #tpu.memory_space<vmem>>, %arg12: memref<18x18x32xbf16, #tpu.memory_space<vmem>>) attributes {dimension_semantics = [#tpu.dimension_semantics<parallel>], iteration_bounds = array<i64: 2>, scalar_prefetch = 0 : i64, scratch_operands = 1 : i64, tpu.core_type = #tpu.core_type<tc>, window_params = [{transform_indices = @transform_0, window_bounds = array<i64: 1, 256, 64>}, {pipeline_mode = #tpu.pipeline_mode<synchronous>, transform_indices = @transform_1, window_bounds = array<i64: 64, 32>}, {pipeline_mode = #tpu.pipeline_mode<synchronous>, transform_indices = @transform_2, window_bounds = array<i64: 2, 32>}, {pipeline_mode = #tpu.pipeline_mode<synchronous>, transform_indices = @transform_3, window_bounds = array<i64: 9, 32, 32>}, {pipeline_mode = #tpu.pipeline_mode<synchronous>, transform_indices = @transform_4, window_bounds = array<i64: 2, 32>}, {pipeline_mode = #tpu.pipeline_mode<synchronous>, transform_indices = @transform_5, window_bounds = array<i64: 32, 128>}, {pipeline_mode = #tpu.pipeline_mode<synchronous>, transform_indices = @transform_6, window_bounds = array<i64: 2, 128>}, {pipeline_mode = #tpu.pipeline_mode<synchronous>, transform_indices = @transform_7, window_bounds = array<i64: 64, 256>}, {pipeline_mode = #tpu.pipeline_mode<synchronous>, transform_indices = @transform_8, window_bounds = array<i64: 64, 128>}, {pipeline_mode = #tpu.pipeline_mode<synchronous>, transform_indices = @transform_9, window_bounds = array<i64: 2, 128>}, {transform_indices = @transform_10, window_bounds = array<i64: 1, 64, 128>}]} {
    %c0 = arith.constant 0 : index
    %c0_0 = arith.constant 0 : index
    %c0_1 = arith.constant 0 : index
    %0 = vector.load %arg1[%c0, %c0_0, %c0_1] : memref<1x256x64xbf16, #tpu.memory_space<vmem>>, vector<1x256x64xbf16>
    %1 = vector.shape_cast %0 : vector<1x256x64xbf16> to vector<256x64xbf16>
    %c0_2 = arith.constant 0 : index
    %c0_3 = arith.constant 0 : index
    %2 = vector.load %arg2[%c0_2, %c0_3] : memref<64x32xbf16, #tpu.memory_space<vmem>>, vector<64x32xbf16>
    %cst = arith.constant dense<0.000000e+00> : vector<256x32xf32>
    %3 = tpu.matmul %1, %2, %cst {dimension_numbers = #tpu.dot_dimension_numbers<[1], [0], [0], [1], [0, 0, 1, 1], [], []>} : vector<256x64xbf16>, vector<64x32xbf16>, vector<256x32xf32> -> vector<256x32xf32>
    %c0_4 = arith.constant 0 : index
    %c0_5 = arith.constant 0 : index
    %4 = vector.load %arg3[%c0_4, %c0_5] : memref<2x32xf32, #tpu.memory_space<vmem>>, vector<1x32xf32>
    %5 = vector.broadcast %4 : vector<1x32xf32> to vector<256x32xf32>
    %6 = arith.mulf %3, %5 : vector<256x32xf32>
    %c1 = arith.constant 1 : index
    %c0_6 = arith.constant 0 : index
    %7 = vector.load %arg3[%c1, %c0_6] : memref<2x32xf32, #tpu.memory_space<vmem>>, vector<1x32xf32>
    %8 = vector.broadcast %7 : vector<1x32xf32> to vector<256x32xf32>
    %9 = arith.addf %6, %8 : vector<256x32xf32>
    %cst_7 = arith.constant 0.000000e+00 : f32
    %10 = vector.broadcast %cst_7 : f32 to vector<256x32xf32>
    %11 = arith.maximumf %9, %10 : vector<256x32xf32>
    %cst_8 = arith.constant 0.000000e+00 : bf16
    %12 = vector.broadcast %cst_8 : bf16 to vector<18x18x32xbf16>
    %c0_9 = arith.constant 0 : index
    %c0_10 = arith.constant 0 : index
    %c0_11 = arith.constant 0 : index
    %13 = vector.load %arg12[%c0_9, %c0_10, %c0_11] : memref<18x18x32xbf16, #tpu.memory_space<vmem>>, vector<18x18x32xbf16>
    tpu.vector_store %arg12[%c0_9, %c0_10, %c0_11], %12 {strides = array<i32>} : memref<18x18x32xbf16, #tpu.memory_space<vmem>>, vector<18x18x32xbf16>,
    %14 = arith.truncf %11 : vector<256x32xf32> to vector<256x32xbf16>
    %15 = vector.shape_cast %14 : vector<256x32xbf16> to vector<16x16x32xbf16>
    %c1_12 = arith.constant 1 : index
    %c1_13 = arith.constant 1 : index
    %c0_14 = arith.constant 0 : index
    %16 = vector.load %arg12[%c1_12, %c1_13, %c0_14] : memref<18x18x32xbf16, #tpu.memory_space<vmem>>, vector<16x16x32xbf16>
    tpu.vector_store %arg12[%c1_12, %c1_13, %c0_14], %15 {strides = array<i32>} : memref<18x18x32xbf16, #tpu.memory_space<vmem>>, vector<16x16x32xbf16>,
    %cst_15 = arith.constant 0.000000e+00 : f32
    %17 = vector.broadcast %cst_15 : f32 to vector<256x32xf32>
    %c0_16 = arith.constant 0 : index
    %c0_17 = arith.constant 0 : index
    %c0_18 = arith.constant 0 : index
    %18 = vector.load %arg12[%c0_16, %c0_17, %c0_18] : memref<18x18x32xbf16, #tpu.memory_space<vmem>>, vector<16x16x32xbf16>
    %19 = vector.shape_cast %18 : vector<16x16x32xbf16> to vector<256x32xbf16>
    %c0_19 = arith.constant 0 : index
    %c0_20 = arith.constant 0 : index
    %c0_21 = arith.constant 0 : index
    %20 = vector.load %arg4[%c0_19, %c0_20, %c0_21] : memref<9x32x32xbf16, #tpu.memory_space<vmem>>, vector<1x32x32xbf16>
    %21 = vector.shape_cast %20 : vector<1x32x32xbf16> to vector<32x32xbf16>
    %cst_22 = arith.constant dense<0.000000e+00> : vector<256x32xf32>
    %22 = tpu.matmul %19, %21, %cst_22 {dimension_numbers = #tpu.dot_dimension_numbers<[1], [0], [0], [1], [0, 0, 1, 1], [], []>} : vector<256x32xbf16>, vector<32x32xbf16>, vector<256x32xf32> -> vector<256x32xf32>
    %23 = arith.addf %17, %22 : vector<256x32xf32>
    %c0_23 = arith.constant 0 : index
    %c1_24 = arith.constant 1 : index
    %c0_25 = arith.constant 0 : index
    %24 = vector.load %arg12[%c0_23, %c1_24, %c0_25] : memref<18x18x32xbf16, #tpu.memory_space<vmem>>, vector<16x16x32xbf16>
    %25 = vector.shape_cast %24 : vector<16x16x32xbf16> to vector<256x32xbf16>
    %c1_26 = arith.constant 1 : index
    %c0_27 = arith.constant 0 : index
    %c0_28 = arith.constant 0 : index
    %26 = vector.load %arg4[%c1_26, %c0_27, %c0_28] : memref<9x32x32xbf16, #tpu.memory_space<vmem>>, vector<1x32x32xbf16>
    %27 = vector.shape_cast %26 : vector<1x32x32xbf16> to vector<32x32xbf16>
    %cst_29 = arith.constant dense<0.000000e+00> : vector<256x32xf32>
    %28 = tpu.matmul %25, %27, %cst_29 {dimension_numbers = #tpu.dot_dimension_numbers<[1], [0], [0], [1], [0, 0, 1, 1], [], []>} : vector<256x32xbf16>, vector<32x32xbf16>, vector<256x32xf32> -> vector<256x32xf32>
    %29 = arith.addf %23, %28 : vector<256x32xf32>
    %c0_30 = arith.constant 0 : index
    %c2 = arith.constant 2 : index
    %c0_31 = arith.constant 0 : index
    %30 = vector.load %arg12[%c0_30, %c2, %c0_31] : memref<18x18x32xbf16, #tpu.memory_space<vmem>>, vector<16x16x32xbf16>
    %31 = vector.shape_cast %30 : vector<16x16x32xbf16> to vector<256x32xbf16>
    %c2_32 = arith.constant 2 : index
    %c0_33 = arith.constant 0 : index
    %c0_34 = arith.constant 0 : index
    %32 = vector.load %arg4[%c2_32, %c0_33, %c0_34] : memref<9x32x32xbf16, #tpu.memory_space<vmem>>, vector<1x32x32xbf16>
    %33 = vector.shape_cast %32 : vector<1x32x32xbf16> to vector<32x32xbf16>
    %cst_35 = arith.constant dense<0.000000e+00> : vector<256x32xf32>
    %34 = tpu.matmul %31, %33, %cst_35 {dimension_numbers = #tpu.dot_dimension_numbers<[1], [0], [0], [1], [0, 0, 1, 1], [], []>} : vector<256x32xbf16>, vector<32x32xbf16>, vector<256x32xf32> -> vector<256x32xf32>
    %35 = arith.addf %29, %34 : vector<256x32xf32>
    %c1_36 = arith.constant 1 : index
    %c0_37 = arith.constant 0 : index
    %c0_38 = arith.constant 0 : index
    %36 = vector.load %arg12[%c1_36, %c0_37, %c0_38] : memref<18x18x32xbf16, #tpu.memory_space<vmem>>, vector<16x16x32xbf16>
    %37 = vector.shape_cast %36 : vector<16x16x32xbf16> to vector<256x32xbf16>
    %c3 = arith.constant 3 : index
    %c0_39 = arith.constant 0 : index
    %c0_40 = arith.constant 0 : index
    %38 = vector.load %arg4[%c3, %c0_39, %c0_40] : memref<9x32x32xbf16, #tpu.memory_space<vmem>>, vector<1x32x32xbf16>
    %39 = vector.shape_cast %38 : vector<1x32x32xbf16> to vector<32x32xbf16>
    %cst_41 = arith.constant dense<0.000000e+00> : vector<256x32xf32>
    %40 = tpu.matmul %37, %39, %cst_41 {dimension_numbers = #tpu.dot_dimension_numbers<[1], [0], [0], [1], [0, 0, 1, 1], [], []>} : vector<256x32xbf16>, vector<32x32xbf16>, vector<256x32xf32> -> vector<256x32xf32>
    %41 = arith.addf %35, %40 : vector<256x32xf32>
    %c1_42 = arith.constant 1 : index
    %c1_43 = arith.constant 1 : index
    %c0_44 = arith.constant 0 : index
    %42 = vector.load %arg12[%c1_42, %c1_43, %c0_44] : memref<18x18x32xbf16, #tpu.memory_space<vmem>>, vector<16x16x32xbf16>
    %43 = vector.shape_cast %42 : vector<16x16x32xbf16> to vector<256x32xbf16>
    %c4 = arith.constant 4 : index
    %c0_45 = arith.constant 0 : index
    %c0_46 = arith.constant 0 : index
    %44 = vector.load %arg4[%c4, %c0_45, %c0_46] : memref<9x32x32xbf16, #tpu.memory_space<vmem>>, vector<1x32x32xbf16>
    %45 = vector.shape_cast %44 : vector<1x32x32xbf16> to vector<32x32xbf16>
    %cst_47 = arith.constant dense<0.000000e+00> : vector<256x32xf32>
    %46 = tpu.matmul %43, %45, %cst_47 {dimension_numbers = #tpu.dot_dimension_numbers<[1], [0], [0], [1], [0, 0, 1, 1], [], []>} : vector<256x32xbf16>, vector<32x32xbf16>, vector<256x32xf32> -> vector<256x32xf32>
    %47 = arith.addf %41, %46 : vector<256x32xf32>
    %c1_48 = arith.constant 1 : index
    %c2_49 = arith.constant 2 : index
    %c0_50 = arith.constant 0 : index
    %48 = vector.load %arg12[%c1_48, %c2_49, %c0_50] : memref<18x18x32xbf16, #tpu.memory_space<vmem>>, vector<16x16x32xbf16>
    %49 = vector.shape_cast %48 : vector<16x16x32xbf16> to vector<256x32xbf16>
    %c5 = arith.constant 5 : index
    %c0_51 = arith.constant 0 : index
    %c0_52 = arith.constant 0 : index
    %50 = vector.load %arg4[%c5, %c0_51, %c0_52] : memref<9x32x32xbf16, #tpu.memory_space<vmem>>, vector<1x32x32xbf16>
    %51 = vector.shape_cast %50 : vector<1x32x32xbf16> to vector<32x32xbf16>
    %cst_53 = arith.constant dense<0.000000e+00> : vector<256x32xf32>
    %52 = tpu.matmul %49, %51, %cst_53 {dimension_numbers = #tpu.dot_dimension_numbers<[1], [0], [0], [1], [0, 0, 1, 1], [], []>} : vector<256x32xbf16>, vector<32x32xbf16>, vector<256x32xf32> -> vector<256x32xf32>
    %53 = arith.addf %47, %52 : vector<256x32xf32>
    %c2_54 = arith.constant 2 : index
    %c0_55 = arith.constant 0 : index
    %c0_56 = arith.constant 0 : index
    %54 = vector.load %arg12[%c2_54, %c0_55, %c0_56] : memref<18x18x32xbf16, #tpu.memory_space<vmem>>, vector<16x16x32xbf16>
    %55 = vector.shape_cast %54 : vector<16x16x32xbf16> to vector<256x32xbf16>
    %c6 = arith.constant 6 : index
    %c0_57 = arith.constant 0 : index
    %c0_58 = arith.constant 0 : index
    %56 = vector.load %arg4[%c6, %c0_57, %c0_58] : memref<9x32x32xbf16, #tpu.memory_space<vmem>>, vector<1x32x32xbf16>
    %57 = vector.shape_cast %56 : vector<1x32x32xbf16> to vector<32x32xbf16>
    %cst_59 = arith.constant dense<0.000000e+00> : vector<256x32xf32>
    %58 = tpu.matmul %55, %57, %cst_59 {dimension_numbers = #tpu.dot_dimension_numbers<[1], [0], [0], [1], [0, 0, 1, 1], [], []>} : vector<256x32xbf16>, vector<32x32xbf16>, vector<256x32xf32> -> vector<256x32xf32>
    %59 = arith.addf %53, %58 : vector<256x32xf32>
    %c2_60 = arith.constant 2 : index
    %c1_61 = arith.constant 1 : index
    %c0_62 = arith.constant 0 : index
    %60 = vector.load %arg12[%c2_60, %c1_61, %c0_62] : memref<18x18x32xbf16, #tpu.memory_space<vmem>>, vector<16x16x32xbf16>
    %61 = vector.shape_cast %60 : vector<16x16x32xbf16> to vector<256x32xbf16>
    %c7 = arith.constant 7 : index
    %c0_63 = arith.constant 0 : index
    %c0_64 = arith.constant 0 : index
    %62 = vector.load %arg4[%c7, %c0_63, %c0_64] : memref<9x32x32xbf16, #tpu.memory_space<vmem>>, vector<1x32x32xbf16>
    %63 = vector.shape_cast %62 : vector<1x32x32xbf16> to vector<32x32xbf16>
    %cst_65 = arith.constant dense<0.000000e+00> : vector<256x32xf32>
    %64 = tpu.matmul %61, %63, %cst_65 {dimension_numbers = #tpu.dot_dimension_numbers<[1], [0], [0], [1], [0, 0, 1, 1], [], []>} : vector<256x32xbf16>, vector<32x32xbf16>, vector<256x32xf32> -> vector<256x32xf32>
    %65 = arith.addf %59, %64 : vector<256x32xf32>
    %c2_66 = arith.constant 2 : index
    %c2_67 = arith.constant 2 : index
    %c0_68 = arith.constant 0 : index
    %66 = vector.load %arg12[%c2_66, %c2_67, %c0_68] : memref<18x18x32xbf16, #tpu.memory_space<vmem>>, vector<16x16x32xbf16>
    %67 = vector.shape_cast %66 : vector<16x16x32xbf16> to vector<256x32xbf16>
    %c8 = arith.constant 8 : index
    %c0_69 = arith.constant 0 : index
    %c0_70 = arith.constant 0 : index
    %68 = vector.load %arg4[%c8, %c0_69, %c0_70] : memref<9x32x32xbf16, #tpu.memory_space<vmem>>, vector<1x32x32xbf16>
    %69 = vector.shape_cast %68 : vector<1x32x32xbf16> to vector<32x32xbf16>
    %cst_71 = arith.constant dense<0.000000e+00> : vector<256x32xf32>
    %70 = tpu.matmul %67, %69, %cst_71 {dimension_numbers = #tpu.dot_dimension_numbers<[1], [0], [0], [1], [0, 0, 1, 1], [], []>} : vector<256x32xbf16>, vector<32x32xbf16>, vector<256x32xf32> -> vector<256x32xf32>
    %71 = arith.addf %65, %70 : vector<256x32xf32>
    %c0_72 = arith.constant 0 : index
    %c0_73 = arith.constant 0 : index
    %72 = vector.load %arg5[%c0_72, %c0_73] : memref<2x32xf32, #tpu.memory_space<vmem>>, vector<1x32xf32>
    %73 = vector.broadcast %72 : vector<1x32xf32> to vector<256x32xf32>
    %74 = arith.mulf %71, %73 : vector<256x32xf32>
    %c1_74 = arith.constant 1 : index
    %c0_75 = arith.constant 0 : index
    %75 = vector.load %arg5[%c1_74, %c0_75] : memref<2x32xf32, #tpu.memory_space<vmem>>, vector<1x32xf32>
    %76 = vector.broadcast %75 : vector<1x32xf32> to vector<256x32xf32>
    %77 = arith.addf %74, %76 : vector<256x32xf32>
    %cst_76 = arith.constant 0.000000e+00 : f32
    %78 = vector.broadcast %cst_76 : f32 to vector<256x32xf32>
    %79 = arith.maximumf %77, %78 : vector<256x32xf32>
    %80 = arith.truncf %79 : vector<256x32xf32> to vector<256x32xbf16>
    %c0_77 = arith.constant 0 : index
    %c0_78 = arith.constant 0 : index
    %81 = vector.load %arg8[%c0_77, %c0_78] : memref<64x256xbf16, #tpu.memory_space<vmem>>, vector<64x256xbf16>
    %cst_79 = arith.constant dense<0.000000e+00> : vector<64x32xf32>
    %82 = tpu.matmul %81, %80, %cst_79 {dimension_numbers = #tpu.dot_dimension_numbers<[1], [0], [0], [1], [0, 0, 1, 1], [], []>} : vector<64x256xbf16>, vector<256x32xbf16>, vector<64x32xf32> -> vector<64x32xf32>
    %83 = arith.truncf %82 : vector<64x32xf32> to vector<64x32xbf16>
    %c0_80 = arith.constant 0 : index
    %c0_81 = arith.constant 0 : index
    %84 = vector.load %arg6[%c0_80, %c0_81] : memref<32x128xbf16, #tpu.memory_space<vmem>>, vector<32x128xbf16>
    %cst_82 = arith.constant dense<0.000000e+00> : vector<64x128xf32>
    %85 = tpu.matmul %83, %84, %cst_82 {dimension_numbers = #tpu.dot_dimension_numbers<[1], [0], [0], [1], [0, 0, 1, 1], [], []>} : vector<64x32xbf16>, vector<32x128xbf16>, vector<64x128xf32> -> vector<64x128xf32>
    %c0_83 = arith.constant 0 : index
    %c0_84 = arith.constant 0 : index
    %86 = vector.load %arg7[%c0_83, %c0_84] : memref<2x128xf32, #tpu.memory_space<vmem>>, vector<1x128xf32>
    %87 = vector.broadcast %86 : vector<1x128xf32> to vector<64x128xf32>
    %88 = arith.mulf %85, %87 : vector<64x128xf32>
    %c1_85 = arith.constant 1 : index
    %c0_86 = arith.constant 0 : index
    %89 = vector.load %arg7[%c1_85, %c0_86] : memref<2x128xf32, #tpu.memory_space<vmem>>, vector<1x128xf32>
    %90 = vector.broadcast %89 : vector<1x128xf32> to vector<64x128xf32>
    %91 = arith.addf %88, %90 : vector<64x128xf32>
    %c0_87 = arith.constant 0 : index
    %c0_88 = arith.constant 0 : index
    %92 = vector.load %arg8[%c0_87, %c0_88] : memref<64x256xbf16, #tpu.memory_space<vmem>>, vector<64x256xbf16>
    %cst_89 = arith.constant dense<0.000000e+00> : vector<64x64xf32>
    %93 = tpu.matmul %92, %1, %cst_89 {dimension_numbers = #tpu.dot_dimension_numbers<[1], [0], [0], [1], [0, 0, 1, 1], [], []>} : vector<64x256xbf16>, vector<256x64xbf16>, vector<64x64xf32> -> vector<64x64xf32>
    %94 = arith.truncf %93 : vector<64x64xf32> to vector<64x64xbf16>
    %c0_90 = arith.constant 0 : index
    %c0_91 = arith.constant 0 : index
    %95 = vector.load %arg9[%c0_90, %c0_91] : memref<64x128xbf16, #tpu.memory_space<vmem>>, vector<64x128xbf16>
    %cst_92 = arith.constant dense<0.000000e+00> : vector<64x128xf32>
    %96 = tpu.matmul %94, %95, %cst_92 {dimension_numbers = #tpu.dot_dimension_numbers<[1], [0], [0], [1], [0, 0, 1, 1], [], []>} : vector<64x64xbf16>, vector<64x128xbf16>, vector<64x128xf32> -> vector<64x128xf32>
    %c0_93 = arith.constant 0 : index
    %c0_94 = arith.constant 0 : index
    %97 = vector.load %arg10[%c0_93, %c0_94] : memref<2x128xf32, #tpu.memory_space<vmem>>, vector<1x128xf32>
    %98 = vector.broadcast %97 : vector<1x128xf32> to vector<64x128xf32>
    %99 = arith.mulf %96, %98 : vector<64x128xf32>
    %c1_95 = arith.constant 1 : index
    %c0_96 = arith.constant 0 : index
    %100 = vector.load %arg10[%c1_95, %c0_96] : memref<2x128xf32, #tpu.memory_space<vmem>>, vector<1x128xf32>
    %101 = vector.broadcast %100 : vector<1x128xf32> to vector<64x128xf32>
    %102 = arith.addf %99, %101 : vector<64x128xf32>
    %103 = arith.addf %91, %102 : vector<64x128xf32>
    %cst_97 = arith.constant 0.000000e+00 : f32
    %104 = vector.broadcast %cst_97 : f32 to vector<64x128xf32>
    %105 = arith.maximumf %103, %104 : vector<64x128xf32>
    %c0_98 = arith.constant 0 : index
    %c0_99 = arith.constant 0 : index
    %c0_100 = arith.constant 0 : index
    %106 = vector.load %arg11[%c0_98, %c0_99, %c0_100] : memref<1x64x128xf32, #tpu.memory_space<vmem>>, vector<1x64x128xf32>
    %107 = vector.shape_cast %106 : vector<1x64x128xf32> to vector<64x128xf32>
    %108 = vector.shape_cast %105 : vector<64x128xf32> to vector<1x64x128xf32>
    tpu.vector_store %arg11[%c0_98, %c0_99, %c0_100], %108 {strides = array<i32>} : memref<1x64x128xf32, #tpu.memory_space<vmem>>, vector<1x64x128xf32>,
    return
  }
  func.func @transform_0(%arg0: i32) -> (i32, i32, i32) {
    %c0_i32 = arith.constant 0 : i32
    %c0_i32_0 = arith.constant 0 : i32
    %c0_i32_1 = arith.constant 0 : i32
    return %arg0, %c0_i32, %c0_i32_0 : i32, i32, i32
  }
  func.func @transform_1(%arg0: i32) -> (i32, i32) {
    %c0_i32 = arith.constant 0 : i32
    %c0_i32_0 = arith.constant 0 : i32
    %c0_i32_1 = arith.constant 0 : i32
    return %c0_i32, %c0_i32_0 : i32, i32
  }
  func.func @transform_2(%arg0: i32) -> (i32, i32) {
    %c0_i32 = arith.constant 0 : i32
    %c0_i32_0 = arith.constant 0 : i32
    %c0_i32_1 = arith.constant 0 : i32
    return %c0_i32, %c0_i32_0 : i32, i32
  }
  func.func @transform_3(%arg0: i32) -> (i32, i32, i32) {
    %c0_i32 = arith.constant 0 : i32
    %c0_i32_0 = arith.constant 0 : i32
    %c0_i32_1 = arith.constant 0 : i32
    %c0_i32_2 = arith.constant 0 : i32
    return %c0_i32, %c0_i32_0, %c0_i32_1 : i32, i32, i32
  }
  func.func @transform_4(%arg0: i32) -> (i32, i32) {
    %c0_i32 = arith.constant 0 : i32
    %c0_i32_0 = arith.constant 0 : i32
    %c0_i32_1 = arith.constant 0 : i32
    return %c0_i32, %c0_i32_0 : i32, i32
  }
  func.func @transform_5(%arg0: i32) -> (i32, i32) {
    %c0_i32 = arith.constant 0 : i32
    %c0_i32_0 = arith.constant 0 : i32
    %c0_i32_1 = arith.constant 0 : i32
    return %c0_i32, %c0_i32_0 : i32, i32
  }
  func.func @transform_6(%arg0: i32) -> (i32, i32) {
    %c0_i32 = arith.constant 0 : i32
    %c0_i32_0 = arith.constant 0 : i32
    %c0_i32_1 = arith.constant 0 : i32
    return %c0_i32, %c0_i32_0 : i32, i32
  }
  func.func @transform_7(%arg0: i32) -> (i32, i32) {
    %c0_i32 = arith.constant 0 : i32
    %c0_i32_0 = arith.constant 0 : i32
    %c0_i32_1 = arith.constant 0 : i32
    return %c0_i32, %c0_i32_0 : i32, i32
  }
  func.func @transform_8(%arg0: i32) -> (i32, i32) {
    %c0_i32 = arith.constant 0 : i32
    %c0_i32_0 = arith.constant 0 : i32
    %c0_i32_1 = arith.constant 0 : i32
    return %c0_i32, %c0_i32_0 : i32, i32
  }
  func.func @transform_9(%arg0: i32) -> (i32, i32) {
    %c0_i32 = arith.constant 0 : i32
    %c0_i32_0 = arith.constant 0 : i32
    %c0_i32_1 = arith.constant 0 : i32
    return %c0_i32, %c0_i32_0 : i32, i32
  }
  func.func @transform_10(%arg0: i32) -> (i32, i32, i32) {
    %c0_i32 = arith.constant 0 : i32
    %c0_i32_0 = arith.constant 0 : i32
    %c0_i32_1 = arith.constant 0 : i32
    return %arg0, %c0_i32, %c0_i32_0 : i32, i32, i32
  }
}

</mosaic_0001>

<llo_original>
// kernel: bottleneck_forward.1
$region0: #{bottleneck_forward.1}
  #allocation0 [shape = 'u32[]', space=smem, size = 0x4, offset = 0x4, fixed_abs, tag = 'smem constant byte address 0x4 - core index']
  #allocation1 [shape = 'u32[72,128]{1,0:T(1,128)}', space=vmem, size = 0x9000, scoped, tag = 'internal scratch']
  #allocation2 [shape = 'bf16[18,18,32]{2,1,0:T(8,128)(2,1)}', space=vmem, size = 0x1b000, scoped, tag = 'scratch operand']
  %s0 = inlined_call_operand.vmem [shape: bf16[2,256,64], index: 0, kind: input, shape index: {}]
  %s1 = inlined_call_operand.vmem [shape: bf16[64,32], index: 1, kind: input, shape index: {}]
  %s2 = inlined_call_operand.vmem [shape: f32[2,32], index: 2, kind: input, shape index: {}]
  %s3 = inlined_call_operand.vmem [shape: bf16[9,32,32], index: 3, kind: input, shape index: {}]
  %s4 = inlined_call_operand.vmem [shape: f32[2,32], index: 4, kind: input, shape index: {}]
  %s5 = inlined_call_operand.vmem [shape: bf16[32,128], index: 5, kind: input, shape index: {}]
  %s6 = inlined_call_operand.vmem [shape: f32[2,128], index: 6, kind: input, shape index: {}]
  %s7 = inlined_call_operand.vmem [shape: bf16[64,256], index: 7, kind: input, shape index: {}]
  %s8 = inlined_call_operand.vmem [shape: bf16[64,128], index: 8, kind: input, shape index: {}]
  %s9 = inlined_call_operand.vmem [shape: f32[2,128], index: 9, kind: input, shape index: {}]
  %s10 = inlined_call_operand.hbm [shape: f32[2,64,128], index: 10, kind: output, shape index: {}]
  %s11 = sld [smem:[#allocation0]]
  $region73: #{bottleneck_forward.1} parent=0
    _
  %s13 = ssub.s32 1, %s11
  %s14 = scalar_select 0, %s13, %s11
  $region1: #{bottleneck_forward.1} parent=0
    #allocation3 [shape = 'u8[65536]{0}', space=vmem, size = 0x10000, scoped, tag = 'output window, operand 0']
    #allocation4 [shape = 's32[2]{0}', space=sflag, size = 0x8, scoped, tag = 'scoped memory for bottleneck_forward.1']
    %15 = vsyncpa [#allocation4], 0
    %s16 = scalar_lea.sflag [#allocation4], 1
    %17 = vsyncpa %s16, 0
    loop: start=0, step=1, limit=4
    $region2: #{bottleneck_forward.1} parent=1 // loop_pre_header
      _
    $region3: #{bottleneck_forward.1} parent=1 // loop_header
      %s19 = sphi 0, %s23
      %p20 = scmp.ge.s32.totalorder %s19, 4
      %s29 = sphi 0, %s31
      %s32 = sphi 0, %s29
      %s33 = sphi 0, %s32
      %s49 = sphi 0, %s33
      %s53 = sphi 0, %s53
      %s55 = sphi 0, %s53
      %s56 = sphi 0, %s55
      %s70 = sphi 0, %s56
      %s74 = sphi 0, %s74
      %s76 = sphi 0, %s74
      %s77 = sphi 0, %s76
      %s91 = sphi 0, %s77
      %s95 = sphi 0, %s95
      %s97 = sphi 0, %s95
      %s98 = sphi 0, %s97
      %s112 = sphi 0, %s98
      %s116 = sphi 0, %s116
      %s118 = sphi 0, %s116
      %s119 = sphi 0, %s118
      %s133 = sphi 0, %s119
      %s137 = sphi 0, %s137
      %s139 = sphi 0, %s137
      %s140 = sphi 0, %s139
      %s154 = sphi 0, %s140
      %s158 = sphi 0, %s158
      %s160 = sphi 0, %s158
      %s161 = sphi 0, %s160
      %s175 = sphi 0, %s161
      %s179 = sphi 0, %s179
      %s181 = sphi 0, %s179
      %s182 = sphi 0, %s181
      %s196 = sphi 0, %s182
      %s200 = sphi 0, %s200
      %s202 = sphi 0, %s200
      %s203 = sphi 0, %s202
      %s217 = sphi 0, %s203
      %s221 = sphi 0, %s221
      %s223 = sphi 0, %s221
      %s224 = sphi 0, %s223
      %s238 = sphi 0, %s224
      %s244 = sphi 0, %s246
      %s247 = sphi 0, %s244
      %s248 = sphi 0, %s247
      %s264 = sphi 0, %s248
    $region4: #{bottleneck_forward.1} parent=1 // loop_header_branch
      %22 = sbr.rel (%p20) target = $region8
    $region5: #{bottleneck_forward.1} parent=1 // loop_body
      %s24 = ssub.s32 %s19, 1
      %s25 = ssub.s32 %s19, 2
      %s26 = sadd.s32 %s19, 1
      %s27 = ssub.s32 %s19, %s26
      %p28 = scmp.eq.s32.totalorder %s27, 0
      %s30 = sadd.s32 %s29, 1
      %s31 = scalar_select %p28, %s29, %s30
      %p34 = pneg %p28
      %p35 = scmp.eq.s32.totalorder %s19, 1
      %p36 = por %p34, %p35
      %p37 = scmp.ne.s32.totalorder %s29, %s32
      %p38 = scmp.eq.s32.totalorder %s19, 0
      %p39 = por %p37, %p38
      %p40 = scmp.ne.s32.totalorder %s29, %s32
      %p41 = scmp.eq.s32.totalorder %s24, 1
      %p42 = por %p40, %p41
      %p43 = scmp.ne.s32.totalorder %s32, %s33
      %p44 = scmp.eq.s32.totalorder %s24, 0
      %p45 = por %p43, %p44
      %p46 = scmp.ne.s32.totalorder %s32, %s33
      %p47 = scmp.eq.s32.totalorder %s25, 1
      %p48 = por %p46, %p47
      %p50 = scmp.ne.s32.totalorder %s33, %s49
      %p51 = scmp.eq.s32.totalorder %s25, 0
      %p52 = por %p50, %p51
      %s54 = sadd.s32 %s53, 1
      %p57 = scmp.eq.s32.totalorder %s19, 1
      %p58 = scmp.ne.s32.totalorder %s53, %s55
      %p59 = scmp.eq.s32.totalorder %s19, 0
      %p60 = por %p58, %p59
      %p61 = scmp.ne.s32.totalorder %s53, %s55
      %p62 = scmp.eq.s32.totalorder %s24, 1
      %p63 = por %p61, %p62
      %p64 = scmp.ne.s32.totalorder %s55, %s56
      %p65 = scmp.eq.s32.totalorder %s24, 0
      %p66 = por %p64, %p65
      %p67 = scmp.ne.s32.totalorder %s55, %s56
      %p68 = scmp.eq.s32.totalorder %s25, 1
      %p69 = por %p67, %p68
      %p71 = scmp.ne.s32.totalorder %s56, %s70
      %p72 = scmp.eq.s32.totalorder %s25, 0
      %p73 = por %p71, %p72
      %s75 = sadd.s32 %s74, 1
      %p78 = scmp.eq.s32.totalorder %s19, 1
      %p79 = scmp.ne.s32.totalorder %s74, %s76
      %p80 = scmp.eq.s32.totalorder %s19, 0
      %p81 = por %p79, %p80
      %p82 = scmp.ne.s32.totalorder %s74, %s76
      %p83 = scmp.eq.s32.totalorder %s24, 1
      %p84 = por %p82, %p83
      %p85 = scmp.ne.s32.totalorder %s76, %s77
      %p86 = scmp.eq.s32.totalorder %s24, 0
      %p87 = por %p85, %p86
      %p88 = scmp.ne.s32.totalorder %s76, %s77
      %p89 = scmp.eq.s32.totalorder %s25, 1
      %p90 = por %p88, %p89
      %p92 = scmp.ne.s32.totalorder %s77, %s91
      %p93 = scmp.eq.s32.totalorder %s25, 0
      %p94 = por %p92, %p93
      %s96 = sadd.s32 %s95, 1
      %p99 = scmp.eq.s32.totalorder %s19, 1
      %p100 = scmp.ne.s32.totalorder %s95, %s97
      %p101 = scmp.eq.s32.totalorder %s19, 0
      %p102 = por %p100, %p101
      %p103 = scmp.ne.s32.totalorder %s95, %s97
      %p104 = scmp.eq.s32.totalorder %s24, 1
      %p105 = por %p103, %p104
      %p106 = scmp.ne.s32.totalorder %s97, %s98
      %p107 = scmp.eq.s32.totalorder %s24, 0
      %p108 = por %p106, %p107
      %p109 = scmp.ne.s32.totalorder %s97, %s98
      %p110 = scmp.eq.s32.totalorder %s25, 1
      %p111 = por %p109, %p110
      %p113 = scmp.ne.s32.totalorder %s98, %s112
      %p114 = scmp.eq.s32.totalorder %s25, 0
      %p115 = por %p113, %p114
      %s117 = sadd.s32 %s116, 1
      %p120 = scmp.eq.s32.totalorder %s19, 1
      %p121 = scmp.ne.s32.totalorder %s116, %s118
      %p122 = scmp.eq.s32.totalorder %s19, 0
      %p123 = por %p121, %p122
      %p124 = scmp.ne.s32.totalorder %s116, %s118
      %p125 = scmp.eq.s32.totalorder %s24, 1
      %p126 = por %p124, %p125
      %p127 = scmp.ne.s32.totalorder %s118, %s119
      %p128 = scmp.eq.s32.totalorder %s24, 0
      %p129 = por %p127, %p128
      %p130 = scmp.ne.s32.totalorder %s118, %s119
      %p131 = scmp.eq.s32.totalorder %s25, 1
      %p132 = por %p130, %p131
      %p134 = scmp.ne.s32.totalorder %s119, %s133
      %p135 = scmp.eq.s32.totalorder %s25, 0
      %p136 = por %p134, %p135
      %s138 = sadd.s32 %s137, 1
      %p141 = scmp.eq.s32.totalorder %s19, 1
      %p142 = scmp.ne.s32.totalorder %s137, %s139
      %p143 = scmp.eq.s32.totalorder %s19, 0
      %p144 = por %p142, %p143
      %p145 = scmp.ne.s32.totalorder %s137, %s139
      %p146 = scmp.eq.s32.totalorder %s24, 1
      %p147 = por %p145, %p146
      %p148 = scmp.ne.s32.totalorder %s139, %s140
      %p149 = scmp.eq.s32.totalorder %s24, 0
      %p150 = por %p148, %p149
      %p151 = scmp.ne.s32.totalorder %s139, %s140
      %p152 = scmp.eq.s32.totalorder %s25, 1
      %p153 = por %p151, %p152
      %p155 = scmp.ne.s32.totalorder %s140, %s154
      %p156 = scmp.eq.s32.totalorder %s25, 0
      %p157 = por %p155, %p156
      %s159 = sadd.s32 %s158, 1
      %p162 = scmp.eq.s32.totalorder %s19, 1
      %p163 = scmp.ne.s32.totalorder %s158, %s160
      %p164 = scmp.eq.s32.totalorder %s19, 0
      %p165 = por %p163, %p164
      %p166 = scmp.ne.s32.totalorder %s158, %s160
      %p167 = scmp.eq.s32.totalorder %s24, 1
      %p168 = por %p166, %p167
      %p169 = scmp.ne.s32.totalorder %s160, %s161
      %p170 = scmp.eq.s32.totalorder %s24, 0
      %p171 = por %p169, %p170
      %p172 = scmp.ne.s32.totalorder %s160, %s161
      %p173 = scmp.eq.s32.totalorder %s25, 1
      %p174 = por %p172, %p173
      %p176 = scmp.ne.s32.totalorder %s161, %s175
      %p177 = scmp.eq.s32.totalorder %s25, 0
      %p178 = por %p176, %p177
      %s180 = sadd.s32 %s179, 1
      %p183 = scmp.eq.s32.totalorder %s19, 1
      %p184 = scmp.ne.s32.totalorder %s179, %s181
      %p185 = scmp.eq.s32.totalorder %s19, 0
      %p186 = por %p184, %p185
      %p187 = scmp.ne.s32.totalorder %s179, %s181
      %p188 = scmp.eq.s32.totalorder %s24, 1
      %p189 = por %p187, %p188
      %p190 = scmp.ne.s32.totalorder %s181, %s182
      %p191 = scmp.eq.s32.totalorder %s24, 0
      %p192 = por %p190, %p191
      %p193 = scmp.ne.s32.totalorder %s181, %s182
      %p194 = scmp.eq.s32.totalorder %s25, 1
      %p195 = por %p193, %p194
      %p197 = scmp.ne.s32.totalorder %s182, %s196
      %p198 = scmp.eq.s32.totalorder %s25, 0
      %p199 = por %p197, %p198
      %s201 = sadd.s32 %s200, 1
      %p204 = scmp.eq.s32.totalorder %s19, 1
      %p205 = scmp.ne.s32.totalorder %s200, %s202
      %p206 = scmp.eq.s32.totalorder %s19, 0
      %p207 = por %p205, %p206
      %p208 = scmp.ne.s32.totalorder %s200, %s202
      %p209 = scmp.eq.s32.totalorder %s24, 1
      %p210 = por %p208, %p209
      %p211 = scmp.ne.s32.totalorder %s202, %s203
      %p212 = scmp.eq.s32.totalorder %s24, 0
      %p213 = por %p211, %p212
      %p214 = scmp.ne.s32.totalorder %s202, %s203
      %p215 = scmp.eq.s32.totalorder %s25, 1
      %p216 = por %p214, %p215
      %p218 = scmp.ne.s32.totalorder %s203, %s217
      %p219 = scmp.eq.s32.totalorder %s25, 0
      %p220 = por %p218, %p219
      %s222 = sadd.s32 %s221, 1
      %p225 = scmp.eq.s32.totalorder %s19, 1
      %p226 = scmp.ne.s32.totalorder %s221, %s223
      %p227 = scmp.eq.s32.totalorder %s19, 0
      %p228 = por %p226, %p227
      %p229 = scmp.ne.s32.totalorder %s221, %s223
      %p230 = scmp.eq.s32.totalorder %s24, 1
      %p231 = por %p229, %p230
      %p232 = scmp.ne.s32.totalorder %s223, %s224
      %p233 = scmp.eq.s32.totalorder %s24, 0
      %p234 = por %p232, %p233
      %p235 = scmp.ne.s32.totalorder %s223, %s224
      %p236 = scmp.eq.s32.totalorder %s25, 1
      %p237 = por %p235, %p236
      %p239 = scmp.ne.s32.totalorder %s224, %s238
      %p240 = scmp.eq.s32.totalorder %s25, 0
      %p241 = por %p239, %p240
      %s242 = ssub.s32 %s19, %s26
      %p243 = scmp.eq.s32.totalorder %s242, 0
      %s245 = sadd.s32 %s244, 1
      %s246 = scalar_select %p243, %s244, %s245
      %p249 = pneg %p243
      %p250 = scmp.eq.s32.totalorder %s19, 1
      %p251 = por %p249, %p250
      %p252 = scmp.ne.s32.totalorder %s244, %s247
      %p253 = scmp.eq.s32.totalorder %s19, 0
      %p254 = por %p252, %p253
      %p255 = scmp.ne.s32.totalorder %s244, %s247
      %p256 = scmp.eq.s32.totalorder %s24, 1
      %p257 = por %p255, %p256
      %p258 = scmp.ne.s32.totalorder %s247, %s248
      %p259 = scmp.eq.s32.totalorder %s24, 0
      %p260 = por %p258, %p259
      %p261 = scmp.ne.s32.totalorder %s247, %s248
      %p262 = scmp.eq.s32.totalorder %s25, 1
      %p263 = por %p261, %p262
      %p265 = scmp.ne.s32.totalorder %s248, %s264
      %p266 = scmp.eq.s32.totalorder %s25, 0
      %p267 = por %p265, %p266
      %p268 = scmp.le.s32.totalorder 1, %s19
      %p269 = scmp.lt.s32.totalorder %s19, 3
      %p270 = pnand %p268, %p269
      %p271 = pneg %p270
      // Predicated region
      $region9: #{bottleneck_forward.1} parent=5 // pred_check
        _
      $region10: #{bottleneck_forward.1} parent=5 // pred_check_branch
        %273 = sbr.rel (%p270) target = $region12
      $region11: #{bottleneck_forward.1} parent=5 // pred_region
        %s274 = ssub.s32 %s19, 1
        // Predicated region
        $region13: #{bottleneck_forward.1} parent=11 // pred_check
          %p275 = pneg %p66
        $region14: #{bottleneck_forward.1} parent=11 // pred_check_branch
          %277 = sbr.rel (%p275) target = $region16
        $region15: #{bottleneck_forward.1} parent=11 // pred_region
          _
        $region16: #{bottleneck_forward.1} parent=11 // pred_fallthru
          _
        // Predicated region
        $region17: #{bottleneck_forward.1} parent=11 // pred_check
          %p278 = pneg %p87
        $region18: #{bottleneck_forward.1} parent=11 // pred_check_branch
          %280 = sbr.rel (%p278) target = $region20
        $region19: #{bottleneck_forward.1} parent=11 // pred_region
          _
        $region20: #{bottleneck_forward.1} parent=11 // pred_fallthru
          _
        // Predicated region
        $region21: #{bottleneck_forward.1} parent=11 // pred_check
          %p281 = pneg %p108
        $region22: #{bottleneck_forward.1} parent=11 // pred_check_branch
          %283 = sbr.rel (%p281) target = $region24
        $region23: #{bottleneck_forward.1} parent=11 // pred_region
          _
        $region24: #{bottleneck_forward.1} parent=11 // pred_fallthru
          _
        // Predicated region
        $region25: #{bottleneck_forward.1} parent=11 // pred_check
          %p284 = pneg %p129
        $region26: #{bottleneck_forward.1} parent=11 // pred_check_branch
          %286 = sbr.rel (%p284) target = $region28
        $region27: #{bottleneck_forward.1} parent=11 // pred_region
          _
        $region28: #{bottleneck_forward.1} parent=11 // pred_fallthru
          _
        // Predicated region
        $region29: #{bottleneck_forward.1} parent=11 // pred_check
          %p287 = pneg %p150
        $region30: #{bottleneck_forward.1} parent=11 // pred_check_branch
          %289 = sbr.rel (%p287) target = $region32
        $region31: #{bottleneck_forward.1} parent=11 // pred_region
          _
        $region32: #{bottleneck_forward.1} parent=11 // pred_fallthru
          _
        // Predicated region
        $region33: #{bottleneck_forward.1} parent=11 // pred_check
          %p290 = pneg %p171
        $region34: #{bottleneck_forward.1} parent=11 // pred_check_branch
          %292 = sbr.rel (%p290) target = $region36
        $region35: #{bottleneck_forward.1} parent=11 // pred_region
          _
        $region36: #{bottleneck_forward.1} parent=11 // pred_fallthru
          _
        // Predicated region
        $region37: #{bottleneck_forward.1} parent=11 // pred_check
          %p293 = pneg %p192
        $region38: #{bottleneck_forward.1} parent=11 // pred_check_branch
          %295 = sbr.rel (%p293) target = $region40
        $region39: #{bottleneck_forward.1} parent=11 // pred_region
          _
        $region40: #{bottleneck_forward.1} parent=11 // pred_fallthru
          _
        // Predicated region
        $region41: #{bottleneck_forward.1} parent=11 // pred_check
          %p296 = pneg %p213
        $region42: #{bottleneck_forward.1} parent=11 // pred_check_branch
          %298 = sbr.rel (%p296) target = $region44
        $region43: #{bottleneck_forward.1} parent=11 // pred_region
          _
        $region44: #{bottleneck_forward.1} parent=11 // pred_fallthru
          _
        // Predicated region
        $region45: #{bottleneck_forward.1} parent=11 // pred_check
          %p299 = pneg %p234
        $region46: #{bottleneck_forward.1} parent=11 // pred_check_branch
          %301 = sbr.rel (%p299) target = $region48
        $region47: #{bottleneck_forward.1} parent=11 // pred_region
          _
        $region48: #{bottleneck_forward.1} parent=11 // pred_fallthru
          _
      $region12: #{bottleneck_forward.1} parent=5 // pred_fallthru
        _
      %p302 = scmp.lt.s32.totalorder %s19, 2
      // Predicated region
      $region49: #{bottleneck_forward.1} parent=5 // pred_check
        %p303 = pneg %p302
      $region50: #{bottleneck_forward.1} parent=5 // pred_check_branch
        %305 = sbr.rel (%p303) target = $region52
      $region51: #{bottleneck_forward.1} parent=5 // pred_region
        // Predicated region
        $region53: #{bottleneck_forward.1} parent=51 // pred_check
          %p306 = pneg %p39
        $region54: #{bottleneck_forward.1} parent=51 // pred_check_branch
          %308 = sbr.rel (%p306) target = $region56
        $region55: #{bottleneck_forward.1} parent=51 // pred_region
          %p309 = scmp.lt.s32.totalorder %s19, 1
          %s310 = scalar_select %p309, %s19, 1
          %s311 = smul.addr %s310, 32
          %s312 = smul.addr %s311, 4
          %s313 = scalar_lea.vmem %s0, %s312
        $region56: #{bottleneck_forward.1} parent=51 // pred_fallthru
          _
      $region52: #{bottleneck_forward.1} parent=5 // pred_fallthru
        _
      %p314 = scmp.le.s32.totalorder 1, %s19
      %p315 = scmp.lt.s32.totalorder %s19, 3
      %p316 = pnand %p314, %p315
      %p317 = pneg %p316
      // Predicated region
      $region57: #{bottleneck_forward.1} parent=5 // pred_check
        _
      $region58: #{bottleneck_forward.1} parent=5 // pred_check_branch
        %319 = sbr.rel (%p316) target = $region60
      $region59: #{bottleneck_forward.1} parent=5 // pred_region
        %s320 = ssub.s32 %s19, 1
        %p321 = scmp.lt.s32.totalorder %s24, 1
        %s322 = scalar_select %p321, %s24, 1
        %s323 = smul.addr %s322, 32
        %s324 = smul.addr %s323, 4
        %s325 = scalar_lea.vmem %s0, %s324
        %p326 = pneg %p45
        %p327 = pneg %p42
        %p328 = pneg %p66
        %p329 = pneg %p63
        %p330 = pneg %p87
        %p331 = pneg %p84
        %p332 = pneg %p108
        %p333 = pneg %p105
        %p334 = pneg %p129
        %p335 = pneg %p126
        %p336 = pneg %p150
        %p337 = pneg %p147
        %p338 = pneg %p171
        %p339 = pneg %p168
        %p340 = pneg %p192
        %p341 = pneg %p189
        %p342 = pneg %p213
        %p343 = pneg %p210
        %p344 = pneg %p234
        %p345 = pneg %p231
        %p346 = pneg %p260
        %p347 = pneg %p257
        %s348 = sand.u32 %s247, 1
        %s349 = scalar_lea.sflag [#allocation4], %s348
        %s350 = sand.u32 %s247, 1
        %s351 = smul.addr %s350, 64
        %s352 = scalar_lea.vmem [#allocation3], %s351
        %p353 = scmp.lt.s32.totalorder %s24, 1
        %s354 = scalar_select %p353, %s24, 1
        %s355 = smul.addr %s354, 32
        %s356 = smul.addr %s355, 4
        %s357 = scalar_lea.vmem %s0, %s356
        %v359 = vld [vmem:[%s357] sm:$0xf]
        %v360 = vld [vmem:[%s357 + $0x4] sm:$0xf]
        %v361 = vld [vmem:[%s357 + $0x8] sm:$0xf]
        %v362 = vld [vmem:[%s357 + $0xc] sm:$0xf]
        %v363 = vld [vmem:[%s357 + $0x10] sm:$0xf]
        %v364 = vld [vmem:[%s357 + $0x14] sm:$0xf]
        %v365 = vld [vmem:[%s357 + $0x18] sm:$0xf]
        %v366 = vld [vmem:[%s357 + $0x1c] sm:$0xf]
        %v367 = vld [vmem:[%s357 + $0x20] sm:$0xf]
        %v368 = vld [vmem:[%s357 + $0x24] sm:$0xf]
        %v369 = vld [vmem:[%s357 + $0x28] sm:$0xf]
        %v370 = vld [vmem:[%s357 + $0x2c] sm:$0xf]
        %v371 = vld [vmem:[%s357 + $0x30] sm:$0xf]
        %v372 = vld [vmem:[%s357 + $0x34] sm:$0xf]
        %v373 = vld [vmem:[%s357 + $0x38] sm:$0xf]
        %v374 = vld [vmem:[%s357 + $0x3c] sm:$0xf]
        %v375 = vld [vmem:[%s357 + $0x40] sm:$0xf]
        %v376 = vld [vmem:[%s357 + $0x44] sm:$0xf]
        %v377 = vld [vmem:[%s357 + $0x48] sm:$0xf]
        %v378 = vld [vmem:[%s357 + $0x4c] sm:$0xf]
        %v379 = vld [vmem:[%s357 + $0x50] sm:$0xf]
        %v380 = vld [vmem:[%s357 + $0x54] sm:$0xf]
        %v381 = vld [vmem:[%s357 + $0x58] sm:$0xf]
        %v382 = vld [vmem:[%s357 + $0x5c] sm:$0xf]
        %v383 = vld [vmem:[%s357 + $0x60] sm:$0xf]
        %v384 = vld [vmem:[%s357 + $0x64] sm:$0xf]
        %v385 = vld [vmem:[%s357 + $0x68] sm:$0xf]
        %v386 = vld [vmem:[%s357 + $0x6c] sm:$0xf]
        %v387 = vld [vmem:[%s357 + $0x70] sm:$0xf]
        %v388 = vld [vmem:[%s357 + $0x74] sm:$0xf]
        %v389 = vld [vmem:[%s357 + $0x78] sm:$0xf]
        %v390 = vld [vmem:[%s357 + $0x7c] sm:$0xf]
        %v391 = vld [vmem:[%s1] sm:$0xf]
        %v392 = vld [vmem:[%s1 + $0x4] sm:$0xf]
        %v393 = vld [vmem:[%s1 + $0x8] sm:$0xf]
        %v394 = vld [vmem:[%s1 + $0xc] sm:$0xf]
        %v395 = vld [vmem:[%s1 + $0x10] sm:$0xf]
        %v396 = vld [vmem:[%s1 + $0x14] sm:$0xf]
        %v397 = vld [vmem:[%s1 + $0x18] sm:$0xf]
        %v398 = vld [vmem:[%s1 + $0x1c] sm:$0xf]
        %v431 = vunpack.c.l.b16 %v359
        %v432 = vunpack.c.l.b16 %v360
        %v433 = vunpack.c.l.b16 %v361
        %v434 = vunpack.c.l.b16 %v362
        %v435 = vunpack.c.l.b16 %v363
        %v436 = vunpack.c.l.b16 %v364
        %v437 = vunpack.c.l.b16 %v365
        %v438 = vunpack.c.l.b16 %v366
        %v439 = vunpack.c.l.b16 %v367
        %v440 = vunpack.c.l.b16 %v368
        %v441 = vunpack.c.l.b16 %v369
        %v442 = vunpack.c.l.b16 %v370
        %v443 = vunpack.c.l.b16 %v371
        %v444 = vunpack.c.l.b16 %v372
        %v445 = vunpack.c.l.b16 %v373
        %v446 = vunpack.c.l.b16 %v374
        %v447 = vunpack.c.l.b16 %v375
        %v448 = vunpack.c.l.b16 %v376
        %v449 = vunpack.c.l.b16 %v377
        %v450 = vunpack.c.l.b16 %v378
        %v451 = vunpack.c.l.b16 %v379
        %v452 = vunpack.c.l.b16 %v380
        %v453 = vunpack.c.l.b16 %v381
        %v454 = vunpack.c.l.b16 %v382
        %v455 = vunpack.c.l.b16 %v383
        %v456 = vunpack.c.l.b16 %v384
        %v457 = vunpack.c.l.b16 %v385
        %v458 = vunpack.c.l.b16 %v386
        %v459 = vunpack.c.l.b16 %v387
        %v460 = vunpack.c.l.b16 %v388
        %v461 = vunpack.c.l.b16 %v389
        %v462 = vunpack.c.l.b16 %v390
        %v463 = vpack.c.b16 %v432, %v431
        %v464 = vpack.c.b16 %v434, %v433
        %v465 = vpack.c.b16 %v436, %v435
        %v466 = vpack.c.b16 %v438, %v437
        %v467 = vpack.c.b16 %v440, %v439
        %v468 = vpack.c.b16 %v442, %v441
        %v469 = vpack.c.b16 %v444, %v443
        %v470 = vpack.c.b16 %v446, %v445
        %v471 = vpack.c.b16 %v448, %v447
        %v472 = vpack.c.b16 %v450, %v449
        %v473 = vpack.c.b16 %v452, %v451
        %v474 = vpack.c.b16 %v454, %v453
        %v475 = vpack.c.b16 %v456, %v455
        %v476 = vpack.c.b16 %v458, %v457
        %v477 = vpack.c.b16 %v460, %v459
        %v478 = vpack.c.b16 %v462, %v461
        %v487 = vunpack.c.l.b16 %v391
        %v488 = vunpack.c.l.b16 %v392
        %v489 = vunpack.c.l.b16 %v393
        %v490 = vunpack.c.l.b16 %v394
        %v491 = vunpack.c.l.b16 %v395
        %v492 = vunpack.c.l.b16 %v396
        %v493 = vunpack.c.l.b16 %v397
        %v494 = vunpack.c.l.b16 %v398
        %v495 = vpack.c.b16 %v488, %v487
        %v496 = vpack.c.b16 %v490, %v489
        %v497 = vpack.c.b16 %v492, %v491
        %v498 = vpack.c.b16 %v494, %v493
        %vm503 = vcmask 523264
        %v505 = vsel %vm503, %v463, 0
        %v508 = vsel %vm503, %v464, 0
        %v511 = vsel %vm503, %v465, 0
        %v514 = vsel %vm503, %v466, 0
        %v517 = vsel %vm503, %v467, 0
        %v520 = vsel %vm503, %v468, 0
        %v523 = vsel %vm503, %v469, 0
        %v526 = vsel %vm503, %v470, 0
        %v529 = vsel %vm503, %v471, 0
        %v532 = vsel %vm503, %v472, 0
        %v535 = vsel %vm503, %v473, 0
        %v538 = vsel %vm503, %v474, 0
        %v541 = vsel %vm503, %v475, 0
        %v544 = vsel %vm503, %v476, 0
        %v547 = vsel %vm503, %v477, 0
        %v550 = vsel %vm503, %v478, 0
        %552 = vmatpush.bf16.msra.mxu0 0
        %553 = vmatpush.bf16.msra.mxu0 0
        %554 = vmatpush.bf16.msra.mxu0 0
        %555 = vmatpush.bf16.msra.mxu0 0
        %556 = vmatpush.bf16.msra.mxu0 %v498
        %557 = vmatpush.bf16.msra.mxu0 %v497
        %558 = vmatpush.bf16.msra.mxu0 %v496
        %559 = vmatpush.bf16.msra.mxu0 %v495
        %560 = vmatmul.bf16.gmra.mxu0 %v505
        %v561 = vpop.f32.mrf.mxu0
        %v562 = vadd.f32 0.0, %v561
        %v563 = vpop.f32.mrf.mxu0
        %v564 = vadd.f32 0.0, %v563
        %565 = vmatmul.bf16.gmra.mxu0 %v508
        %v566 = vpop.f32.mrf.mxu0
        %v567 = vadd.f32 0.0, %v566
        %v568 = vpop.f32.mrf.mxu0
        %v569 = vadd.f32 0.0, %v568
        %570 = vmatmul.bf16.gmra.mxu0 %v511
        %v571 = vpop.f32.mrf.mxu0
        %v572 = vadd.f32 0.0, %v571
        %v573 = vpop.f32.mrf.mxu0
        %v574 = vadd.f32 0.0, %v573
        %575 = vmatmul.bf16.gmra.mxu0 %v514
        %v576 = vpop.f32.mrf.mxu0
        %v577 = vadd.f32 0.0, %v576
        %v578 = vpop.f32.mrf.mxu0
        %v579 = vadd.f32 0.0, %v578
        %580 = vmatmul.bf16.gmra.mxu0 %v517
        %v581 = vpop.f32.mrf.mxu0
        %v582 = vadd.f32 0.0, %v581
        %v583 = vpop.f32.mrf.mxu0
        %v584 = vadd.f32 0.0, %v583
        %585 = vmatmul.bf16.gmra.mxu0 %v520
        %v586 = vpop.f32.mrf.mxu0
        %v587 = vadd.f32 0.0, %v586
        %v588 = vpop.f32.mrf.mxu0
        %v589 = vadd.f32 0.0, %v588
        %590 = vmatmul.bf16.gmra.mxu0 %v523
        %v591 = vpop.f32.mrf.mxu0
        %v592 = vadd.f32 0.0, %v591
        %v593 = vpop.f32.mrf.mxu0
        %v594 = vadd.f32 0.0, %v593
        %595 = vmatmul.bf16.gmra.mxu0 %v526
        %v596 = vpop.f32.mrf.mxu0
        %v597 = vadd.f32 0.0, %v596
        %v598 = vpop.f32.mrf.mxu0
        %v599 = vadd.f32 0.0, %v598
        %600 = vmatmul.bf16.gmra.mxu0 %v529
        %v601 = vpop.f32.mrf.mxu0
        %v602 = vadd.f32 0.0, %v601
        %v603 = vpop.f32.mrf.mxu0
        %v604 = vadd.f32 0.0, %v603
        %605 = vmatmul.bf16.gmra.mxu0 %v532
        %v606 = vpop.f32.mrf.mxu0
        %v607 = vadd.f32 0.0, %v606
        %v608 = vpop.f32.mrf.mxu0
        %v609 = vadd.f32 0.0, %v608
        %610 = vmatmul.bf16.gmra.mxu0 %v535
        %v611 = vpop.f32.mrf.mxu0
        %v612 = vadd.f32 0.0, %v611
        %v613 = vpop.f32.mrf.mxu0
        %v614 = vadd.f32 0.0, %v613
        %615 = vmatmul.bf16.gmra.mxu0 %v538
        %v616 = vpop.f32.mrf.mxu0
        %v617 = vadd.f32 0.0, %v616
        %v618 = vpop.f32.mrf.mxu0
        %v619 = vadd.f32 0.0, %v618
        %620 = vmatmul.bf16.gmra.mxu0 %v541
        %v621 = vpop.f32.mrf.mxu0
        %v622 = vadd.f32 0.0, %v621
        %v623 = vpop.f32.mrf.mxu0
        %v624 = vadd.f32 0.0, %v623
        %625 = vmatmul.bf16.gmra.mxu0 %v544
        %v626 = vpop.f32.mrf.mxu0
        %v627 = vadd.f32 0.0, %v626
        %v628 = vpop.f32.mrf.mxu0
        %v629 = vadd.f32 0.0, %v628
        %630 = vmatmul.bf16.gmra.mxu0 %v547
        %v631 = vpop.f32.mrf.mxu0
        %v632 = vadd.f32 0.0, %v631
        %v633 = vpop.f32.mrf.mxu0
        %v634 = vadd.f32 0.0, %v633
        %635 = vmatmul.bf16.gmra.mxu0 %v550
        %v636 = vpop.f32.mrf.mxu0
        %v637 = vadd.f32 0.0, %v636
        %v638 = vpop.f32.mrf.mxu0
        %v639 = vadd.f32 0.0, %v638
        %640 = vdwg.mxu0
        %v641 = vld [vmem:[%s2] sm:$0x1]
        %v642 = vperm.slane %v641, 0
        %v643 = vmul.f32 %v562, %v642
        %v644 = vmul.f32 %v564, %v642
        %v645 = vmul.f32 %v567, %v642
        %v646 = vmul.f32 %v569, %v642
        %v647 = vmul.f32 %v572, %v642
        %v648 = vmul.f32 %v574, %v642
        %v649 = vmul.f32 %v577, %v642
        %v650 = vmul.f32 %v579, %v642
        %v651 = vmul.f32 %v582, %v642
        %v652 = vmul.f32 %v584, %v642
        %v653 = vmul.f32 %v587, %v642
        %v654 = vmul.f32 %v589, %v642
        %v655 = vmul.f32 %v592, %v642
        %v656 = vmul.f32 %v594, %v642
        %v657 = vmul.f32 %v597, %v642
        %v658 = vmul.f32 %v599, %v642
        %v659 = vmul.f32 %v602, %v642
        %v660 = vmul.f32 %v604, %v642
        %v661 = vmul.f32 %v607, %v642
        %v662 = vmul.f32 %v609, %v642
        %v663 = vmul.f32 %v612, %v642
        %v664 = vmul.f32 %v614, %v642
        %v665 = vmul.f32 %v617, %v642
        %v666 = vmul.f32 %v619, %v642
        %v667 = vmul.f32 %v622, %v642
        %v668 = vmul.f32 %v624, %v642
        %v669 = vmul.f32 %v627, %v642
        %v670 = vmul.f32 %v629, %v642
        %v671 = vmul.f32 %v632, %v642
        %v672 = vmul.f32 %v634, %v642
        %v673 = vmul.f32 %v637, %v642
        %v674 = vmul.f32 %v639, %v642
        %v675 = vld [vmem:[%s2 + $0x1] sm:$0x1]
        %v676 = vperm.slane %v675, 0
        %v677 = vadd.f32 %v643, %v676
        %v678 = vadd.f32 %v644, %v676
        %v679 = vadd.f32 %v645, %v676
        %v680 = vadd.f32 %v646, %v676
        %v681 = vadd.f32 %v647, %v676
        %v682 = vadd.f32 %v648, %v676
        %v683 = vadd.f32 %v649, %v676
        %v684 = vadd.f32 %v650, %v676
        %v685 = vadd.f32 %v651, %v676
        %v686 = vadd.f32 %v652, %v676
        %v687 = vadd.f32 %v653, %v676
        %v688 = vadd.f32 %v654, %v676
        %v689 = vadd.f32 %v655, %v676
        %v690 = vadd.f32 %v656, %v676
        %v691 = vadd.f32 %v657, %v676
        %v692 = vadd.f32 %v658, %v676
        %v693 = vadd.f32 %v659, %v676
        %v694 = vadd.f32 %v660, %v676
        %v695 = vadd.f32 %v661, %v676
        %v696 = vadd.f32 %v662, %v676
        %v697 = vadd.f32 %v663, %v676
        %v698 = vadd.f32 %v664, %v676
        %v699 = vadd.f32 %v665, %v676
        %v700 = vadd.f32 %v666, %v676
        %v701 = vadd.f32 %v667, %v676
        %v702 = vadd.f32 %v668, %v676
        %v703 = vadd.f32 %v669, %v676
        %v704 = vadd.f32 %v670, %v676
        %v705 = vadd.f32 %v671, %v676
        %v706 = vadd.f32 %v672, %v676
        %v707 = vadd.f32 %v673, %v676
        %v708 = vadd.f32 %v674, %v676
        %v709 = vmax.f32 %v677, 0.0
        %v710 = vmax.f32 %v678, 0.0
        %v711 = vmax.f32 %v679, 0.0
        %v712 = vmax.f32 %v680, 0.0
        %v713 = vmax.f32 %v681, 0.0
        %v714 = vmax.f32 %v682, 0.0
        %v715 = vmax.f32 %v683, 0.0
        %v716 = vmax.f32 %v684, 0.0
        %v717 = vmax.f32 %v685, 0.0
        %v718 = vmax.f32 %v686, 0.0
        %v719 = vmax.f32 %v687, 0.0
        %v720 = vmax.f32 %v688, 0.0
        %v721 = vmax.f32 %v689, 0.0
        %v722 = vmax.f32 %v690, 0.0
        %v723 = vmax.f32 %v691, 0.0
        %v724 = vmax.f32 %v692, 0.0
        %v725 = vmax.f32 %v693, 0.0
        %v726 = vmax.f32 %v694, 0.0
        %v727 = vmax.f32 %v695, 0.0
        %v728 = vmax.f32 %v696, 0.0
        %v729 = vmax.f32 %v697, 0.0
        %v730 = vmax.f32 %v698, 0.0
        %v731 = vmax.f32 %v699, 0.0
        %v732 = vmax.f32 %v700, 0.0
        %v733 = vmax.f32 %v701, 0.0
        %v734 = vmax.f32 %v702, 0.0
        %v735 = vmax.f32 %v703, 0.0
        %v736 = vmax.f32 %v704, 0.0
        %v737 = vmax.f32 %v705, 0.0
        %v738 = vmax.f32 %v706, 0.0
        %v739 = vmax.f32 %v707, 0.0
        %v740 = vmax.f32 %v708, 0.0
        %vm741 = vcmask 257024
        %742 = vst.msk [vmem:[#allocation2] sm:$0xf] %vm741, 0
        %743 = vst.msk [vmem:[#allocation2 + $0x4] sm:$0xf] %vm741, 0
        %vm744 = vcmask 253952
        %745 = vst.msk [vmem:[#allocation2 + $0x8] sm:$0x1] %vm744, 0
        %746 = vst.msk [vmem:[#allocation2 + $0xc] sm:$0xf] %vm741, 0
        %747 = vst.msk [vmem:[#allocation2 + $0x10] sm:$0xf] %vm741, 0
        %748 = vst.msk [vmem:[#allocation2 + $0x14] sm:$0x1] %vm744, 0
        %749 = vst.msk [vmem:[#allocation2 + $0x18] sm:$0xf] %vm741, 0
        %750 = vst.msk [vmem:[#allocation2 + $0x1c] sm:$0xf] %vm741, 0
        %751 = vst.msk [vmem:[#allocation2 + $0x20] sm:$0x1] %vm744, 0
        %752 = vst.msk [vmem:[#allocation2 + $0x24] sm:$0xf] %vm741, 0
        %753 = vst.msk [vmem:[#allocation2 + $0x28] sm:$0xf] %vm741, 0
        %754 = vst.msk [vmem:[#allocation2 + $0x2c] sm:$0x1] %vm744, 0
        %755 = vst.msk [vmem:[#allocation2 + $0x30] sm:$0xf] %vm741, 0
        %756 = vst.msk [vmem:[#allocation2 + $0x34] sm:$0xf] %vm741, 0
        %757 = vst.msk [vmem:[#allocation2 + $0x38] sm:$0x1] %vm744, 0
        %758 = vst.msk [vmem:[#allocation2 + $0x3c] sm:$0xf] %vm741, 0
        %759 = vst.msk [vmem:[#allocation2 + $0x40] sm:$0xf] %vm741, 0
        %760 = vst.msk [vmem:[#allocation2 + $0x44] sm:$0x1] %vm744, 0
        %761 = vst.msk [vmem:[#allocation2 + $0x48] sm:$0xf] %vm741, 0
        %762 = vst.msk [vmem:[#allocation2 + $0x4c] sm:$0xf] %vm741, 0
        %763 = vst.msk [vmem:[#allocation2 + $0x50] sm:$0x1] %vm744, 0
        %764 = vst.msk [vmem:[#allocation2 + $0x54] sm:$0xf] %vm741, 0
        %765 = vst.msk [vmem:[#allocation2 + $0x58] sm:$0xf] %vm741, 0
        %766 = vst.msk [vmem:[#allocation2 + $0x5c] sm:$0x1] %vm744, 0
        %767 = vst.msk [vmem:[#allocation2 + $0x60] sm:$0xf] %vm741, 0
        %768 = vst.msk [vmem:[#allocation2 + $0x64] sm:$0xf] %vm741, 0
        %769 = vst.msk [vmem:[#allocation2 + $0x68] sm:$0x1] %vm744, 0
        %770 = vst.msk [vmem:[#allocation2 + $0x6c] sm:$0xf] %vm741, 0
        %771 = vst.msk [vmem:[#allocation2 + $0x70] sm:$0xf] %vm741, 0
        %772 = vst.msk [vmem:[#allocation2 + $0x74] sm:$0x1] %vm744, 0
        %773 = vst.msk [vmem:[#allocation2 + $0x78] sm:$0xf] %vm741, 0
        %774 = vst.msk [vmem:[#allocation2 + $0x7c] sm:$0xf] %vm741, 0
        %775 = vst.msk [vmem:[#allocation2 + $0x80] sm:$0x1] %vm744, 0
        %776 = vst.msk [vmem:[#allocation2 + $0x84] sm:$0xf] %vm741, 0
        %777 = vst.msk [vmem:[#allocation2 + $0x88] sm:$0xf] %vm741, 0
        %778 = vst.msk [vmem:[#allocation2 + $0x8c] sm:$0x1] %vm744, 0
        %779 = vst.msk [vmem:[#allocation2 + $0x90] sm:$0xf] %vm741, 0
        %780 = vst.msk [vmem:[#allocation2 + $0x94] sm:$0xf] %vm741, 0
        %781 = vst.msk [vmem:[#allocation2 + $0x98] sm:$0x1] %vm744, 0
        %782 = vst.msk [vmem:[#allocation2 + $0x9c] sm:$0xf] %vm741, 0
        %783 = vst.msk [vmem:[#allocation2 + $0xa0] sm:$0xf] %vm741, 0
        %784 = vst.msk [vmem:[#allocation2 + $0xa4] sm:$0x1] %vm744, 0
        %785 = vst.msk [vmem:[#allocation2 + $0xa8] sm:$0xf] %vm741, 0
        %786 = vst.msk [vmem:[#allocation2 + $0xac] sm:$0xf] %vm741, 0
        %787 = vst.msk [vmem:[#allocation2 + $0xb0] sm:$0x1] %vm744, 0
        %788 = vst.msk [vmem:[#allocation2 + $0xb4] sm:$0xf] %vm741, 0
        %789 = vst.msk [vmem:[#allocation2 + $0xb8] sm:$0xf] %vm741, 0
        %790 = vst.msk [vmem:[#allocation2 + $0xbc] sm:$0x1] %vm744, 0
        %791 = vst.msk [vmem:[#allocation2 + $0xc0] sm:$0xf] %vm741, 0
        %792 = vst.msk [vmem:[#allocation2 + $0xc4] sm:$0xf] %vm741, 0
        %793 = vst.msk [vmem:[#allocation2 + $0xc8] sm:$0x1] %vm744, 0
        %794 = vst.msk [vmem:[#allocation2 + $0xcc] sm:$0xf] %vm741, 0
        %795 = vst.msk [vmem:[#allocation2 + $0xd0] sm:$0xf] %vm741, 0
        %796 = vst.msk [vmem:[#allocation2 + $0xd4] sm:$0x1] %vm744, 0
        %v797 = vpack.c.bf16 %v709, %v709
        %v798 = vpack.c.bf16 %v710, %v710
        %v799 = vpack.c.bf16 %v711, %v711
        %v800 = vpack.c.bf16 %v712, %v712
        %v801 = vpack.c.bf16 %v713, %v713
        %v802 = vpack.c.bf16 %v714, %v714
        %v803 = vpack.c.bf16 %v715, %v715
        %v804 = vpack.c.bf16 %v716, %v716
        %v805 = vpack.c.bf16 %v717, %v717
        %v806 = vpack.c.bf16 %v718, %v718
        %v807 = vpack.c.bf16 %v719, %v719
        %v808 = vpack.c.bf16 %v720, %v720
        %v809 = vpack.c.bf16 %v721, %v721
        %v810 = vpack.c.bf16 %v722, %v722
        %v811 = vpack.c.bf16 %v723, %v723
        %v812 = vpack.c.bf16 %v724, %v724
        %v813 = vpack.c.bf16 %v725, %v725
        %v814 = vpack.c.bf16 %v726, %v726
        %v815 = vpack.c.bf16 %v727, %v727
        %v816 = vpack.c.bf16 %v728, %v728
        %v817 = vpack.c.bf16 %v729, %v729
        %v818 = vpack.c.bf16 %v730, %v730
        %v819 = vpack.c.bf16 %v731, %v731
        %v820 = vpack.c.bf16 %v732, %v732
        %v821 = vpack.c.bf16 %v733, %v733
        %v822 = vpack.c.bf16 %v734, %v734
        %v823 = vpack.c.bf16 %v735, %v735
        %v824 = vpack.c.bf16 %v736, %v736
        %v825 = vpack.c.bf16 %v737, %v737
        %v826 = vpack.c.bf16 %v738, %v738
        %v827 = vpack.c.bf16 %v739, %v739
        %v828 = vpack.c.bf16 %v740, %v740
        %vm829 = vsmask.f32 256
        %vm830 = vsmask.f32 4368
        %vm831 = vmor %vm829, %vm830
        %v833 = vshrl.u32 %v797, 16
        %v835 = vrot.slane %v833, 7
        %v836 = vshll.u32 %v797, 16
        %v838 = vor.u32 %v835, %v836
        %v839 = vrot.slane %v835, 4
        %v841 = vshrl.u32 %v798, 16
        %v843 = vrot.slane %v841, 7
        %v844 = vshll.u32 %v798, 16
        %v846 = vor.u32 %v843, %v844
        %v847 = vsel %vm831, %v839, %v846
        %v848 = vrot.slane %v843, 4
        %v850 = vshrl.u32 %v799, 16
        %v852 = vrot.slane %v850, 7
        %v853 = vshll.u32 %v799, 16
        %v855 = vor.u32 %v852, %v853
        %v856 = vrot.slane %v852, 4
        %v858 = vshrl.u32 %v800, 16
        %v860 = vrot.slane %v858, 7
        %v861 = vshll.u32 %v800, 16
        %v863 = vor.u32 %v860, %v861
        %v864 = vsel %vm831, %v856, %v863
        %v865 = vrot.slane %v860, 4
        %v867 = vshrl.u32 %v801, 16
        %v869 = vrot.slane %v867, 7
        %v870 = vshll.u32 %v801, 16
        %v872 = vor.u32 %v869, %v870
        %v873 = vrot.slane %v869, 4
        %v875 = vshrl.u32 %v802, 16
        %v877 = vrot.slane %v875, 7
        %v878 = vshll.u32 %v802, 16
        %v880 = vor.u32 %v877, %v878
        %v881 = vsel %vm831, %v873, %v880
        %v882 = vrot.slane %v877, 4
        %v884 = vshrl.u32 %v803, 16
        %v886 = vrot.slane %v884, 7
        %v887 = vshll.u32 %v803, 16
        %v889 = vor.u32 %v886, %v887
        %v890 = vrot.slane %v886, 4
        %v892 = vshrl.u32 %v804, 16
        %v894 = vrot.slane %v892, 7
        %v895 = vshll.u32 %v804, 16
        %v897 = vor.u32 %v894, %v895
        %v898 = vsel %vm831, %v890, %v897
        %v899 = vrot.slane %v894, 4
        %v901 = vshrl.u32 %v805, 16
        %v903 = vrot.slane %v901, 7
        %v904 = vshll.u32 %v805, 16
        %v906 = vor.u32 %v903, %v904
        %v907 = vrot.slane %v903, 4
        %v909 = vshrl.u32 %v806, 16
        %v911 = vrot.slane %v909, 7
        %v912 = vshll.u32 %v806, 16
        %v914 = vor.u32 %v911, %v912
        %v915 = vsel %vm831, %v907, %v914
        %v916 = vrot.slane %v911, 4
        %v918 = vshrl.u32 %v807, 16
        %v920 = vrot.slane %v918, 7
        %v921 = vshll.u32 %v807, 16
        %v923 = vor.u32 %v920, %v921
        %v924 = vrot.slane %v920, 4
        %v926 = vshrl.u32 %v808, 16
        %v928 = vrot.slane %v926, 7
        %v929 = vshll.u32 %v808, 16
        %v931 = vor.u32 %v928, %v929
        %v932 = vsel %vm831, %v924, %v931
        %v933 = vrot.slane %v928, 4
        %v935 = vshrl.u32 %v809, 16
        %v937 = vrot.slane %v935, 7
        %v938 = vshll.u32 %v809, 16
        %v940 = vor.u32 %v937, %v938
        %v941 = vrot.slane %v937, 4
        %v943 = vshrl.u32 %v810, 16
        %v945 = vrot.slane %v943, 7
        %v946 = vshll.u32 %v810, 16
        %v948 = vor.u32 %v945, %v946
        %v949 = vsel %vm831, %v941, %v948
        %v950 = vrot.slane %v945, 4
        %v952 = vshrl.u32 %v811, 16
        %v954 = vrot.slane %v952, 7
        %v955 = vshll.u32 %v811, 16
        %v957 = vor.u32 %v954, %v955
        %v958 = vrot.slane %v954, 4
        %v960 = vshrl.u32 %v812, 16
        %v962 = vrot.slane %v960, 7
        %v963 = vshll.u32 %v812, 16
        %v965 = vor.u32 %v962, %v963
        %v966 = vsel %vm831, %v958, %v965
        %v967 = vrot.slane %v962, 4
        %v969 = vshrl.u32 %v813, 16
        %v971 = vrot.slane %v969, 7
        %v972 = vshll.u32 %v813, 16
        %v974 = vor.u32 %v971, %v972
        %v975 = vrot.slane %v971, 4
        %v977 = vshrl.u32 %v814, 16
        %v979 = vrot.slane %v977, 7
        %v980 = vshll.u32 %v814, 16
        %v982 = vor.u32 %v979, %v980
        %v983 = vsel %vm831, %v975, %v982
        %v984 = vrot.slane %v979, 4
        %v986 = vshrl.u32 %v815, 16
        %v988 = vrot.slane %v986, 7
        %v989 = vshll.u32 %v815, 16
        %v991 = vor.u32 %v988, %v989
        %v992 = vrot.slane %v988, 4
        %v994 = vshrl.u32 %v816, 16
        %v996 = vrot.slane %v994, 7
        %v997 = vshll.u32 %v816, 16
        %v999 = vor.u32 %v996, %v997
        %v1000 = vsel %vm831, %v992, %v999
        %v1001 = vrot.slane %v996, 4
        %v1003 = vshrl.u32 %v817, 16
        %v1005 = vrot.slane %v1003, 7
        %v1006 = vshll.u32 %v817, 16
        %v1008 = vor.u32 %v1005, %v1006
        %v1009 = vrot.slane %v1005, 4
        %v1011 = vshrl.u32 %v818, 16
        %v1013 = vrot.slane %v1011, 7
        %v1014 = vshll.u32 %v818, 16
        %v1016 = vor.u32 %v1013, %v1014
        %v1017 = vsel %vm831, %v1009, %v1016
        %v1018 = vrot.slane %v1013, 4
        %v1020 = vshrl.u32 %v819, 16
        %v1022 = vrot.slane %v1020, 7
        %v1023 = vshll.u32 %v819, 16
        %v1025 = vor.u32 %v1022, %v1023
        %v1026 = vrot.slane %v1022, 4
        %v1028 = vshrl.u32 %v820, 16
        %v1030 = vrot.slane %v1028, 7
        %v1031 = vshll.u32 %v820, 16
        %v1033 = vor.u32 %v1030, %v1031
        %v1034 = vsel %vm831, %v1026, %v1033
        %v1035 = vrot.slane %v1030, 4
        %v1037 = vshrl.u32 %v821, 16
        %v1039 = vrot.slane %v1037, 7
        %v1040 = vshll.u32 %v821, 16
        %v1042 = vor.u32 %v1039, %v1040
        %v1043 = vrot.slane %v1039, 4
        %v1045 = vshrl.u32 %v822, 16
        %v1047 = vrot.slane %v1045, 7
        %v1048 = vshll.u32 %v822, 16
        %v1050 = vor.u32 %v1047, %v1048
        %v1051 = vsel %vm831, %v1043, %v1050
        %v1052 = vrot.slane %v1047, 4
        %v1054 = vshrl.u32 %v823, 16
        %v1056 = vrot.slane %v1054, 7
        %v1057 = vshll.u32 %v823, 16
        %v1059 = vor.u32 %v1056, %v1057
        %v1060 = vrot.slane %v1056, 4
        %v1062 = vshrl.u32 %v824, 16
        %v1064 = vrot.slane %v1062, 7
        %v1065 = vshll.u32 %v824, 16
        %v1067 = vor.u32 %v1064, %v1065
        %v1068 = vsel %vm831, %v1060, %v1067
        %v1069 = vrot.slane %v1064, 4
        %v1071 = vshrl.u32 %v825, 16
        %v1073 = vrot.slane %v1071, 7
        %v1074 = vshll.u32 %v825, 16
        %v1076 = vor.u32 %v1073, %v1074
        %v1077 = vrot.slane %v1073, 4
        %v1079 = vshrl.u32 %v826, 16
        %v1081 = vrot.slane %v1079, 7
        %v1082 = vshll.u32 %v826, 16
        %v1084 = vor.u32 %v1081, %v1082
        %v1085 = vsel %vm831, %v1077, %v1084
        %v1086 = vrot.slane %v1081, 4
        %v1088 = vshrl.u32 %v827, 16
        %v1090 = vrot.slane %v1088, 7
        %v1091 = vshll.u32 %v827, 16
        %v1093 = vor.u32 %v1090, %v1091
        %v1094 = vrot.slane %v1090, 4
        %v1096 = vshrl.u32 %v828, 16
        %v1098 = vrot.slane %v1096, 7
        %v1099 = vshll.u32 %v828, 16
        %v1101 = vor.u32 %v1098, %v1099
        %v1102 = vsel %vm831, %v1094, %v1101
        %v1103 = vrot.slane %v1098, 4
        %s1152 = scalar_lea.vmem [#allocation2], 12
        %vm1153 = vcmask 257024
        %vm1154 = vsmask.f32 7938
        %vm1155 = vmand %vm1153, %vm1154
        %v1156 = vld [vmem:[%s1152] sm:$0xf]
        %v1157 = vsel %vm1155, %v838, %v1156
        %1158 = vst [vmem:[%s1152] sm:$0xf] %v1157
        %1159 = vst.msk [vmem:[%s1152 + $0x4] sm:$0xf] %vm741, %v847
        %vm1160 = vcmask 253952
        %vm1161 = vmand %vm1160, %vm829
        %v1162 = vld [vmem:[%s1152 + $0x8] sm:$0x1]
        %v1163 = vsel %vm1161, %v848, %v1162
        %1164 = vst [vmem:[%s1152 + $0x8] sm:$0x1] %v1163
        %v1165 = vld [vmem:[%s1152 + $0xc] sm:$0xf]
        %v1166 = vsel %vm1155, %v855, %v1165
        %1167 = vst [vmem:[%s1152 + $0xc] sm:$0xf] %v1166
        %1168 = vst.msk [vmem:[%s1152 + $0x10] sm:$0xf] %vm741, %v864
        %v1169 = vld [vmem:[%s1152 + $0x14] sm:$0x1]
        %v1170 = vsel %vm1161, %v865, %v1169
        %1171 = vst [vmem:[%s1152 + $0x14] sm:$0x1] %v1170
        %v1172 = vld [vmem:[%s1152 + $0x18] sm:$0xf]
        %v1173 = vsel %vm1155, %v872, %v1172
        %1174 = vst [vmem:[%s1152 + $0x18] sm:$0xf] %v1173
        %1175 = vst.msk [vmem:[%s1152 + $0x1c] sm:$0xf] %vm741, %v881
        %v1176 = vld [vmem:[%s1152 + $0x20] sm:$0x1]
        %v1177 = vsel %vm1161, %v882, %v1176
        %1178 = vst [vmem:[%s1152 + $0x20] sm:$0x1] %v1177
        %v1179 = vld [vmem:[%s1152 + $0x24] sm:$0xf]
        %v1180 = vsel %vm1155, %v889, %v1179
        %1181 = vst [vmem:[%s1152 + $0x24] sm:$0xf] %v1180
        %1182 = vst.msk [vmem:[%s1152 + $0x28] sm:$0xf] %vm741, %v898
        %v1183 = vld [vmem:[%s1152 + $0x2c] sm:$0x1]
        %v1184 = vsel %vm1161, %v899, %v1183
        %1185 = vst [vmem:[%s1152 + $0x2c] sm:$0x1] %v1184
        %v1186 = vld [vmem:[%s1152 + $0x30] sm:$0xf]
        %v1187 = vsel %vm1155, %v906, %v1186
        %1188 = vst [vmem:[%s1152 + $0x30] sm:$0xf] %v1187
        %1189 = vst.msk [vmem:[%s1152 + $0x34] sm:$0xf] %vm741, %v915
        %v1190 = vld [vmem:[%s1152 + $0x38] sm:$0x1]
        %v1191 = vsel %vm1161, %v916, %v1190
        %1192 = vst [vmem:[%s1152 + $0x38] sm:$0x1] %v1191
        %v1193 = vld [vmem:[%s1152 + $0x3c] sm:$0xf]
        %v1194 = vsel %vm1155, %v923, %v1193
        %1195 = vst [vmem:[%s1152 + $0x3c] sm:$0xf] %v1194
        %1196 = vst.msk [vmem:[%s1152 + $0x40] sm:$0xf] %vm741, %v932
        %v1197 = vld [vmem:[%s1152 + $0x44] sm:$0x1]
        %v1198 = vsel %vm1161, %v933, %v1197
        %1199 = vst [vmem:[%s1152 + $0x44] sm:$0x1] %v1198
        %v1200 = vld [vmem:[%s1152 + $0x48] sm:$0xf]
        %v1201 = vsel %vm1155, %v940, %v1200
        %1202 = vst [vmem:[%s1152 + $0x48] sm:$0xf] %v1201
        %1203 = vst.msk [vmem:[%s1152 + $0x4c] sm:$0xf] %vm741, %v949
        %v1204 = vld [vmem:[%s1152 + $0x50] sm:$0x1]
        %v1205 = vsel %vm1161, %v950, %v1204
        %1206 = vst [vmem:[%s1152 + $0x50] sm:$0x1] %v1205
        %v1207 = vld [vmem:[%s1152 + $0x54] sm:$0xf]
        %v1208 = vsel %vm1155, %v957, %v1207
        %1209 = vst [vmem:[%s1152 + $0x54] sm:$0xf] %v1208
        %1210 = vst.msk [vmem:[%s1152 + $0x58] sm:$0xf] %vm741, %v966
        %v1211 = vld [vmem:[%s1152 + $0x5c] sm:$0x1]
        %v1212 = vsel %vm1161, %v967, %v1211
        %1213 = vst [vmem:[%s1152 + $0x5c] sm:$0x1] %v1212
        %v1214 = vld [vmem:[%s1152 + $0x60] sm:$0xf]
        %v1215 = vsel %vm1155, %v974, %v1214
        %1216 = vst [vmem:[%s1152 + $0x60] sm:$0xf] %v1215
        %1217 = vst.msk [vmem:[%s1152 + $0x64] sm:$0xf] %vm741, %v983
        %v1218 = vld [vmem:[%s1152 + $0x68] sm:$0x1]
        %v1219 = vsel %vm1161, %v984, %v1218
        %1220 = vst [vmem:[%s1152 + $0x68] sm:$0x1] %v1219
        %v1221 = vld [vmem:[%s1152 + $0x6c] sm:$0xf]
        %v1222 = vsel %vm1155, %v991, %v1221
        %1223 = vst [vmem:[%s1152 + $0x6c] sm:$0xf] %v1222
        %1224 = vst.msk [vmem:[%s1152 + $0x70] sm:$0xf] %vm741, %v1000
        %v1225 = vld [vmem:[%s1152 + $0x74] sm:$0x1]
        %v1226 = vsel %vm1161, %v1001, %v1225
        %1227 = vst [vmem:[%s1152 + $0x74] sm:$0x1] %v1226
        %v1228 = vld [vmem:[%s1152 + $0x78] sm:$0xf]
        %v1229 = vsel %vm1155, %v1008, %v1228
        %1230 = vst [vmem:[%s1152 + $0x78] sm:$0xf] %v1229
        %1231 = vst.msk [vmem:[%s1152 + $0x7c] sm:$0xf] %vm741, %v1017
        %v1232 = vld [vmem:[%s1152 + $0x80] sm:$0x1]
        %v1233 = vsel %vm1161, %v1018, %v1232
        %1234 = vst [vmem:[%s1152 + $0x80] sm:$0x1] %v1233
        %v1235 = vld [vmem:[%s1152 + $0x84] sm:$0xf]
        %v1236 = vsel %vm1155, %v1025, %v1235
        %1237 = vst [vmem:[%s1152 + $0x84] sm:$0xf] %v1236
        %1238 = vst.msk [vmem:[%s1152 + $0x88] sm:$0xf] %vm741, %v1034
        %v1239 = vld [vmem:[%s1152 + $0x8c] sm:$0x1]
        %v1240 = vsel %vm1161, %v1035, %v1239
        %1241 = vst [vmem:[%s1152 + $0x8c] sm:$0x1] %v1240
        %v1242 = vld [vmem:[%s1152 + $0x90] sm:$0xf]
        %v1243 = vsel %vm1155, %v1042, %v1242
        %1244 = vst [vmem:[%s1152 + $0x90] sm:$0xf] %v1243
        %1245 = vst.msk [vmem:[%s1152 + $0x94] sm:$0xf] %vm741, %v1051
        %v1246 = vld [vmem:[%s1152 + $0x98] sm:$0x1]
        %v1247 = vsel %vm1161, %v1052, %v1246
        %1248 = vst [vmem:[%s1152 + $0x98] sm:$0x1] %v1247
        %v1249 = vld [vmem:[%s1152 + $0x9c] sm:$0xf]
        %v1250 = vsel %vm1155, %v1059, %v1249
        %1251 = vst [vmem:[%s1152 + $0x9c] sm:$0xf] %v1250
        %1252 = vst.msk [vmem:[%s1152 + $0xa0] sm:$0xf] %vm741, %v1068
        %v1253 = vld [vmem:[%s1152 + $0xa4] sm:$0x1]
        %v1254 = vsel %vm1161, %v1069, %v1253
        %1255 = vst [vmem:[%s1152 + $0xa4] sm:$0x1] %v1254
        %v1256 = vld [vmem:[%s1152 + $0xa8] sm:$0xf]
        %v1257 = vsel %vm1155, %v1076, %v1256
        %1258 = vst [vmem:[%s1152 + $0xa8] sm:$0xf] %v1257
        %1259 = vst.msk [vmem:[%s1152 + $0xac] sm:$0xf] %vm741, %v1085
        %v1260 = vld [vmem:[%s1152 + $0xb0] sm:$0x1]
        %v1261 = vsel %vm1161, %v1086, %v1260
        %1262 = vst [vmem:[%s1152 + $0xb0] sm:$0x1] %v1261
        %v1263 = vld [vmem:[%s1152 + $0xb4] sm:$0xf]
        %v1264 = vsel %vm1155, %v1093, %v1263
        %1265 = vst [vmem:[%s1152 + $0xb4] sm:$0xf] %v1264
        %1266 = vst.msk [vmem:[%s1152 + $0xb8] sm:$0xf] %vm741, %v1102
        %v1267 = vld [vmem:[%s1152 + $0xbc] sm:$0x1]
        %v1268 = vsel %vm1161, %v1103, %v1267
        %1269 = vst [vmem:[%s1152 + $0xbc] sm:$0x1] %v1268
        %v1270 = vld [vmem:[#allocation2] sm:$0xf]
        %v1271 = vld [vmem:[#allocation2 + $0x4] sm:$0xf]
        %v1272 = vld [vmem:[#allocation2 + $0xc] sm:$0xf]
        %v1273 = vld [vmem:[#allocation2 + $0x10] sm:$0xf]
        %v1274 = vld [vmem:[#allocation2 + $0x18] sm:$0xf]
        %v1275 = vld [vmem:[#allocation2 + $0x1c] sm:$0xf]
        %v1276 = vld [vmem:[#allocation2 + $0x24] sm:$0xf]
        %v1277 = vld [vmem:[#allocation2 + $0x28] sm:$0xf]
        %v1278 = vld [vmem:[#allocation2 + $0x30] sm:$0xf]
        %v1279 = vld [vmem:[#allocation2 + $0x34] sm:$0xf]
        %v1280 = vld [vmem:[#allocation2 + $0x3c] sm:$0xf]
        %v1281 = vld [vmem:[#allocation2 + $0x40] sm:$0xf]
        %v1282 = vld [vmem:[#allocation2 + $0x48] sm:$0xf]
        %v1283 = vld [vmem:[#allocation2 + $0x4c] sm:$0xf]
        %v1284 = vld [vmem:[#allocation2 + $0x54] sm:$0xf]
        %v1285 = vld [vmem:[#allocation2 + $0x58] sm:$0xf]
        %v1286 = vld [vmem:[#allocation2 + $0x60] sm:$0xf]
        %v1287 = vld [vmem:[#allocation2 + $0x64] sm:$0xf]
        %v1288 = vld [vmem:[#allocation2 + $0x6c] sm:$0xf]
        %v1289 = vld [vmem:[#allocation2 + $0x70] sm:$0xf]
        %v1290 = vld [vmem:[#allocation2 + $0x78] sm:$0xf]
        %v1291 = vld [vmem:[#allocation2 + $0x7c] sm:$0xf]
        %v1292 = vld [vmem:[#allocation2 + $0x84] sm:$0xf]
        %v1293 = vld [vmem:[#allocation2 + $0x88] sm:$0xf]
        %v1294 = vld [vmem:[#allocation2 + $0x90] sm:$0xf]
        %v1295 = vld [vmem:[#allocation2 + $0x94] sm:$0xf]
        %v1296 = vld [vmem:[#allocation2 + $0x9c] sm:$0xf]
        %v1297 = vld [vmem:[#allocation2 + $0xa0] sm:$0xf]
        %v1298 = vld [vmem:[#allocation2 + $0xa8] sm:$0xf]
        %v1299 = vld [vmem:[#allocation2 + $0xac] sm:$0xf]
        %v1300 = vld [vmem:[#allocation2 + $0xb4] sm:$0xf]
        %v1301 = vld [vmem:[#allocation2 + $0xb8] sm:$0xf]
        %v1302 = vld [vmem:[%s3] sm:$0xf]
        %v1303 = vld [vmem:[%s3 + $0x4] sm:$0xf]
        %v1304 = vld [vmem:[%s3 + $0x8] sm:$0xf]
        %v1305 = vld [vmem:[%s3 + $0xc] sm:$0xf]
        %v1306 = vld [vmem:[#allocation2 + $0x8] sm:$0x1]
        %v1307 = vld [vmem:[#allocation2 + $0x14] sm:$0x1]
        %v1308 = vld [vmem:[#allocation2 + $0x20] sm:$0x1]
        %v1309 = vld [vmem:[#allocation2 + $0x2c] sm:$0x1]
        %v1310 = vld [vmem:[#allocation2 + $0x38] sm:$0x1]
        %v1311 = vld [vmem:[#allocation2 + $0x44] sm:$0x1]
        %v1312 = vld [vmem:[#allocation2 + $0x50] sm:$0x1]
        %v1313 = vld [vmem:[#allocation2 + $0x5c] sm:$0x1]
        %v1314 = vld [vmem:[#allocation2 + $0x68] sm:$0x1]
        %v1315 = vld [vmem:[#allocation2 + $0x74] sm:$0x1]
        %v1316 = vld [vmem:[#allocation2 + $0x80] sm:$0x1]
        %v1317 = vld [vmem:[#allocation2 + $0x8c] sm:$0x1]
        %v1318 = vld [vmem:[#allocation2 + $0x98] sm:$0x1]
        %v1319 = vld [vmem:[#allocation2 + $0xa4] sm:$0x1]
        %v1320 = vld [vmem:[#allocation2 + $0xb0] sm:$0x1]
        %v1321 = vld [vmem:[#allocation2 + $0xbc] sm:$0x1]
        %vm1322 = vsmask.f32 3328
        %vm1323 = vsmask.f32 7440
        %vm1324 = vmor %vm1322, %vm1323
        %v1326 = vshrl.u32 %v1270, 16
        %v1328 = vrot.slane %v1326, 4
        %v1329 = vshll.u32 %v1270, 16
        %v1331 = vrot.slane %v1329, 5
        %v1332 = vor.u32 %v1328, %v1331
        %v1333 = vrot.slane %v1332, 4
        %v1335 = vshll.u32 %v1271, 16
        %v1337 = vrot.slane %v1335, 5
        %v1338 = vsel %vm1324, %v1333, %v1337
        %v1339 = vshrl.u32 %v1271, 16
        %v1341 = vrot.slane %v1339, 4
        %v1342 = vor.u32 %v1341, %v1337
        %v1343 = vrot.slane %v1342, 4
        %v1345 = vshll.u32 %v1306, 16
        %v1347 = vrot.slane %v1345, 5
        %v1348 = vsel %vm1324, %v1343, %v1347
        %v1350 = vshrl.u32 %v1272, 16
        %v1352 = vrot.slane %v1350, 4
        %v1353 = vshll.u32 %v1272, 16
        %v1355 = vrot.slane %v1353, 5
        %v1356 = vor.u32 %v1352, %v1355
        %v1357 = vrot.slane %v1356, 4
        %v1359 = vshll.u32 %v1273, 16
        %v1361 = vrot.slane %v1359, 5
        %v1362 = vsel %vm1324, %v1357, %v1361
        %v1363 = vshrl.u32 %v1273, 16
        %v1365 = vrot.slane %v1363, 4
        %v1366 = vor.u32 %v1365, %v1361
        %v1367 = vrot.slane %v1366, 4
        %v1369 = vshll.u32 %v1307, 16
        %v1371 = vrot.slane %v1369, 5
        %v1372 = vsel %vm1324, %v1367, %v1371
        %v1374 = vshrl.u32 %v1274, 16
        %v1376 = vrot.slane %v1374, 4
        %v1377 = vshll.u32 %v1274, 16
        %v1379 = vrot.slane %v1377, 5
        %v1380 = vor.u32 %v1376, %v1379
        %v1381 = vrot.slane %v1380, 4
        %v1383 = vshll.u32 %v1275, 16
        %v1385 = vrot.slane %v1383, 5
        %v1386 = vsel %vm1324, %v1381, %v1385
        %v1387 = vshrl.u32 %v1275, 16
        %v1389 = vrot.slane %v1387, 4
        %v1390 = vor.u32 %v1389, %v1385
        %v1391 = vrot.slane %v1390, 4
        %v1393 = vshll.u32 %v1308, 16
        %v1395 = vrot.slane %v1393, 5
        %v1396 = vsel %vm1324, %v1391, %v1395
        %v1398 = vshrl.u32 %v1276, 16
        %v1400 = vrot.slane %v1398, 4
        %v1401 = vshll.u32 %v1276, 16
        %v1403 = vrot.slane %v1401, 5
        %v1404 = vor.u32 %v1400, %v1403
        %v1405 = vrot.slane %v1404, 4
        %v1407 = vshll.u32 %v1277, 16
        %v1409 = vrot.slane %v1407, 5
        %v1410 = vsel %vm1324, %v1405, %v1409
        %v1411 = vshrl.u32 %v1277, 16
        %v1413 = vrot.slane %v1411, 4
        %v1414 = vor.u32 %v1413, %v1409
        %v1415 = vrot.slane %v1414, 4
        %v1417 = vshll.u32 %v1309, 16
        %v1419 = vrot.slane %v1417, 5
        %v1420 = vsel %vm1324, %v1415, %v1419
        %v1422 = vshrl.u32 %v1278, 16
        %v1424 = vrot.slane %v1422, 4
        %v1425 = vshll.u32 %v1278, 16
        %v1427 = vrot.slane %v1425, 5
        %v1428 = vor.u32 %v1424, %v1427
        %v1429 = vrot.slane %v1428, 4
        %v1431 = vshll.u32 %v1279, 16
        %v1433 = vrot.slane %v1431, 5
        %v1434 = vsel %vm1324, %v1429, %v1433
        %v1435 = vshrl.u32 %v1279, 16
        %v1437 = vrot.slane %v1435, 4
        %v1438 = vor.u32 %v1437, %v1433
        %v1439 = vrot.slane %v1438, 4
        %v1441 = vshll.u32 %v1310, 16
        %v1443 = vrot.slane %v1441, 5
        %v1444 = vsel %vm1324, %v1439, %v1443
        %v1446 = vshrl.u32 %v1280, 16
        %v1448 = vrot.slane %v1446, 4
        %v1449 = vshll.u32 %v1280, 16
        %v1451 = vrot.slane %v1449, 5
        %v1452 = vor.u32 %v1448, %v1451
        %v1453 = vrot.slane %v1452, 4
        %v1455 = vshll.u32 %v1281, 16
        %v1457 = vrot.slane %v1455, 5
        %v1458 = vsel %vm1324, %v1453, %v1457
        %v1459 = vshrl.u32 %v1281, 16
        %v1461 = vrot.slane %v1459, 4
        %v1462 = vor.u32 %v1461, %v1457
        %v1463 = vrot.slane %v1462, 4
        %v1465 = vshll.u32 %v1311, 16
        %v1467 = vrot.slane %v1465, 5
        %v1468 = vsel %vm1324, %v1463, %v1467
        %v1470 = vshrl.u32 %v1282, 16
        %v1472 = vrot.slane %v1470, 4
        %v1473 = vshll.u32 %v1282, 16
        %v1475 = vrot.slane %v1473, 5
        %v1476 = vor.u32 %v1472, %v1475
        %v1477 = vrot.slane %v1476, 4
        %v1479 = vshll.u32 %v1283, 16
        %v1481 = vrot.slane %v1479, 5
        %v1482 = vsel %vm1324, %v1477, %v1481
        %v1483 = vshrl.u32 %v1283, 16
        %v1485 = vrot.slane %v1483, 4
        %v1486 = vor.u32 %v1485, %v1481
        %v1487 = vrot.slane %v1486, 4
        %v1489 = vshll.u32 %v1312, 16
        %v1491 = vrot.slane %v1489, 5
        %v1492 = vsel %vm1324, %v1487, %v1491
        %v1494 = vshrl.u32 %v1284, 16
        %v1496 = vrot.slane %v1494, 4
        %v1497 = vshll.u32 %v1284, 16
        %v1499 = vrot.slane %v1497, 5
        %v1500 = vor.u32 %v1496, %v1499
        %v1501 = vrot.slane %v1500, 4
        %v1503 = vshll.u32 %v1285, 16
        %v1505 = vrot.slane %v1503, 5
        %v1506 = vsel %vm1324, %v1501, %v1505
        %v1507 = vshrl.u32 %v1285, 16
        %v1509 = vrot.slane %v1507, 4
        %v1510 = vor.u32 %v1509, %v1505
        %v1511 = vrot.slane %v1510, 4
        %v1513 = vshll.u32 %v1313, 16
        %v1515 = vrot.slane %v1513, 5
        %v1516 = vsel %vm1324, %v1511, %v1515
        %v1518 = vshrl.u32 %v1286, 16
        %v1520 = vrot.slane %v1518, 4
        %v1521 = vshll.u32 %v1286, 16
        %v1523 = vrot.slane %v1521, 5
        %v1524 = vor.u32 %v1520, %v1523
        %v1525 = vrot.slane %v1524, 4
        %v1527 = vshll.u32 %v1287, 16
        %v1529 = vrot.slane %v1527, 5
        %v1530 = vsel %vm1324, %v1525, %v1529
        %v1531 = vshrl.u32 %v1287, 16
        %v1533 = vrot.slane %v1531, 4
        %v1534 = vor.u32 %v1533, %v1529
        %v1535 = vrot.slane %v1534, 4
        %v1537 = vshll.u32 %v1314, 16
        %v1539 = vrot.slane %v1537, 5
        %v1540 = vsel %vm1324, %v1535, %v1539
        %v1542 = vshrl.u32 %v1288, 16
        %v1544 = vrot.slane %v1542, 4
        %v1545 = vshll.u32 %v1288, 16
        %v1547 = vrot.slane %v1545, 5
        %v1548 = vor.u32 %v1544, %v1547
        %v1549 = vrot.slane %v1548, 4
        %v1551 = vshll.u32 %v1289, 16
        %v1553 = vrot.slane %v1551, 5
        %v1554 = vsel %vm1324, %v1549, %v1553
        %v1555 = vshrl.u32 %v1289, 16
        %v1557 = vrot.slane %v1555, 4
        %v1558 = vor.u32 %v1557, %v1553
        %v1559 = vrot.slane %v1558, 4
        %v1561 = vshll.u32 %v1315, 16
        %v1563 = vrot.slane %v1561, 5
        %v1564 = vsel %vm1324, %v1559, %v1563
        %v1566 = vshrl.u32 %v1290, 16
        %v1568 = vrot.slane %v1566, 4
        %v1569 = vshll.u32 %v1290, 16
        %v1571 = vrot.slane %v1569, 5
        %v1572 = vor.u32 %v1568, %v1571
        %v1573 = vrot.slane %v1572, 4
        %v1575 = vshll.u32 %v1291, 16
        %v1577 = vrot.slane %v1575, 5
        %v1578 = vsel %vm1324, %v1573, %v1577
        %v1579 = vshrl.u32 %v1291, 16
        %v1581 = vrot.slane %v1579, 4
        %v1582 = vor.u32 %v1581, %v1577
        %v1583 = vrot.slane %v1582, 4
        %v1585 = vshll.u32 %v1316, 16
        %v1587 = vrot.slane %v1585, 5
        %v1588 = vsel %vm1324, %v1583, %v1587
        %v1590 = vshrl.u32 %v1292, 16
        %v1592 = vrot.slane %v1590, 4
        %v1593 = vshll.u32 %v1292, 16
        %v1595 = vrot.slane %v1593, 5
        %v1596 = vor.u32 %v1592, %v1595
        %v1597 = vrot.slane %v1596, 4
        %v1599 = vshll.u32 %v1293, 16
        %v1601 = vrot.slane %v1599, 5
        %v1602 = vsel %vm1324, %v1597, %v1601
        %v1603 = vshrl.u32 %v1293, 16
        %v1605 = vrot.slane %v1603, 4
        %v1606 = vor.u32 %v1605, %v1601
        %v1607 = vrot.slane %v1606, 4
        %v1609 = vshll.u32 %v1317, 16
        %v1611 = vrot.slane %v1609, 5
        %v1612 = vsel %vm1324, %v1607, %v1611
        %v1614 = vshrl.u32 %v1294, 16
        %v1616 = vrot.slane %v1614, 4
        %v1617 = vshll.u32 %v1294, 16
        %v1619 = vrot.slane %v1617, 5
        %v1620 = vor.u32 %v1616, %v1619
        %v1621 = vrot.slane %v1620, 4
        %v1623 = vshll.u32 %v1295, 16
        %v1625 = vrot.slane %v1623, 5
        %v1626 = vsel %vm1324, %v1621, %v1625
        %v1627 = vshrl.u32 %v1295, 16
        %v1629 = vrot.slane %v1627, 4
        %v1630 = vor.u32 %v1629, %v1625
        %v1631 = vrot.slane %v1630, 4
        %v1633 = vshll.u32 %v1318, 16
        %v1635 = vrot.slane %v1633, 5
        %v1636 = vsel %vm1324, %v1631, %v1635
        %v1638 = vshrl.u32 %v1296, 16
        %v1640 = vrot.slane %v1638, 4
        %v1641 = vshll.u32 %v1296, 16
        %v1643 = vrot.slane %v1641, 5
        %v1644 = vor.u32 %v1640, %v1643
        %v1645 = vrot.slane %v1644, 4
        %v1647 = vshll.u32 %v1297, 16
        %v1649 = vrot.slane %v1647, 5
        %v1650 = vsel %vm1324, %v1645, %v1649
        %v1651 = vshrl.u32 %v1297, 16
        %v1653 = vrot.slane %v1651, 4
        %v1654 = vor.u32 %v1653, %v1649
        %v1655 = vrot.slane %v1654, 4
        %v1657 = vshll.u32 %v1319, 16
        %v1659 = vrot.slane %v1657, 5
        %v1660 = vsel %vm1324, %v1655, %v1659
        %v1662 = vshrl.u32 %v1298, 16
        %v1664 = vrot.slane %v1662, 4
        %v1665 = vshll.u32 %v1298, 16
        %v1667 = vrot.slane %v1665, 5
        %v1668 = vor.u32 %v1664, %v1667
        %v1669 = vrot.slane %v1668, 4
        %v1671 = vshll.u32 %v1299, 16
        %v1673 = vrot.slane %v1671, 5
        %v1674 = vsel %vm1324, %v1669, %v1673
        %v1675 = vshrl.u32 %v1299, 16
        %v1677 = vrot.slane %v1675, 4
        %v1678 = vor.u32 %v1677, %v1673
        %v1679 = vrot.slane %v1678, 4
        %v1681 = vshll.u32 %v1320, 16
        %v1683 = vrot.slane %v1681, 5
        %v1684 = vsel %vm1324, %v1679, %v1683
        %v1686 = vshrl.u32 %v1300, 16
        %v1688 = vrot.slane %v1686, 4
        %v1689 = vshll.u32 %v1300, 16
        %v1691 = vrot.slane %v1689, 5
        %v1692 = vor.u32 %v1688, %v1691
        %v1693 = vrot.slane %v1692, 4
        %v1695 = vshll.u32 %v1301, 16
        %v1697 = vrot.slane %v1695, 5
        %v1698 = vsel %vm1324, %v1693, %v1697
        %v1699 = vshrl.u32 %v1301, 16
        %v1701 = vrot.slane %v1699, 4
        %v1702 = vor.u32 %v1701, %v1697
        %v1703 = vrot.slane %v1702, 4
        %v1705 = vshll.u32 %v1321, 16
        %v1707 = vrot.slane %v1705, 5
        %v1708 = vsel %vm1324, %v1703, %v1707
        %s1709 = scalar_lea.vmem %s3, 16
        %v1710 = vld [vmem:[%s1709] sm:$0xf]
        %v1711 = vld [vmem:[%s1709 + $0x4] sm:$0xf]
        %v1712 = vld [vmem:[%s1709 + $0x8] sm:$0xf]
        %v1713 = vld [vmem:[%s1709 + $0xc] sm:$0xf]
        %v1714 = vunpack.c.l.b16 %v1338
        %v1715 = vunpack.c.l.b16 %v1348
        %v1716 = vunpack.c.l.b16 %v1362
        %v1717 = vunpack.c.l.b16 %v1372
        %v1718 = vunpack.c.l.b16 %v1386
        %v1719 = vunpack.c.l.b16 %v1396
        %v1720 = vunpack.c.l.b16 %v1410
        %v1721 = vunpack.c.l.b16 %v1420
        %v1722 = vunpack.c.l.b16 %v1434
        %v1723 = vunpack.c.l.b16 %v1444
        %v1724 = vunpack.c.l.b16 %v1458
        %v1725 = vunpack.c.l.b16 %v1468
        %v1726 = vunpack.c.l.b16 %v1482
        %v1727 = vunpack.c.l.b16 %v1492
        %v1728 = vunpack.c.l.b16 %v1506
        %v1729 = vunpack.c.l.b16 %v1516
        %v1730 = vunpack.c.l.b16 %v1530
        %v1731 = vunpack.c.l.b16 %v1540
        %v1732 = vunpack.c.l.b16 %v1554
        %v1733 = vunpack.c.l.b16 %v1564
        %v1734 = vunpack.c.l.b16 %v1578
        %v1735 = vunpack.c.l.b16 %v1588
        %v1736 = vunpack.c.l.b16 %v1602
        %v1737 = vunpack.c.l.b16 %v1612
        %v1738 = vunpack.c.l.b16 %v1626
        %v1739 = vunpack.c.l.b16 %v1636
        %v1740 = vunpack.c.l.b16 %v1650
        %v1741 = vunpack.c.l.b16 %v1660
        %v1742 = vunpack.c.l.b16 %v1674
        %v1743 = vunpack.c.l.b16 %v1684
        %v1744 = vunpack.c.l.b16 %v1698
        %v1745 = vunpack.c.l.b16 %v1708
        %v1746 = vpack.c.b16 %v1715, %v1714
        %v1747 = vpack.c.b16 %v1717, %v1716
        %v1748 = vpack.c.b16 %v1719, %v1718
        %v1749 = vpack.c.b16 %v1721, %v1720
        %v1750 = vpack.c.b16 %v1723, %v1722
        %v1751 = vpack.c.b16 %v1725, %v1724
        %v1752 = vpack.c.b16 %v1727, %v1726
        %v1753 = vpack.c.b16 %v1729, %v1728
        %v1754 = vpack.c.b16 %v1731, %v1730
        %v1755 = vpack.c.b16 %v1733, %v1732
        %v1756 = vpack.c.b16 %v1735, %v1734
        %v1757 = vpack.c.b16 %v1737, %v1736
        %v1758 = vpack.c.b16 %v1739, %v1738
        %v1759 = vpack.c.b16 %v1741, %v1740
        %v1760 = vpack.c.b16 %v1743, %v1742
        %v1761 = vpack.c.b16 %v1745, %v1744
        %v1766 = vunpack.c.l.b16 %v1710
        %v1767 = vunpack.c.l.b16 %v1711
        %v1768 = vunpack.c.l.b16 %v1712
        %v1769 = vunpack.c.l.b16 %v1713
        %v1770 = vpack.c.b16 %v1767, %v1766
        %v1771 = vpack.c.b16 %v1769, %v1768
        %vm1774 = vcmask 261120
        %v1776 = vsel %vm1774, %v1746, 0
        %v1779 = vsel %vm1774, %v1747, 0
        %v1782 = vsel %vm1774, %v1748, 0
        %v1785 = vsel %vm1774, %v1749, 0
        %v1788 = vsel %vm1774, %v1750, 0
        %v1791 = vsel %vm1774, %v1751, 0
        %v1794 = vsel %vm1774, %v1752, 0
        %v1797 = vsel %vm1774, %v1753, 0
        %v1800 = vsel %vm1774, %v1754, 0
        %v1803 = vsel %vm1774, %v1755, 0
        %v1806 = vsel %vm1774, %v1756, 0
        %v1809 = vsel %vm1774, %v1757, 0
        %v1812 = vsel %vm1774, %v1758, 0
        %v1815 = vsel %vm1774, %v1759, 0
        %v1818 = vsel %vm1774, %v1760, 0
        %v1821 = vsel %vm1774, %v1761, 0
        %1823 = vmatpush.bf16.msra.mxu0 0
        %1824 = vmatpush.bf16.msra.mxu0 0
        %1825 = vmatpush.bf16.msra.mxu0 0
        %1826 = vmatpush.bf16.msra.mxu0 0
        %1827 = vmatpush.bf16.msra.mxu0 0
        %1828 = vmatpush.bf16.msra.mxu0 0
        %1829 = vmatpush.bf16.msra.mxu0 %v1771
        %1830 = vmatpush.bf16.msra.mxu0 %v1770
        %1831 = vmatmul.bf16.gmra.mxu0 %v1776
        %v1832 = vpop.f32.mrf.mxu0
        %v1833 = vadd.f32 0.0, %v1832
        %v1834 = vpop.f32.mrf.mxu0
        %v1835 = vadd.f32 0.0, %v1834
        %1836 = vmatmul.bf16.gmra.mxu0 %v1779
        %v1837 = vpop.f32.mrf.mxu0
        %v1838 = vadd.f32 0.0, %v1837
        %v1839 = vpop.f32.mrf.mxu0
        %v1840 = vadd.f32 0.0, %v1839
        %1841 = vmatmul.bf16.gmra.mxu0 %v1782
        %v1842 = vpop.f32.mrf.mxu0
        %v1843 = vadd.f32 0.0, %v1842
        %v1844 = vpop.f32.mrf.mxu0
        %v1845 = vadd.f32 0.0, %v1844
        %1846 = vmatmul.bf16.gmra.mxu0 %v1785
        %v1847 = vpop.f32.mrf.mxu0
        %v1848 = vadd.f32 0.0, %v1847
        %v1849 = vpop.f32.mrf.mxu0
        %v1850 = vadd.f32 0.0, %v1849
        %1851 = vmatmul.bf16.gmra.mxu0 %v1788
        %v1852 = vpop.f32.mrf.mxu0
        %v1853 = vadd.f32 0.0, %v1852
        %v1854 = vpop.f32.mrf.mxu0
        %v1855 = vadd.f32 0.0, %v1854
        %1856 = vmatmul.bf16.gmra.mxu0 %v1791
        %v1857 = vpop.f32.mrf.mxu0
        %v1858 = vadd.f32 0.0, %v1857
        %v1859 = vpop.f32.mrf.mxu0
        %v1860 = vadd.f32 0.0, %v1859
        %1861 = vmatmul.bf16.gmra.mxu0 %v1794
        %v1862 = vpop.f32.mrf.mxu0
        %v1863 = vadd.f32 0.0, %v1862
        %v1864 = vpop.f32.mrf.mxu0
        %v1865 = vadd.f32 0.0, %v1864
        %1866 = vmatmul.bf16.gmra.mxu0 %v1797
        %v1867 = vpop.f32.mrf.mxu0
        %v1868 = vadd.f32 0.0, %v1867
        %v1869 = vpop.f32.mrf.mxu0
        %v1870 = vadd.f32 0.0, %v1869
        %1871 = vmatmul.bf16.gmra.mxu0 %v1800
        %v1872 = vpop.f32.mrf.mxu0
        %v1873 = vadd.f32 0.0, %v1872
        %v1874 = vpop.f32.mrf.mxu0
        %v1875 = vadd.f32 0.0, %v1874
        %1876 = vmatmul.bf16.gmra.mxu0 %v1803
        %v1877 = vpop.f32.mrf.mxu0
        %v1878 = vadd.f32 0.0, %v1877
        %v1879 = vpop.f32.mrf.mxu0
        %v1880 = vadd.f32 0.0, %v1879
        %1881 = vmatmul.bf16.gmra.mxu0 %v1806
        %v1882 = vpop.f32.mrf.mxu0
        %v1883 = vadd.f32 0.0, %v1882
        %v1884 = vpop.f32.mrf.mxu0
        %v1885 = vadd.f32 0.0, %v1884
        %1886 = vmatmul.bf16.gmra.mxu0 %v1809
        %v1887 = vpop.f32.mrf.mxu0
        %v1888 = vadd.f32 0.0, %v1887
        %v1889 = vpop.f32.mrf.mxu0
        %v1890 = vadd.f32 0.0, %v1889
        %1891 = vmatmul.bf16.gmra.mxu0 %v1812
        %v1892 = vpop.f32.mrf.mxu0
        %v1893 = vadd.f32 0.0, %v1892
        %v1894 = vpop.f32.mrf.mxu0
        %v1895 = vadd.f32 0.0, %v1894
        %1896 = vmatmul.bf16.gmra.mxu0 %v1815
        %v1897 = vpop.f32.mrf.mxu0
        %v1898 = vadd.f32 0.0, %v1897
        %v1899 = vpop.f32.mrf.mxu0
        %v1900 = vadd.f32 0.0, %v1899
        %1901 = vmatmul.bf16.gmra.mxu0 %v1818
        %v1902 = vpop.f32.mrf.mxu0
        %v1903 = vadd.f32 0.0, %v1902
        %v1904 = vpop.f32.mrf.mxu0
        %v1905 = vadd.f32 0.0, %v1904
        %1906 = vmatmul.bf16.gmra.mxu0 %v1821
        %v1907 = vpop.f32.mrf.mxu0
        %v1908 = vadd.f32 0.0, %v1907
        %v1909 = vpop.f32.mrf.mxu0
        %v1910 = vadd.f32 0.0, %v1909
        %1911 = vdwg.mxu0
        %v1944 = vunpack.c.l.b16 %v1270
        %v1945 = vunpack.c.l.b16 %v1271
        %v1946 = vunpack.c.l.b16 %v1272
        %v1947 = vunpack.c.l.b16 %v1273
        %v1948 = vunpack.c.l.b16 %v1274
        %v1949 = vunpack.c.l.b16 %v1275
        %v1950 = vunpack.c.l.b16 %v1276
        %v1951 = vunpack.c.l.b16 %v1277
        %v1952 = vunpack.c.l.b16 %v1278
        %v1953 = vunpack.c.l.b16 %v1279
        %v1954 = vunpack.c.l.b16 %v1280
        %v1955 = vunpack.c.l.b16 %v1281
        %v1956 = vunpack.c.l.b16 %v1282
        %v1957 = vunpack.c.l.b16 %v1283
        %v1958 = vunpack.c.l.b16 %v1284
        %v1959 = vunpack.c.l.b16 %v1285
        %v1960 = vunpack.c.l.b16 %v1286
        %v1961 = vunpack.c.l.b16 %v1287
        %v1962 = vunpack.c.l.b16 %v1288
        %v1963 = vunpack.c.l.b16 %v1289
        %v1964 = vunpack.c.l.b16 %v1290
        %v1965 = vunpack.c.l.b16 %v1291
        %v1966 = vunpack.c.l.b16 %v1292
        %v1967 = vunpack.c.l.b16 %v1293
        %v1968 = vunpack.c.l.b16 %v1294
        %v1969 = vunpack.c.l.b16 %v1295
        %v1970 = vunpack.c.l.b16 %v1296
        %v1971 = vunpack.c.l.b16 %v1297
        %v1972 = vunpack.c.l.b16 %v1298
        %v1973 = vunpack.c.l.b16 %v1299
        %v1974 = vunpack.c.l.b16 %v1300
        %v1975 = vunpack.c.l.b16 %v1301
        %v1976 = vpack.c.b16 %v1945, %v1944
        %v1977 = vpack.c.b16 %v1947, %v1946
        %v1978 = vpack.c.b16 %v1949, %v1948
        %v1979 = vpack.c.b16 %v1951, %v1950
        %v1980 = vpack.c.b16 %v1953, %v1952
        %v1981 = vpack.c.b16 %v1955, %v1954
        %v1982 = vpack.c.b16 %v1957, %v1956
        %v1983 = vpack.c.b16 %v1959, %v1958
        %v1984 = vpack.c.b16 %v1961, %v1960
        %v1985 = vpack.c.b16 %v1963, %v1962
        %v1986 = vpack.c.b16 %v1965, %v1964
        %v1987 = vpack.c.b16 %v1967, %v1966
        %v1988 = vpack.c.b16 %v1969, %v1968
        %v1989 = vpack.c.b16 %v1971, %v1970
        %v1990 = vpack.c.b16 %v1973, %v1972
        %v1991 = vpack.c.b16 %v1975, %v1974
        %v1996 = vunpack.c.l.b16 %v1302
        %v1997 = vunpack.c.l.b16 %v1303
        %v1998 = vunpack.c.l.b16 %v1304
        %v1999 = vunpack.c.l.b16 %v1305
        %v2000 = vpack.c.b16 %v1997, %v1996
        %v2001 = vpack.c.b16 %v1999, %v1998
        %v2005 = vsel %vm1774, %v1976, 0
        %v2008 = vsel %vm1774, %v1977, 0
        %v2011 = vsel %vm1774, %v1978, 0
        %v2014 = vsel %vm1774, %v1979, 0
        %v2017 = vsel %vm1774, %v1980, 0
        %v2020 = vsel %vm1774, %v1981, 0
        %v2023 = vsel %vm1774, %v1982, 0
        %v2026 = vsel %vm1774, %v1983, 0
        %v2029 = vsel %vm1774, %v1984, 0
        %v2032 = vsel %vm1774, %v1985, 0
        %v2035 = vsel %vm1774, %v1986, 0
        %v2038 = vsel %vm1774, %v1987, 0
        %v2041 = vsel %vm1774, %v1988, 0
        %v2044 = vsel %vm1774, %v1989, 0
        %v2047 = vsel %vm1774, %v1990, 0
        %v2050 = vsel %vm1774, %v1991, 0
        %2052 = vmatpush.bf16.msra.mxu0 0
        %2053 = vmatpush.bf16.msra.mxu0 0
        %2054 = vmatpush.bf16.msra.mxu0 0
        %2055 = vmatpush.bf16.msra.mxu0 0
        %2056 = vmatpush.bf16.msra.mxu0 0
        %2057 = vmatpush.bf16.msra.mxu0 0
        %2058 = vmatpush.bf16.msra.mxu0 %v2001
        %2059 = vmatpush.bf16.msra.mxu0 %v2000
        %2060 = vmatmul.bf16.gmra.mxu0 %v2005
        %v2061 = vpop.f32.mrf.mxu0
        %v2062 = vadd.f32 %v1833, %v2061
        %v2063 = vpop.f32.mrf.mxu0
        %v2064 = vadd.f32 %v1835, %v2063
        %2065 = vmatmul.bf16.gmra.mxu0 %v2008
        %v2066 = vpop.f32.mrf.mxu0
        %v2067 = vadd.f32 %v1838, %v2066
        %v2068 = vpop.f32.mrf.mxu0
        %v2069 = vadd.f32 %v1840, %v2068
        %2070 = vmatmul.bf16.gmra.mxu0 %v2011
        %v2071 = vpop.f32.mrf.mxu0
        %v2072 = vadd.f32 %v1843, %v2071
        %v2073 = vpop.f32.mrf.mxu0
        %v2074 = vadd.f32 %v1845, %v2073
        %2075 = vmatmul.bf16.gmra.mxu0 %v2014
        %v2076 = vpop.f32.mrf.mxu0
        %v2077 = vadd.f32 %v1848, %v2076
        %v2078 = vpop.f32.mrf.mxu0
        %v2079 = vadd.f32 %v1850, %v2078
        %2080 = vmatmul.bf16.gmra.mxu0 %v2017
        %v2081 = vpop.f32.mrf.mxu0
        %v2082 = vadd.f32 %v1853, %v2081
        %v2083 = vpop.f32.mrf.mxu0
        %v2084 = vadd.f32 %v1855, %v2083
        %2085 = vmatmul.bf16.gmra.mxu0 %v2020
        %v2086 = vpop.f32.mrf.mxu0
        %v2087 = vadd.f32 %v1858, %v2086
        %v2088 = vpop.f32.mrf.mxu0
        %v2089 = vadd.f32 %v1860, %v2088
        %2090 = vmatmul.bf16.gmra.mxu0 %v2023
        %v2091 = vpop.f32.mrf.mxu0
        %v2092 = vadd.f32 %v1863, %v2091
        %v2093 = vpop.f32.mrf.mxu0
        %v2094 = vadd.f32 %v1865, %v2093
        %2095 = vmatmul.bf16.gmra.mxu0 %v2026
        %v2096 = vpop.f32.mrf.mxu0
        %v2097 = vadd.f32 %v1868, %v2096
        %v2098 = vpop.f32.mrf.mxu0
        %v2099 = vadd.f32 %v1870, %v2098
        %2100 = vmatmul.bf16.gmra.mxu0 %v2029
        %v2101 = vpop.f32.mrf.mxu0
        %v2102 = vadd.f32 %v1873, %v2101
        %v2103 = vpop.f32.mrf.mxu0
        %v2104 = vadd.f32 %v1875, %v2103
        %2105 = vmatmul.bf16.gmra.mxu0 %v2032
        %v2106 = vpop.f32.mrf.mxu0
        %v2107 = vadd.f32 %v1878, %v2106
        %v2108 = vpop.f32.mrf.mxu0
        %v2109 = vadd.f32 %v1880, %v2108
        %2110 = vmatmul.bf16.gmra.mxu0 %v2035
        %v2111 = vpop.f32.mrf.mxu0
        %v2112 = vadd.f32 %v1883, %v2111
        %v2113 = vpop.f32.mrf.mxu0
        %v2114 = vadd.f32 %v1885, %v2113
        %2115 = vmatmul.bf16.gmra.mxu0 %v2038
        %v2116 = vpop.f32.mrf.mxu0
        %v2117 = vadd.f32 %v1888, %v2116
        %v2118 = vpop.f32.mrf.mxu0
        %v2119 = vadd.f32 %v1890, %v2118
        %2120 = vmatmul.bf16.gmra.mxu0 %v2041
        %v2121 = vpop.f32.mrf.mxu0
        %v2122 = vadd.f32 %v1893, %v2121
        %v2123 = vpop.f32.mrf.mxu0
        %v2124 = vadd.f32 %v1895, %v2123
        %2125 = vmatmul.bf16.gmra.mxu0 %v2044
        %v2126 = vpop.f32.mrf.mxu0
        %v2127 = vadd.f32 %v1898, %v2126
        %v2128 = vpop.f32.mrf.mxu0
        %v2129 = vadd.f32 %v1900, %v2128
        %2130 = vmatmul.bf16.gmra.mxu0 %v2047
        %v2131 = vpop.f32.mrf.mxu0
        %v2132 = vadd.f32 %v1903, %v2131
        %v2133 = vpop.f32.mrf.mxu0
        %v2134 = vadd.f32 %v1905, %v2133
        %2135 = vmatmul.bf16.gmra.mxu0 %v2050
        %v2136 = vpop.f32.mrf.mxu0
        %v2137 = vadd.f32 %v1908, %v2136
        %v2138 = vpop.f32.mrf.mxu0
        %v2139 = vadd.f32 %v1910, %v2138
        %2140 = vdwg.mxu0
        %v2141 = vld [vmem:[#allocation2] sm:$0xe]
        %v2142 = vld [vmem:[#allocation2 + $0xc] sm:$0xe]
        %v2143 = vld [vmem:[#allocation2 + $0x18] sm:$0xe]
        %v2144 = vld [vmem:[#allocation2 + $0x24] sm:$0xe]
        %v2145 = vld [vmem:[#allocation2 + $0x30] sm:$0xe]
        %v2146 = vld [vmem:[#allocation2 + $0x3c] sm:$0xe]
        %v2147 = vld [vmem:[#allocation2 + $0x48] sm:$0xe]
        %v2148 = vld [vmem:[#allocation2 + $0x54] sm:$0xe]
        %v2149 = vld [vmem:[#allocation2 + $0x60] sm:$0xe]
        %v2150 = vld [vmem:[#allocation2 + $0x6c] sm:$0xe]
        %v2151 = vld [vmem:[#allocation2 + $0x78] sm:$0xe]
        %v2152 = vld [vmem:[#allocation2 + $0x84] sm:$0xe]
        %v2153 = vld [vmem:[#allocation2 + $0x90] sm:$0xe]
        %v2154 = vld [vmem:[#allocation2 + $0x9c] sm:$0xe]
        %v2155 = vld [vmem:[#allocation2 + $0xa8] sm:$0xe]
        %v2156 = vld [vmem:[#allocation2 + $0xb4] sm:$0xe]
        %vm2189 = vcmask 1042432
        %vm2190 = vcmask 1046532
        %vm2191 = vmor %vm2189, %vm2190
        %v2192 = vrot.slane %v2141, 5
        %v2193 = vrot.slane %v2192, 4
        %v2194 = vrot.slane %v1271, 5
        %v2195 = vsel %vm2191, %v2193, %v2194
        %v2196 = vrot.slane %v2194, 4
        %v2197 = vrot.slane %v1306, 5
        %v2198 = vsel %vm2191, %v2196, %v2197
        %v2199 = vrot.slane %v2142, 5
        %v2200 = vrot.slane %v2199, 4
        %v2201 = vrot.slane %v1273, 5
        %v2202 = vsel %vm2191, %v2200, %v2201
        %v2203 = vrot.slane %v2201, 4
        %v2204 = vrot.slane %v1307, 5
        %v2205 = vsel %vm2191, %v2203, %v2204
        %v2206 = vrot.slane %v2143, 5
        %v2207 = vrot.slane %v2206, 4
        %v2208 = vrot.slane %v1275, 5
        %v2209 = vsel %vm2191, %v2207, %v2208
        %v2210 = vrot.slane %v2208, 4
        %v2211 = vrot.slane %v1308, 5
        %v2212 = vsel %vm2191, %v2210, %v2211
        %v2213 = vrot.slane %v2144, 5
        %v2214 = vrot.slane %v2213, 4
        %v2215 = vrot.slane %v1277, 5
        %v2216 = vsel %vm2191, %v2214, %v2215
        %v2217 = vrot.slane %v2215, 4
        %v2218 = vrot.slane %v1309, 5
        %v2219 = vsel %vm2191, %v2217, %v2218
        %v2220 = vrot.slane %v2145, 5
        %v2221 = vrot.slane %v2220, 4
        %v2222 = vrot.slane %v1279, 5
        %v2223 = vsel %vm2191, %v2221, %v2222
        %v2224 = vrot.slane %v2222, 4
        %v2225 = vrot.slane %v1310, 5
        %v2226 = vsel %vm2191, %v2224, %v2225
        %v2227 = vrot.slane %v2146, 5
        %v2228 = vrot.slane %v2227, 4
        %v2229 = vrot.slane %v1281, 5
        %v2230 = vsel %vm2191, %v2228, %v2229
        %v2231 = vrot.slane %v2229, 4
        %v2232 = vrot.slane %v1311, 5
        %v2233 = vsel %vm2191, %v2231, %v2232
        %v2234 = vrot.slane %v2147, 5
        %v2235 = vrot.slane %v2234, 4
        %v2236 = vrot.slane %v1283, 5
        %v2237 = vsel %vm2191, %v2235, %v2236
        %v2238 = vrot.slane %v2236, 4
        %v2239 = vrot.slane %v1312, 5
        %v2240 = vsel %vm2191, %v2238, %v2239
        %v2241 = vrot.slane %v2148, 5
        %v2242 = vrot.slane %v2241, 4
        %v2243 = vrot.slane %v1285, 5
        %v2244 = vsel %vm2191, %v2242, %v2243
        %v2245 = vrot.slane %v2243, 4
        %v2246 = vrot.slane %v1313, 5
        %v2247 = vsel %vm2191, %v2245, %v2246
        %v2248 = vrot.slane %v2149, 5
        %v2249 = vrot.slane %v2248, 4
        %v2250 = vrot.slane %v1287, 5
        %v2251 = vsel %vm2191, %v2249, %v2250
        %v2252 = vrot.slane %v2250, 4
        %v2253 = vrot.slane %v1314, 5
        %v2254 = vsel %vm2191, %v2252, %v2253
        %v2255 = vrot.slane %v2150, 5
        %v2256 = vrot.slane %v2255, 4
        %v2257 = vrot.slane %v1289, 5
        %v2258 = vsel %vm2191, %v2256, %v2257
        %v2259 = vrot.slane %v2257, 4
        %v2260 = vrot.slane %v1315, 5
        %v2261 = vsel %vm2191, %v2259, %v2260
        %v2262 = vrot.slane %v2151, 5
        %v2263 = vrot.slane %v2262, 4
        %v2264 = vrot.slane %v1291, 5
        %v2265 = vsel %vm2191, %v2263, %v2264
        %v2266 = vrot.slane %v2264, 4
        %v2267 = vrot.slane %v1316, 5
        %v2268 = vsel %vm2191, %v2266, %v2267
        %v2269 = vrot.slane %v2152, 5
        %v2270 = vrot.slane %v2269, 4
        %v2271 = vrot.slane %v1293, 5
        %v2272 = vsel %vm2191, %v2270, %v2271
        %v2273 = vrot.slane %v2271, 4
        %v2274 = vrot.slane %v1317, 5
        %v2275 = vsel %vm2191, %v2273, %v2274
        %v2276 = vrot.slane %v2153, 5
        %v2277 = vrot.slane %v2276, 4
        %v2278 = vrot.slane %v1295, 5
        %v2279 = vsel %vm2191, %v2277, %v2278
        %v2280 = vrot.slane %v2278, 4
        %v2281 = vrot.slane %v1318, 5
        %v2282 = vsel %vm2191, %v2280, %v2281
        %v2283 = vrot.slane %v2154, 5
        %v2284 = vrot.slane %v2283, 4
        %v2285 = vrot.slane %v1297, 5
        %v2286 = vsel %vm2191, %v2284, %v2285
        %v2287 = vrot.slane %v2285, 4
        %v2288 = vrot.slane %v1319, 5
        %v2289 = vsel %vm2191, %v2287, %v2288
        %v2290 = vrot.slane %v2155, 5
        %v2291 = vrot.slane %v2290, 4
        %v2292 = vrot.slane %v1299, 5
        %v2293 = vsel %vm2191, %v2291, %v2292
        %v2294 = vrot.slane %v2292, 4
        %v2295 = vrot.slane %v1320, 5
        %v2296 = vsel %vm2191, %v2294, %v2295
        %v2297 = vrot.slane %v2156, 5
        %v2298 = vrot.slane %v2297, 4
        %v2299 = vrot.slane %v1301, 5
        %v2300 = vsel %vm2191, %v2298, %v2299
        %v2301 = vrot.slane %v2299, 4
        %v2302 = vrot.slane %v1321, 5
        %v2303 = vsel %vm2191, %v2301, %v2302
        %s2304 = scalar_lea.vmem %s3, 32
        %v2305 = vld [vmem:[%s2304] sm:$0xf]
        %v2306 = vld [vmem:[%s2304 + $0x4] sm:$0xf]
        %v2307 = vld [vmem:[%s2304 + $0x8] sm:$0xf]
        %v2308 = vld [vmem:[%s2304 + $0xc] sm:$0xf]
        %v2309 = vunpack.c.l.b16 %v2195
        %v2310 = vunpack.c.l.b16 %v2198
        %v2311 = vunpack.c.l.b16 %v2202
        %v2312 = vunpack.c.l.b16 %v2205
        %v2313 = vunpack.c.l.b16 %v2209
        %v2314 = vunpack.c.l.b16 %v2212
        %v2315 = vunpack.c.l.b16 %v2216
        %v2316 = vunpack.c.l.b16 %v2219
        %v2317 = vunpack.c.l.b16 %v2223
        %v2318 = vunpack.c.l.b16 %v2226
        %v2319 = vunpack.c.l.b16 %v2230
        %v2320 = vunpack.c.l.b16 %v2233
        %v2321 = vunpack.c.l.b16 %v2237
        %v2322 = vunpack.c.l.b16 %v2240
        %v2323 = vunpack.c.l.b16 %v2244
        %v2324 = vunpack.c.l.b16 %v2247
        %v2325 = vunpack.c.l.b16 %v2251
        %v2326 = vunpack.c.l.b16 %v2254
        %v2327 = vunpack.c.l.b16 %v2258
        %v2328 = vunpack.c.l.b16 %v2261
        %v2329 = vunpack.c.l.b16 %v2265
        %v2330 = vunpack.c.l.b16 %v2268
        %v2331 = vunpack.c.l.b16 %v2272
        %v2332 = vunpack.c.l.b16 %v2275
        %v2333 = vunpack.c.l.b16 %v2279
        %v2334 = vunpack.c.l.b16 %v2282
        %v2335 = vunpack.c.l.b16 %v2286
        %v2336 = vunpack.c.l.b16 %v2289
        %v2337 = vunpack.c.l.b16 %v2293
        %v2338 = vunpack.c.l.b16 %v2296
        %v2339 = vunpack.c.l.b16 %v2300
        %v2340 = vunpack.c.l.b16 %v2303
        %v2341 = vpack.c.b16 %v2310, %v2309
        %v2342 = vpack.c.b16 %v2312, %v2311
        %v2343 = vpack.c.b16 %v2314, %v2313
        %v2344 = vpack.c.b16 %v2316, %v2315
        %v2345 = vpack.c.b16 %v2318, %v2317
        %v2346 = vpack.c.b16 %v2320, %v2319
        %v2347 = vpack.c.b16 %v2322, %v2321
        %v2348 = vpack.c.b16 %v2324, %v2323
        %v2349 = vpack.c.b16 %v2326, %v2325
        %v2350 = vpack.c.b16 %v2328, %v2327
        %v2351 = vpack.c.b16 %v2330, %v2329
        %v2352 = vpack.c.b16 %v2332, %v2331
        %v2353 = vpack.c.b16 %v2334, %v2333
        %v2354 = vpack.c.b16 %v2336, %v2335
        %v2355 = vpack.c.b16 %v2338, %v2337
        %v2356 = vpack.c.b16 %v2340, %v2339
        %v2361 = vunpack.c.l.b16 %v2305
        %v2362 = vunpack.c.l.b16 %v2306
        %v2363 = vunpack.c.l.b16 %v2307
        %v2364 = vunpack.c.l.b16 %v2308
        %v2365 = vpack.c.b16 %v2362, %v2361
        %v2366 = vpack.c.b16 %v2364, %v2363
        %v2370 = vsel %vm1774, %v2341, 0
        %v2373 = vsel %vm1774, %v2342, 0
        %v2376 = vsel %vm1774, %v2343, 0
        %v2379 = vsel %vm1774, %v2344, 0
        %v2382 = vsel %vm1774, %v2345, 0
        %v2385 = vsel %vm1774, %v2346, 0
        %v2388 = vsel %vm1774, %v2347, 0
        %v2391 = vsel %vm1774, %v2348, 0
        %v2394 = vsel %vm1774, %v2349, 0
        %v2397 = vsel %vm1774, %v2350, 0
        %v2400 = vsel %vm1774, %v2351, 0
        %v2403 = vsel %vm1774, %v2352, 0
        %v2406 = vsel %vm1774, %v2353, 0
        %v2409 = vsel %vm1774, %v2354, 0
        %v2412 = vsel %vm1774, %v2355, 0
        %v2415 = vsel %vm1774, %v2356, 0
        %2417 = vmatpush.bf16.msra.mxu0 0
        %2418 = vmatpush.bf16.msra.mxu0 0
        %2419 = vmatpush.bf16.msra.mxu0 0
        %2420 = vmatpush.bf16.msra.mxu0 0
        %2421 = vmatpush.bf16.msra.mxu0 0
        %2422 = vmatpush.bf16.msra.mxu0 0
        %2423 = vmatpush.bf16.msra.mxu0 %v2366
        %2424 = vmatpush.bf16.msra.mxu0 %v2365
        %2425 = vmatmul.bf16.gmra.mxu0 %v2370
        %v2426 = vpop.f32.mrf.mxu0
        %v2427 = vadd.f32 0.0, %v2426
        %v2428 = vpop.f32.mrf.mxu0
        %v2429 = vadd.f32 0.0, %v2428
        %2430 = vmatmul.bf16.gmra.mxu0 %v2373
        %v2431 = vpop.f32.mrf.mxu0
        %v2432 = vadd.f32 0.0, %v2431
        %v2433 = vpop.f32.mrf.mxu0
        %v2434 = vadd.f32 0.0, %v2433
        %2435 = vmatmul.bf16.gmra.mxu0 %v2376
        %v2436 = vpop.f32.mrf.mxu0
        %v2437 = vadd.f32 0.0, %v2436
        %v2438 = vpop.f32.mrf.mxu0
        %v2439 = vadd.f32 0.0, %v2438
        %2440 = vmatmul.bf16.gmra.mxu0 %v2379
        %v2441 = vpop.f32.mrf.mxu0
        %v2442 = vadd.f32 0.0, %v2441
        %v2443 = vpop.f32.mrf.mxu0
        %v2444 = vadd.f32 0.0, %v2443
        %2445 = vmatmul.bf16.gmra.mxu0 %v2382
        %v2446 = vpop.f32.mrf.mxu0
        %v2447 = vadd.f32 0.0, %v2446
        %v2448 = vpop.f32.mrf.mxu0
        %v2449 = vadd.f32 0.0, %v2448
        %2450 = vmatmul.bf16.gmra.mxu0 %v2385
        %v2451 = vpop.f32.mrf.mxu0
        %v2452 = vadd.f32 0.0, %v2451
        %v2453 = vpop.f32.mrf.mxu0
        %v2454 = vadd.f32 0.0, %v2453
        %2455 = vmatmul.bf16.gmra.mxu0 %v2388
        %v2456 = vpop.f32.mrf.mxu0
        %v2457 = vadd.f32 0.0, %v2456
        %v2458 = vpop.f32.mrf.mxu0
        %v2459 = vadd.f32 0.0, %v2458
        %2460 = vmatmul.bf16.gmra.mxu0 %v2391
        %v2461 = vpop.f32.mrf.mxu0
        %v2462 = vadd.f32 0.0, %v2461
        %v2463 = vpop.f32.mrf.mxu0
        %v2464 = vadd.f32 0.0, %v2463
        %2465 = vmatmul.bf16.gmra.mxu0 %v2394
        %v2466 = vpop.f32.mrf.mxu0
        %v2467 = vadd.f32 0.0, %v2466
        %v2468 = vpop.f32.mrf.mxu0
        %v2469 = vadd.f32 0.0, %v2468
        %2470 = vmatmul.bf16.gmra.mxu0 %v2397
        %v2471 = vpop.f32.mrf.mxu0
        %v2472 = vadd.f32 0.0, %v2471
        %v2473 = vpop.f32.mrf.mxu0
        %v2474 = vadd.f32 0.0, %v2473
        %2475 = vmatmul.bf16.gmra.mxu0 %v2400
        %v2476 = vpop.f32.mrf.mxu0
        %v2477 = vadd.f32 0.0, %v2476
        %v2478 = vpop.f32.mrf.mxu0
        %v2479 = vadd.f32 0.0, %v2478
        %2480 = vmatmul.bf16.gmra.mxu0 %v2403
        %v2481 = vpop.f32.mrf.mxu0
        %v2482 = vadd.f32 0.0, %v2481
        %v2483 = vpop.f32.mrf.mxu0
        %v2484 = vadd.f32 0.0, %v2483
        %2485 = vmatmul.bf16.gmra.mxu0 %v2406
        %v2486 = vpop.f32.mrf.mxu0
        %v2487 = vadd.f32 0.0, %v2486
        %v2488 = vpop.f32.mrf.mxu0
        %v2489 = vadd.f32 0.0, %v2488
        %2490 = vmatmul.bf16.gmra.mxu0 %v2409
        %v2491 = vpop.f32.mrf.mxu0
        %v2492 = vadd.f32 0.0, %v2491
        %v2493 = vpop.f32.mrf.mxu0
        %v2494 = vadd.f32 0.0, %v2493
        %2495 = vmatmul.bf16.gmra.mxu0 %v2412
        %v2496 = vpop.f32.mrf.mxu0
        %v2497 = vadd.f32 0.0, %v2496
        %v2498 = vpop.f32.mrf.mxu0
        %v2499 = vadd.f32 0.0, %v2498
        %2500 = vmatmul.bf16.gmra.mxu0 %v2415
        %v2501 = vpop.f32.mrf.mxu0
        %v2502 = vadd.f32 0.0, %v2501
        %v2503 = vpop.f32.mrf.mxu0
        %v2504 = vadd.f32 0.0, %v2503
        %2505 = vdwg.mxu0
        %v2506 = vadd.f32 %v2062, %v2427
        %v2507 = vadd.f32 %v2064, %v2429
        %v2508 = vadd.f32 %v2067, %v2432
        %v2509 = vadd.f32 %v2069, %v2434
        %v2510 = vadd.f32 %v2072, %v2437
        %v2511 = vadd.f32 %v2074, %v2439
        %v2512 = vadd.f32 %v2077, %v2442
        %v2513 = vadd.f32 %v2079, %v2444
        %v2514 = vadd.f32 %v2082, %v2447
        %v2515 = vadd.f32 %v2084, %v2449
        %v2516 = vadd.f32 %v2087, %v2452
        %v2517 = vadd.f32 %v2089, %v2454
        %v2518 = vadd.f32 %v2092, %v2457
        %v2519 = vadd.f32 %v2094, %v2459
        %v2520 = vadd.f32 %v2097, %v2462
        %v2521 = vadd.f32 %v2099, %v2464
        %v2522 = vadd.f32 %v2102, %v2467
        %v2523 = vadd.f32 %v2104, %v2469
        %v2524 = vadd.f32 %v2107, %v2472
        %v2525 = vadd.f32 %v2109, %v2474
        %v2526 = vadd.f32 %v2112, %v2477
        %v2527 = vadd.f32 %v2114, %v2479
        %v2528 = vadd.f32 %v2117, %v2482
        %v2529 = vadd.f32 %v2119, %v2484
        %v2530 = vadd.f32 %v2122, %v2487
        %v2531 = vadd.f32 %v2124, %v2489
        %v2532 = vadd.f32 %v2127, %v2492
        %v2533 = vadd.f32 %v2129, %v2494
        %v2534 = vadd.f32 %v2132, %v2497
        %v2535 = vadd.f32 %v2134, %v2499
        %v2536 = vadd.f32 %v2137, %v2502
        %v2537 = vadd.f32 %v2139, %v2504
        %v2538 = vld [vmem:[%s1152] sm:$0xf]
        %v2539 = vld [vmem:[%s1152 + $0x4] sm:$0xf]
        %v2540 = vld [vmem:[%s1152 + $0xc] sm:$0xf]
        %v2541 = vld [vmem:[%s1152 + $0x10] sm:$0xf]
        %v2542 = vld [vmem:[%s1152 + $0x18] sm:$0xf]
        %v2543 = vld [vmem:[%s1152 + $0x1c] sm:$0xf]
        %v2544 = vld [vmem:[%s1152 + $0x24] sm:$0xf]
        %v2545 = vld [vmem:[%s1152 + $0x28] sm:$0xf]
        %v2546 = vld [vmem:[%s1152 + $0x30] sm:$0xf]
        %v2547 = vld [vmem:[%s1152 + $0x34] sm:$0xf]
        %v2548 = vld [vmem:[%s1152 + $0x3c] sm:$0xf]
        %v2549 = vld [vmem:[%s1152 + $0x40] sm:$0xf]
        %v2550 = vld [vmem:[%s1152 + $0x48] sm:$0xf]
        %v2551 = vld [vmem:[%s1152 + $0x4c] sm:$0xf]
        %v2552 = vld [vmem:[%s1152 + $0x54] sm:$0xf]
        %v2553 = vld [vmem:[%s1152 + $0x58] sm:$0xf]
        %v2554 = vld [vmem:[%s1152 + $0x60] sm:$0xf]
        %v2555 = vld [vmem:[%s1152 + $0x64] sm:$0xf]
        %v2556 = vld [vmem:[%s1152 + $0x6c] sm:$0xf]
        %v2557 = vld [vmem:[%s1152 + $0x70] sm:$0xf]
        %v2558 = vld [vmem:[%s1152 + $0x78] sm:$0xf]
        %v2559 = vld [vmem:[%s1152 + $0x7c] sm:$0xf]
        %v2560 = vld [vmem:[%s1152 + $0x84] sm:$0xf]
        %v2561 = vld [vmem:[%s1152 + $0x88] sm:$0xf]
        %v2562 = vld [vmem:[%s1152 + $0x90] sm:$0xf]
        %v2563 = vld [vmem:[%s1152 + $0x94] sm:$0xf]
        %v2564 = vld [vmem:[%s1152 + $0x9c] sm:$0xf]
        %v2565 = vld [vmem:[%s1152 + $0xa0] sm:$0xf]
        %v2566 = vld [vmem:[%s1152 + $0xa8] sm:$0xf]
        %v2567 = vld [vmem:[%s1152 + $0xac] sm:$0xf]
        %v2568 = vld [vmem:[%s1152 + $0xb4] sm:$0xf]
        %v2569 = vld [vmem:[%s1152 + $0xb8] sm:$0xf]
        %s2570 = scalar_lea.vmem %s3, 48
        %v2571 = vld [vmem:[%s2570] sm:$0xf]
        %v2572 = vld [vmem:[%s2570 + $0x4] sm:$0xf]
        %v2573 = vld [vmem:[%s2570 + $0x8] sm:$0xf]
        %v2574 = vld [vmem:[%s2570 + $0xc] sm:$0xf]
        %v2607 = vunpack.c.l.b16 %v2538
        %v2608 = vunpack.c.l.b16 %v2539
        %v2609 = vunpack.c.l.b16 %v2540
        %v2610 = vunpack.c.l.b16 %v2541
        %v2611 = vunpack.c.l.b16 %v2542
        %v2612 = vunpack.c.l.b16 %v2543
        %v2613 = vunpack.c.l.b16 %v2544
        %v2614 = vunpack.c.l.b16 %v2545
        %v2615 = vunpack.c.l.b16 %v2546
        %v2616 = vunpack.c.l.b16 %v2547
        %v2617 = vunpack.c.l.b16 %v2548
        %v2618 = vunpack.c.l.b16 %v2549
        %v2619 = vunpack.c.l.b16 %v2550
        %v2620 = vunpack.c.l.b16 %v2551
        %v2621 = vunpack.c.l.b16 %v2552
        %v2622 = vunpack.c.l.b16 %v2553
        %v2623 = vunpack.c.l.b16 %v2554
        %v2624 = vunpack.c.l.b16 %v2555
        %v2625 = vunpack.c.l.b16 %v2556
        %v2626 = vunpack.c.l.b16 %v2557
        %v2627 = vunpack.c.l.b16 %v2558
        %v2628 = vunpack.c.l.b16 %v2559
        %v2629 = vunpack.c.l.b16 %v2560
        %v2630 = vunpack.c.l.b16 %v2561
        %v2631 = vunpack.c.l.b16 %v2562
        %v2632 = vunpack.c.l.b16 %v2563
        %v2633 = vunpack.c.l.b16 %v2564
        %v2634 = vunpack.c.l.b16 %v2565
        %v2635 = vunpack.c.l.b16 %v2566
        %v2636 = vunpack.c.l.b16 %v2567
        %v2637 = vunpack.c.l.b16 %v2568
        %v2638 = vunpack.c.l.b16 %v2569
        %v2639 = vpack.c.b16 %v2608, %v2607
        %v2640 = vpack.c.b16 %v2610, %v2609
        %v2641 = vpack.c.b16 %v2612, %v2611
        %v2642 = vpack.c.b16 %v2614, %v2613
        %v2643 = vpack.c.b16 %v2616, %v2615
        %v2644 = vpack.c.b16 %v2618, %v2617
        %v2645 = vpack.c.b16 %v2620, %v2619
        %v2646 = vpack.c.b16 %v2622, %v2621
        %v2647 = vpack.c.b16 %v2624, %v2623
        %v2648 = vpack.c.b16 %v2626, %v2625
        %v2649 = vpack.c.b16 %v2628, %v2627
        %v2650 = vpack.c.b16 %v2630, %v2629
        %v2651 = vpack.c.b16 %v2632, %v2631
        %v2652 = vpack.c.b16 %v2634, %v2633
        %v2653 = vpack.c.b16 %v2636, %v2635
        %v2654 = vpack.c.b16 %v2638, %v2637
        %v2659 = vunpack.c.l.b16 %v2571
        %v2660 = vunpack.c.l.b16 %v2572
        %v2661 = vunpack.c.l.b16 %v2573
        %v2662 = vunpack.c.l.b16 %v2574
        %v2663 = vpack.c.b16 %v2660, %v2659
        %v2664 = vpack.c.b16 %v2662, %v2661
        %v2668 = vsel %vm1774, %v2639, 0
        %v2671 = vsel %vm1774, %v2640, 0
        %v2674 = vsel %vm1774, %v2641, 0
        %v2677 = vsel %vm1774, %v2642, 0
        %v2680 = vsel %vm1774, %v2643, 0
        %v2683 = vsel %vm1774, %v2644, 0
        %v2686 = vsel %vm1774, %v2645, 0
        %v2689 = vsel %vm1774, %v2646, 0
        %v2692 = vsel %vm1774, %v2647, 0
        %v2695 = vsel %vm1774, %v2648, 0
        %v2698 = vsel %vm1774, %v2649, 0
        %v2701 = vsel %vm1774, %v2650, 0
        %v2704 = vsel %vm1774, %v2651, 0
        %v2707 = vsel %vm1774, %v2652, 0
        %v2710 = vsel %vm1774, %v2653, 0
        %v2713 = vsel %vm1774, %v2654, 0
        %2715 = vmatpush.bf16.msra.mxu0 0
        %2716 = vmatpush.bf16.msra.mxu0 0
        %2717 = vmatpush.bf16.msra.mxu0 0
        %2718 = vmatpush.bf16.msra.mxu0 0
        %2719 = vmatpush.bf16.msra.mxu0 0
        %2720 = vmatpush.bf16.msra.mxu0 0
        %2721 = vmatpush.bf16.msra.mxu0 %v2664
        %2722 = vmatpush.bf16.msra.mxu0 %v2663
        %2723 = vmatmul.bf16.gmra.mxu0 %v2668
        %v2724 = vpop.f32.mrf.mxu0
        %v2725 = vadd.f32 0.0, %v2724
        %v2726 = vpop.f32.mrf.mxu0
        %v2727 = vadd.f32 0.0, %v2726
        %2728 = vmatmul.bf16.gmra.mxu0 %v2671
        %v2729 = vpop.f32.mrf.mxu0
        %v2730 = vadd.f32 0.0, %v2729
        %v2731 = vpop.f32.mrf.mxu0
        %v2732 = vadd.f32 0.0, %v2731
        %2733 = vmatmul.bf16.gmra.mxu0 %v2674
        %v2734 = vpop.f32.mrf.mxu0
        %v2735 = vadd.f32 0.0, %v2734
        %v2736 = vpop.f32.mrf.mxu0
        %v2737 = vadd.f32 0.0, %v2736
        %2738 = vmatmul.bf16.gmra.mxu0 %v2677
        %v2739 = vpop.f32.mrf.mxu0
        %v2740 = vadd.f32 0.0, %v2739
        %v2741 = vpop.f32.mrf.mxu0
        %v2742 = vadd.f32 0.0, %v2741
        %2743 = vmatmul.bf16.gmra.mxu0 %v2680
        %v2744 = vpop.f32.mrf.mxu0
        %v2745 = vadd.f32 0.0, %v2744
        %v2746 = vpop.f32.mrf.mxu0
        %v2747 = vadd.f32 0.0, %v2746
        %2748 = vmatmul.bf16.gmra.mxu0 %v2683
        %v2749 = vpop.f32.mrf.mxu0
        %v2750 = vadd.f32 0.0, %v2749
        %v2751 = vpop.f32.mrf.mxu0
        %v2752 = vadd.f32 0.0, %v2751
        %2753 = vmatmul.bf16.gmra.mxu0 %v2686
        %v2754 = vpop.f32.mrf.mxu0
        %v2755 = vadd.f32 0.0, %v2754
        %v2756 = vpop.f32.mrf.mxu0
        %v2757 = vadd.f32 0.0, %v2756
        %2758 = vmatmul.bf16.gmra.mxu0 %v2689
        %v2759 = vpop.f32.mrf.mxu0
        %v2760 = vadd.f32 0.0, %v2759
        %v2761 = vpop.f32.mrf.mxu0
        %v2762 = vadd.f32 0.0, %v2761
        %2763 = vmatmul.bf16.gmra.mxu0 %v2692
        %v2764 = vpop.f32.mrf.mxu0
        %v2765 = vadd.f32 0.0, %v2764
        %v2766 = vpop.f32.mrf.mxu0
        %v2767 = vadd.f32 0.0, %v2766
        %2768 = vmatmul.bf16.gmra.mxu0 %v2695
        %v2769 = vpop.f32.mrf.mxu0
        %v2770 = vadd.f32 0.0, %v2769
        %v2771 = vpop.f32.mrf.mxu0
        %v2772 = vadd.f32 0.0, %v2771
        %2773 = vmatmul.bf16.gmra.mxu0 %v2698
        %v2774 = vpop.f32.mrf.mxu0
        %v2775 = vadd.f32 0.0, %v2774
        %v2776 = vpop.f32.mrf.mxu0
        %v2777 = vadd.f32 0.0, %v2776
        %2778 = vmatmul.bf16.gmra.mxu0 %v2701
        %v2779 = vpop.f32.mrf.mxu0
        %v2780 = vadd.f32 0.0, %v2779
        %v2781 = vpop.f32.mrf.mxu0
        %v2782 = vadd.f32 0.0, %v2781
        %2783 = vmatmul.bf16.gmra.mxu0 %v2704
        %v2784 = vpop.f32.mrf.mxu0
        %v2785 = vadd.f32 0.0, %v2784
        %v2786 = vpop.f32.mrf.mxu0
        %v2787 = vadd.f32 0.0, %v2786
        %2788 = vmatmul.bf16.gmra.mxu0 %v2707
        %v2789 = vpop.f32.mrf.mxu0
        %v2790 = vadd.f32 0.0, %v2789
        %v2791 = vpop.f32.mrf.mxu0
        %v2792 = vadd.f32 0.0, %v2791
        %2793 = vmatmul.bf16.gmra.mxu0 %v2710
        %v2794 = vpop.f32.mrf.mxu0
        %v2795 = vadd.f32 0.0, %v2794
        %v2796 = vpop.f32.mrf.mxu0
        %v2797 = vadd.f32 0.0, %v2796
        %2798 = vmatmul.bf16.gmra.mxu0 %v2713
        %v2799 = vpop.f32.mrf.mxu0
        %v2800 = vadd.f32 0.0, %v2799
        %v2801 = vpop.f32.mrf.mxu0
        %v2802 = vadd.f32 0.0, %v2801
        %2803 = vdwg.mxu0
        %v2804 = vadd.f32 %v2506, %v2725
        %v2805 = vadd.f32 %v2507, %v2727
        %v2806 = vadd.f32 %v2508, %v2730
        %v2807 = vadd.f32 %v2509, %v2732
        %v2808 = vadd.f32 %v2510, %v2735
        %v2809 = vadd.f32 %v2511, %v2737
        %v2810 = vadd.f32 %v2512, %v2740
        %v2811 = vadd.f32 %v2513, %v2742
        %v2812 = vadd.f32 %v2514, %v2745
        %v2813 = vadd.f32 %v2515, %v2747
        %v2814 = vadd.f32 %v2516, %v2750
        %v2815 = vadd.f32 %v2517, %v2752
        %v2816 = vadd.f32 %v2518, %v2755
        %v2817 = vadd.f32 %v2519, %v2757
        %v2818 = vadd.f32 %v2520, %v2760
        %v2819 = vadd.f32 %v2521, %v2762
        %v2820 = vadd.f32 %v2522, %v2765
        %v2821 = vadd.f32 %v2523, %v2767
        %v2822 = vadd.f32 %v2524, %v2770
        %v2823 = vadd.f32 %v2525, %v2772
        %v2824 = vadd.f32 %v2526, %v2775
        %v2825 = vadd.f32 %v2527, %v2777
        %v2826 = vadd.f32 %v2528, %v2780
        %v2827 = vadd.f32 %v2529, %v2782
        %v2828 = vadd.f32 %v2530, %v2785
        %v2829 = vadd.f32 %v2531, %v2787
        %v2830 = vadd.f32 %v2532, %v2790
        %v2831 = vadd.f32 %v2533, %v2792
        %v2832 = vadd.f32 %v2534, %v2795
        %v2833 = vadd.f32 %v2535, %v2797
        %v2834 = vadd.f32 %v2536, %v2800
        %v2835 = vadd.f32 %v2537, %v2802
        %v2836 = vld [vmem:[%s1152] sm:$0xf]
        %v2837 = vld [vmem:[%s1152 + $0x4] sm:$0xf]
        %v2838 = vld [vmem:[%s1152 + $0x8] sm:$0x1]
        %v2839 = vld [vmem:[%s1152 + $0xc] sm:$0xf]
        %v2840 = vld [vmem:[%s1152 + $0x10] sm:$0xf]
        %v2841 = vld [vmem:[%s1152 + $0x14] sm:$0x1]
        %v2842 = vld [vmem:[%s1152 + $0x18] sm:$0xf]
        %v2843 = vld [vmem:[%s1152 + $0x1c] sm:$0xf]
        %v2844 = vld [vmem:[%s1152 + $0x20] sm:$0x1]
        %v2845 = vld [vmem:[%s1152 + $0x24] sm:$0xf]
        %v2846 = vld [vmem:[%s1152 + $0x28] sm:$0xf]
        %v2847 = vld [vmem:[%s1152 + $0x2c] sm:$0x1]
        %v2848 = vld [vmem:[%s1152 + $0x30] sm:$0xf]
        %v2849 = vld [vmem:[%s1152 + $0x34] sm:$0xf]
        %v2850 = vld [vmem:[%s1152 + $0x38] sm:$0x1]
        %v2851 = vld [vmem:[%s1152 + $0x3c] sm:$0xf]
        %v2852 = vld [vmem:[%s1152 + $0x40] sm:$0xf]
        %v2853 = vld [vmem:[%s1152 + $0x44] sm:$0x1]
        %v2854 = vld [vmem:[%s1152 + $0x48] sm:$0xf]
        %v2855 = vld [vmem:[%s1152 + $0x4c] sm:$0xf]
        %v2856 = vld [vmem:[%s1152 + $0x50] sm:$0x1]
        %v2857 = vld [vmem:[%s1152 + $0x54] sm:$0xf]
        %v2858 = vld [vmem:[%s1152 + $0x58] sm:$0xf]
        %v2859 = vld [vmem:[%s1152 + $0x5c] sm:$0x1]
        %v2860 = vld [vmem:[%s1152 + $0x60] sm:$0xf]
        %v2861 = vld [vmem:[%s1152 + $0x64] sm:$0xf]
        %v2862 = vld [vmem:[%s1152 + $0x68] sm:$0x1]
        %v2863 = vld [vmem:[%s1152 + $0x6c] sm:$0xf]
        %v2864 = vld [vmem:[%s1152 + $0x70] sm:$0xf]
        %v2865 = vld [vmem:[%s1152 + $0x74] sm:$0x1]
        %v2866 = vld [vmem:[%s1152 + $0x78] sm:$0xf]
        %v2867 = vld [vmem:[%s1152 + $0x7c] sm:$0xf]
        %v2868 = vld [vmem:[%s1152 + $0x80] sm:$0x1]
        %v2869 = vld [vmem:[%s1152 + $0x84] sm:$0xf]
        %v2870 = vld [vmem:[%s1152 + $0x88] sm:$0xf]
        %v2871 = vld [vmem:[%s1152 + $0x8c] sm:$0x1]
        %v2872 = vld [vmem:[%s1152 + $0x90] sm:$0xf]
        %v2873 = vld [vmem:[%s1152 + $0x94] sm:$0xf]
        %v2874 = vld [vmem:[%s1152 + $0x98] sm:$0x1]
        %v2875 = vld [vmem:[%s1152 + $0x9c] sm:$0xf]
        %v2876 = vld [vmem:[%s1152 + $0xa0] sm:$0xf]
        %v2877 = vld [vmem:[%s1152 + $0xa4] sm:$0x1]
        %v2878 = vld [vmem:[%s1152 + $0xa8] sm:$0xf]
        %v2879 = vld [vmem:[%s1152 + $0xac] sm:$0xf]
        %v2880 = vld [vmem:[%s1152 + $0xb0] sm:$0x1]
        %v2881 = vld [vmem:[%s1152 + $0xb4] sm:$0xf]
        %v2882 = vld [vmem:[%s1152 + $0xb8] sm:$0xf]
        %v2883 = vld [vmem:[%s1152 + $0xbc] sm:$0x1]
        %v2885 = vshrl.u32 %v2836, 16
        %v2887 = vrot.slane %v2885, 4
        %v2888 = vshll.u32 %v2836, 16
        %v2890 = vrot.slane %v2888, 5
        %v2891 = vor.u32 %v2887, %v2890
        %v2892 = vrot.slane %v2891, 4
        %v2894 = vshll.u32 %v2837, 16
        %v2896 = vrot.slane %v2894, 5
        %v2897 = vsel %vm1324, %v2892, %v2896
        %v2898 = vshrl.u32 %v2837, 16
        %v2900 = vrot.slane %v2898, 4
        %v2901 = vor.u32 %v2900, %v2896
        %v2902 = vrot.slane %v2901, 4
        %v2904 = vshll.u32 %v2838, 16
        %v2906 = vrot.slane %v2904, 5
        %v2907 = vsel %vm1324, %v2902, %v2906
        %v2909 = vshrl.u32 %v2839, 16
        %v2911 = vrot.slane %v2909, 4
        %v2912 = vshll.u32 %v2839, 16
        %v2914 = vrot.slane %v2912, 5
        %v2915 = vor.u32 %v2911, %v2914
        %v2916 = vrot.slane %v2915, 4
        %v2918 = vshll.u32 %v2840, 16
        %v2920 = vrot.slane %v2918, 5
        %v2921 = vsel %vm1324, %v2916, %v2920
        %v2922 = vshrl.u32 %v2840, 16
        %v2924 = vrot.slane %v2922, 4
        %v2925 = vor.u32 %v2924, %v2920
        %v2926 = vrot.slane %v2925, 4
        %v2928 = vshll.u32 %v2841, 16
        %v2930 = vrot.slane %v2928, 5
        %v2931 = vsel %vm1324, %v2926, %v2930
        %v2933 = vshrl.u32 %v2842, 16
        %v2935 = vrot.slane %v2933, 4
        %v2936 = vshll.u32 %v2842, 16
        %v2938 = vrot.slane %v2936, 5
        %v2939 = vor.u32 %v2935, %v2938
        %v2940 = vrot.slane %v2939, 4
        %v2942 = vshll.u32 %v2843, 16
        %v2944 = vrot.slane %v2942, 5
        %v2945 = vsel %vm1324, %v2940, %v2944
        %v2946 = vshrl.u32 %v2843, 16
        %v2948 = vrot.slane %v2946, 4
        %v2949 = vor.u32 %v2948, %v2944
        %v2950 = vrot.slane %v2949, 4
        %v2952 = vshll.u32 %v2844, 16
        %v2954 = vrot.slane %v2952, 5
        %v2955 = vsel %vm1324, %v2950, %v2954
        %v2957 = vshrl.u32 %v2845, 16
        %v2959 = vrot.slane %v2957, 4
        %v2960 = vshll.u32 %v2845, 16
        %v2962 = vrot.slane %v2960, 5
        %v2963 = vor.u32 %v2959, %v2962
        %v2964 = vrot.slane %v2963, 4
        %v2966 = vshll.u32 %v2846, 16
        %v2968 = vrot.slane %v2966, 5
        %v2969 = vsel %vm1324, %v2964, %v2968
        %v2970 = vshrl.u32 %v2846, 16
        %v2972 = vrot.slane %v2970, 4
        %v2973 = vor.u32 %v2972, %v2968
        %v2974 = vrot.slane %v2973, 4
        %v2976 = vshll.u32 %v2847, 16
        %v2978 = vrot.slane %v2976, 5
        %v2979 = vsel %vm1324, %v2974, %v2978
        %v2981 = vshrl.u32 %v2848, 16
        %v2983 = vrot.slane %v2981, 4
        %v2984 = vshll.u32 %v2848, 16
        %v2986 = vrot.slane %v2984, 5
        %v2987 = vor.u32 %v2983, %v2986
        %v2988 = vrot.slane %v2987, 4
        %v2990 = vshll.u32 %v2849, 16
        %v2992 = vrot.slane %v2990, 5
        %v2993 = vsel %vm1324, %v2988, %v2992
        %v2994 = vshrl.u32 %v2849, 16
        %v2996 = vrot.slane %v2994, 4
        %v2997 = vor.u32 %v2996, %v2992
        %v2998 = vrot.slane %v2997, 4
        %v3000 = vshll.u32 %v2850, 16
        %v3002 = vrot.slane %v3000, 5
        %v3003 = vsel %vm1324, %v2998, %v3002
        %v3005 = vshrl.u32 %v2851, 16
        %v3007 = vrot.slane %v3005, 4
        %v3008 = vshll.u32 %v2851, 16
        %v3010 = vrot.slane %v3008, 5
        %v3011 = vor.u32 %v3007, %v3010
        %v3012 = vrot.slane %v3011, 4
        %v3014 = vshll.u32 %v2852, 16
        %v3016 = vrot.slane %v3014, 5
        %v3017 = vsel %vm1324, %v3012, %v3016
        %v3018 = vshrl.u32 %v2852, 16
        %v3020 = vrot.slane %v3018, 4
        %v3021 = vor.u32 %v3020, %v3016
        %v3022 = vrot.slane %v3021, 4
        %v3024 = vshll.u32 %v2853, 16
        %v3026 = vrot.slane %v3024, 5
        %v3027 = vsel %vm1324, %v3022, %v3026
        %v3029 = vshrl.u32 %v2854, 16
        %v3031 = vrot.slane %v3029, 4
        %v3032 = vshll.u32 %v2854, 16
        %v3034 = vrot.slane %v3032, 5
        %v3035 = vor.u32 %v3031, %v3034
        %v3036 = vrot.slane %v3035, 4
        %v3038 = vshll.u32 %v2855, 16
        %v3040 = vrot.slane %v3038, 5
        %v3041 = vsel %vm1324, %v3036, %v3040
        %v3042 = vshrl.u32 %v2855, 16
        %v3044 = vrot.slane %v3042, 4
        %v3045 = vor.u32 %v3044, %v3040
        %v3046 = vrot.slane %v3045, 4
        %v3048 = vshll.u32 %v2856, 16
        %v3050 = vrot.slane %v3048, 5
        %v3051 = vsel %vm1324, %v3046, %v3050
        %v3053 = vshrl.u32 %v2857, 16
        %v3055 = vrot.slane %v3053, 4
        %v3056 = vshll.u32 %v2857, 16
        %v3058 = vrot.slane %v3056, 5
        %v3059 = vor.u32 %v3055, %v3058
        %v3060 = vrot.slane %v3059, 4
        %v3062 = vshll.u32 %v2858, 16
        %v3064 = vrot.slane %v3062, 5
        %v3065 = vsel %vm1324, %v3060, %v3064
        %v3066 = vshrl.u32 %v2858, 16
        %v3068 = vrot.slane %v3066, 4
        %v3069 = vor.u32 %v3068, %v3064
        %v3070 = vrot.slane %v3069, 4
        %v3072 = vshll.u32 %v2859, 16
        %v3074 = vrot.slane %v3072, 5
        %v3075 = vsel %vm1324, %v3070, %v3074
        %v3077 = vshrl.u32 %v2860, 16
        %v3079 = vrot.slane %v3077, 4
        %v3080 = vshll.u32 %v2860, 16
        %v3082 = vrot.slane %v3080, 5
        %v3083 = vor.u32 %v3079, %v3082
        %v3084 = vrot.slane %v3083, 4
        %v3086 = vshll.u32 %v2861, 16
        %v3088 = vrot.slane %v3086, 5
        %v3089 = vsel %vm1324, %v3084, %v3088
        %v3090 = vshrl.u32 %v2861, 16
        %v3092 = vrot.slane %v3090, 4
        %v3093 = vor.u32 %v3092, %v3088
        %v3094 = vrot.slane %v3093, 4
        %v3096 = vshll.u32 %v2862, 16
        %v3098 = vrot.slane %v3096, 5
        %v3099 = vsel %vm1324, %v3094, %v3098
        %v3101 = vshrl.u32 %v2863, 16
        %v3103 = vrot.slane %v3101, 4
        %v3104 = vshll.u32 %v2863, 16
        %v3106 = vrot.slane %v3104, 5
        %v3107 = vor.u32 %v3103, %v3106
        %v3108 = vrot.slane %v3107, 4
        %v3110 = vshll.u32 %v2864, 16
        %v3112 = vrot.slane %v3110, 5
        %v3113 = vsel %vm1324, %v3108, %v3112
        %v3114 = vshrl.u32 %v2864, 16
        %v3116 = vrot.slane %v3114, 4
        %v3117 = vor.u32 %v3116, %v3112
        %v3118 = vrot.slane %v3117, 4
        %v3120 = vshll.u32 %v2865, 16
        %v3122 = vrot.slane %v3120, 5
        %v3123 = vsel %vm1324, %v3118, %v3122
        %v3125 = vshrl.u32 %v2866, 16
        %v3127 = vrot.slane %v3125, 4
        %v3128 = vshll.u32 %v2866, 16
        %v3130 = vrot.slane %v3128, 5
        %v3131 = vor.u32 %v3127, %v3130
        %v3132 = vrot.slane %v3131, 4
        %v3134 = vshll.u32 %v2867, 16
        %v3136 = vrot.slane %v3134, 5
        %v3137 = vsel %vm1324, %v3132, %v3136
        %v3138 = vshrl.u32 %v2867, 16
        %v3140 = vrot.slane %v3138, 4
        %v3141 = vor.u32 %v3140, %v3136
        %v3142 = vrot.slane %v3141, 4
        %v3144 = vshll.u32 %v2868, 16
        %v3146 = vrot.slane %v3144, 5
        %v3147 = vsel %vm1324, %v3142, %v3146
        %v3149 = vshrl.u32 %v2869, 16
        %v3151 = vrot.slane %v3149, 4
        %v3152 = vshll.u32 %v2869, 16
        %v3154 = vrot.slane %v3152, 5
        %v3155 = vor.u32 %v3151, %v3154
        %v3156 = vrot.slane %v3155, 4
        %v3158 = vshll.u32 %v2870, 16
        %v3160 = vrot.slane %v3158, 5
        %v3161 = vsel %vm1324, %v3156, %v3160
        %v3162 = vshrl.u32 %v2870, 16
        %v3164 = vrot.slane %v3162, 4
        %v3165 = vor.u32 %v3164, %v3160
        %v3166 = vrot.slane %v3165, 4
        %v3168 = vshll.u32 %v2871, 16
        %v3170 = vrot.slane %v3168, 5
        %v3171 = vsel %vm1324, %v3166, %v3170
        %v3173 = vshrl.u32 %v2872, 16
        %v3175 = vrot.slane %v3173, 4
        %v3176 = vshll.u32 %v2872, 16
        %v3178 = vrot.slane %v3176, 5
        %v3179 = vor.u32 %v3175, %v3178
        %v3180 = vrot.slane %v3179, 4
        %v3182 = vshll.u32 %v2873, 16
        %v3184 = vrot.slane %v3182, 5
        %v3185 = vsel %vm1324, %v3180, %v3184
        %v3186 = vshrl.u32 %v2873, 16
        %v3188 = vrot.slane %v3186, 4
        %v3189 = vor.u32 %v3188, %v3184
        %v3190 = vrot.slane %v3189, 4
        %v3192 = vshll.u32 %v2874, 16
        %v3194 = vrot.slane %v3192, 5
        %v3195 = vsel %vm1324, %v3190, %v3194
        %v3197 = vshrl.u32 %v2875, 16
        %v3199 = vrot.slane %v3197, 4
        %v3200 = vshll.u32 %v2875, 16
        %v3202 = vrot.slane %v3200, 5
        %v3203 = vor.u32 %v3199, %v3202
        %v3204 = vrot.slane %v3203, 4
        %v3206 = vshll.u32 %v2876, 16
        %v3208 = vrot.slane %v3206, 5
        %v3209 = vsel %vm1324, %v3204, %v3208
        %v3210 = vshrl.u32 %v2876, 16
        %v3212 = vrot.slane %v3210, 4
        %v3213 = vor.u32 %v3212, %v3208
        %v3214 = vrot.slane %v3213, 4
        %v3216 = vshll.u32 %v2877, 16
        %v3218 = vrot.slane %v3216, 5
        %v3219 = vsel %vm1324, %v3214, %v3218
        %v3221 = vshrl.u32 %v2878, 16
        %v3223 = vrot.slane %v3221, 4
        %v3224 = vshll.u32 %v2878, 16
        %v3226 = vrot.slane %v3224, 5
        %v3227 = vor.u32 %v3223, %v3226
        %v3228 = vrot.slane %v3227, 4
        %v3230 = vshll.u32 %v2879, 16
        %v3232 = vrot.slane %v3230, 5
        %v3233 = vsel %vm1324, %v3228, %v3232
        %v3234 = vshrl.u32 %v2879, 16
        %v3236 = vrot.slane %v3234, 4
        %v3237 = vor.u32 %v3236, %v3232
        %v3238 = vrot.slane %v3237, 4
        %v3240 = vshll.u32 %v2880, 16
        %v3242 = vrot.slane %v3240, 5
        %v3243 = vsel %vm1324, %v3238, %v3242
        %v3245 = vshrl.u32 %v2881, 16
        %v3247 = vrot.slane %v3245, 4
        %v3248 = vshll.u32 %v2881, 16
        %v3250 = vrot.slane %v3248, 5
        %v3251 = vor.u32 %v3247, %v3250
        %v3252 = vrot.slane %v3251, 4
        %v3254 = vshll.u32 %v2882, 16
        %v3256 = vrot.slane %v3254, 5
        %v3257 = vsel %vm1324, %v3252, %v3256
        %v3258 = vshrl.u32 %v2882, 16
        %v3260 = vrot.slane %v3258, 4
        %v3261 = vor.u32 %v3260, %v3256
        %v3262 = vrot.slane %v3261, 4
        %v3264 = vshll.u32 %v2883, 16
        %v3266 = vrot.slane %v3264, 5
        %v3267 = vsel %vm1324, %v3262, %v3266
        %s3268 = scalar_lea.vmem %s3, 64
        %v3269 = vld [vmem:[%s3268] sm:$0xf]
        %v3270 = vld [vmem:[%s3268 + $0x4] sm:$0xf]
        %v3271 = vld [vmem:[%s3268 + $0x8] sm:$0xf]
        %v3272 = vld [vmem:[%s3268 + $0xc] sm:$0xf]
        %v3273 = vunpack.c.l.b16 %v2897
        %v3274 = vunpack.c.l.b16 %v2907
        %v3275 = vunpack.c.l.b16 %v2921
        %v3276 = vunpack.c.l.b16 %v2931
        %v3277 = vunpack.c.l.b16 %v2945
        %v3278 = vunpack.c.l.b16 %v2955
        %v3279 = vunpack.c.l.b16 %v2969
        %v3280 = vunpack.c.l.b16 %v2979
        %v3281 = vunpack.c.l.b16 %v2993
        %v3282 = vunpack.c.l.b16 %v3003
        %v3283 = vunpack.c.l.b16 %v3017
        %v3284 = vunpack.c.l.b16 %v3027
        %v3285 = vunpack.c.l.b16 %v3041
        %v3286 = vunpack.c.l.b16 %v3051
        %v3287 = vunpack.c.l.b16 %v3065
        %v3288 = vunpack.c.l.b16 %v3075
        %v3289 = vunpack.c.l.b16 %v3089
        %v3290 = vunpack.c.l.b16 %v3099
        %v3291 = vunpack.c.l.b16 %v3113
        %v3292 = vunpack.c.l.b16 %v3123
        %v3293 = vunpack.c.l.b16 %v3137
        %v3294 = vunpack.c.l.b16 %v3147
        %v3295 = vunpack.c.l.b16 %v3161
        %v3296 = vunpack.c.l.b16 %v3171
        %v3297 = vunpack.c.l.b16 %v3185
        %v3298 = vunpack.c.l.b16 %v3195
        %v3299 = vunpack.c.l.b16 %v3209
        %v3300 = vunpack.c.l.b16 %v3219
        %v3301 = vunpack.c.l.b16 %v3233
        %v3302 = vunpack.c.l.b16 %v3243
        %v3303 = vunpack.c.l.b16 %v3257
        %v3304 = vunpack.c.l.b16 %v3267
        %v3305 = vpack.c.b16 %v3274, %v3273
        %v3306 = vpack.c.b16 %v3276, %v3275
        %v3307 = vpack.c.b16 %v3278, %v3277
        %v3308 = vpack.c.b16 %v3280, %v3279
        %v3309 = vpack.c.b16 %v3282, %v3281
        %v3310 = vpack.c.b16 %v3284, %v3283
        %v3311 = vpack.c.b16 %v3286, %v3285
        %v3312 = vpack.c.b16 %v3288, %v3287
        %v3313 = vpack.c.b16 %v3290, %v3289
        %v3314 = vpack.c.b16 %v3292, %v3291
        %v3315 = vpack.c.b16 %v3294, %v3293
        %v3316 = vpack.c.b16 %v3296, %v3295
        %v3317 = vpack.c.b16 %v3298, %v3297
        %v3318 = vpack.c.b16 %v3300, %v3299
        %v3319 = vpack.c.b16 %v3302, %v3301
        %v3320 = vpack.c.b16 %v3304, %v3303
        %v3325 = vunpack.c.l.b16 %v3269
        %v3326 = vunpack.c.l.b16 %v3270
        %v3327 = vunpack.c.l.b16 %v3271
        %v3328 = vunpack.c.l.b16 %v3272
        %v3329 = vpack.c.b16 %v3326, %v3325
        %v3330 = vpack.c.b16 %v3328, %v3327
        %v3334 = vsel %vm1774, %v3305, 0
        %v3337 = vsel %vm1774, %v3306, 0
        %v3340 = vsel %vm1774, %v3307, 0
        %v3343 = vsel %vm1774, %v3308, 0
        %v3346 = vsel %vm1774, %v3309, 0
        %v3349 = vsel %vm1774, %v3310, 0
        %v3352 = vsel %vm1774, %v3311, 0
        %v3355 = vsel %vm1774, %v3312, 0
        %v3358 = vsel %vm1774, %v3313, 0
        %v3361 = vsel %vm1774, %v3314, 0
        %v3364 = vsel %vm1774, %v3315, 0
        %v3367 = vsel %vm1774, %v3316, 0
        %v3370 = vsel %vm1774, %v3317, 0
        %v3373 = vsel %vm1774, %v3318, 0
        %v3376 = vsel %vm1774, %v3319, 0
        %v3379 = vsel %vm1774, %v3320, 0
        %3381 = vmatpush.bf16.msra.mxu0 0
        %3382 = vmatpush.bf16.msra.mxu0 0
        %3383 = vmatpush.bf16.msra.mxu0 0
        %3384 = vmatpush.bf16.msra.mxu0 0
        %3385 = vmatpush.bf16.msra.mxu0 0
        %3386 = vmatpush.bf16.msra.mxu0 0
        %3387 = vmatpush.bf16.msra.mxu0 %v3330
        %3388 = vmatpush.bf16.msra.mxu0 %v3329
        %3389 = vmatmul.bf16.gmra.mxu0 %v3334
        %v3390 = vpop.f32.mrf.mxu0
        %v3391 = vadd.f32 0.0, %v3390
        %v3392 = vpop.f32.mrf.mxu0
        %v3393 = vadd.f32 0.0, %v3392
        %3394 = vmatmul.bf16.gmra.mxu0 %v3337
        %v3395 = vpop.f32.mrf.mxu0
        %v3396 = vadd.f32 0.0, %v3395
        %v3397 = vpop.f32.mrf.mxu0
        %v3398 = vadd.f32 0.0, %v3397
        %3399 = vmatmul.bf16.gmra.mxu0 %v3340
        %v3400 = vpop.f32.mrf.mxu0
        %v3401 = vadd.f32 0.0, %v3400
        %v3402 = vpop.f32.mrf.mxu0
        %v3403 = vadd.f32 0.0, %v3402
        %3404 = vmatmul.bf16.gmra.mxu0 %v3343
        %v3405 = vpop.f32.mrf.mxu0
        %v3406 = vadd.f32 0.0, %v3405
        %v3407 = vpop.f32.mrf.mxu0
        %v3408 = vadd.f32 0.0, %v3407
        %3409 = vmatmul.bf16.gmra.mxu0 %v3346
        %v3410 = vpop.f32.mrf.mxu0
        %v3411 = vadd.f32 0.0, %v3410
        %v3412 = vpop.f32.mrf.mxu0
        %v3413 = vadd.f32 0.0, %v3412
        %3414 = vmatmul.bf16.gmra.mxu0 %v3349
        %v3415 = vpop.f32.mrf.mxu0
        %v3416 = vadd.f32 0.0, %v3415
        %v3417 = vpop.f32.mrf.mxu0
        %v3418 = vadd.f32 0.0, %v3417
        %3419 = vmatmul.bf16.gmra.mxu0 %v3352
        %v3420 = vpop.f32.mrf.mxu0
        %v3421 = vadd.f32 0.0, %v3420
        %v3422 = vpop.f32.mrf.mxu0
        %v3423 = vadd.f32 0.0, %v3422
        %3424 = vmatmul.bf16.gmra.mxu0 %v3355
        %v3425 = vpop.f32.mrf.mxu0
        %v3426 = vadd.f32 0.0, %v3425
        %v3427 = vpop.f32.mrf.mxu0
        %v3428 = vadd.f32 0.0, %v3427
        %3429 = vmatmul.bf16.gmra.mxu0 %v3358
        %v3430 = vpop.f32.mrf.mxu0
        %v3431 = vadd.f32 0.0, %v3430
        %v3432 = vpop.f32.mrf.mxu0
        %v3433 = vadd.f32 0.0, %v3432
        %3434 = vmatmul.bf16.gmra.mxu0 %v3361
        %v3435 = vpop.f32.mrf.mxu0
        %v3436 = vadd.f32 0.0, %v3435
        %v3437 = vpop.f32.mrf.mxu0
        %v3438 = vadd.f32 0.0, %v3437
        %3439 = vmatmul.bf16.gmra.mxu0 %v3364
        %v3440 = vpop.f32.mrf.mxu0
        %v3441 = vadd.f32 0.0, %v3440
        %v3442 = vpop.f32.mrf.mxu0
        %v3443 = vadd.f32 0.0, %v3442
        %3444 = vmatmul.bf16.gmra.mxu0 %v3367
        %v3445 = vpop.f32.mrf.mxu0
        %v3446 = vadd.f32 0.0, %v3445
        %v3447 = vpop.f32.mrf.mxu0
        %v3448 = vadd.f32 0.0, %v3447
        %3449 = vmatmul.bf16.gmra.mxu0 %v3370
        %v3450 = vpop.f32.mrf.mxu0
        %v3451 = vadd.f32 0.0, %v3450
        %v3452 = vpop.f32.mrf.mxu0
        %v3453 = vadd.f32 0.0, %v3452
        %3454 = vmatmul.bf16.gmra.mxu0 %v3373
        %v3455 = vpop.f32.mrf.mxu0
        %v3456 = vadd.f32 0.0, %v3455
        %v3457 = vpop.f32.mrf.mxu0
        %v3458 = vadd.f32 0.0, %v3457
        %3459 = vmatmul.bf16.gmra.mxu0 %v3376
        %v3460 = vpop.f32.mrf.mxu0
        %v3461 = vadd.f32 0.0, %v3460
        %v3462 = vpop.f32.mrf.mxu0
        %v3463 = vadd.f32 0.0, %v3462
        %3464 = vmatmul.bf16.gmra.mxu0 %v3379
        %v3465 = vpop.f32.mrf.mxu0
        %v3466 = vadd.f32 0.0, %v3465
        %v3467 = vpop.f32.mrf.mxu0
        %v3468 = vadd.f32 0.0, %v3467
        %3469 = vdwg.mxu0
        %v3470 = vadd.f32 %v2804, %v3391
        %v3471 = vadd.f32 %v2805, %v3393
        %v3472 = vadd.f32 %v2806, %v3396
        %v3473 = vadd.f32 %v2807, %v3398
        %v3474 = vadd.f32 %v2808, %v3401
        %v3475 = vadd.f32 %v2809, %v3403
        %v3476 = vadd.f32 %v2810, %v3406
        %v3477 = vadd.f32 %v2811, %v3408
        %v3478 = vadd.f32 %v2812, %v3411
        %v3479 = vadd.f32 %v2813, %v3413
        %v3480 = vadd.f32 %v2814, %v3416
        %v3481 = vadd.f32 %v2815, %v3418
        %v3482 = vadd.f32 %v2816, %v3421
        %v3483 = vadd.f32 %v2817, %v3423
        %v3484 = vadd.f32 %v2818, %v3426
        %v3485 = vadd.f32 %v2819, %v3428
        %v3486 = vadd.f32 %v2820, %v3431
        %v3487 = vadd.f32 %v2821, %v3433
        %v3488 = vadd.f32 %v2822, %v3436
        %v3489 = vadd.f32 %v2823, %v3438
        %v3490 = vadd.f32 %v2824, %v3441
        %v3491 = vadd.f32 %v2825, %v3443
        %v3492 = vadd.f32 %v2826, %v3446
        %v3493 = vadd.f32 %v2827, %v3448
        %v3494 = vadd.f32 %v2828, %v3451
        %v3495 = vadd.f32 %v2829, %v3453
        %v3496 = vadd.f32 %v2830, %v3456
        %v3497 = vadd.f32 %v2831, %v3458
        %v3498 = vadd.f32 %v2832, %v3461
        %v3499 = vadd.f32 %v2833, %v3463
        %v3500 = vadd.f32 %v2834, %v3466
        %v3501 = vadd.f32 %v2835, %v3468
        %v3502 = vld [vmem:[%s1152] sm:$0xe]
        %v3503 = vld [vmem:[%s1152 + $0xc] sm:$0xe]
        %v3504 = vld [vmem:[%s1152 + $0x18] sm:$0xe]
        %v3505 = vld [vmem:[%s1152 + $0x24] sm:$0xe]
        %v3506 = vld [vmem:[%s1152 + $0x30] sm:$0xe]
        %v3507 = vld [vmem:[%s1152 + $0x3c] sm:$0xe]
        %v3508 = vld [vmem:[%s1152 + $0x48] sm:$0xe]
        %v3509 = vld [vmem:[%s1152 + $0x54] sm:$0xe]
        %v3510 = vld [vmem:[%s1152 + $0x60] sm:$0xe]
        %v3511 = vld [vmem:[%s1152 + $0x6c] sm:$0xe]
        %v3512 = vld [vmem:[%s1152 + $0x78] sm:$0xe]
        %v3513 = vld [vmem:[%s1152 + $0x84] sm:$0xe]
        %v3514 = vld [vmem:[%s1152 + $0x90] sm:$0xe]
        %v3515 = vld [vmem:[%s1152 + $0x9c] sm:$0xe]
        %v3516 = vld [vmem:[%s1152 + $0xa8] sm:$0xe]
        %v3517 = vld [vmem:[%s1152 + $0xb4] sm:$0xe]
        %v3566 = vrot.slane %v3502, 5
        %v3567 = vrot.slane %v3566, 4
        %v3568 = vrot.slane %v2837, 5
        %v3569 = vsel %vm2191, %v3567, %v3568
        %v3570 = vrot.slane %v3568, 4
        %v3571 = vrot.slane %v2838, 5
        %v3572 = vsel %vm2191, %v3570, %v3571
        %v3573 = vrot.slane %v3503, 5
        %v3574 = vrot.slane %v3573, 4
        %v3575 = vrot.slane %v2840, 5
        %v3576 = vsel %vm2191, %v3574, %v3575
        %v3577 = vrot.slane %v3575, 4
        %v3578 = vrot.slane %v2841, 5
        %v3579 = vsel %vm2191, %v3577, %v3578
        %v3580 = vrot.slane %v3504, 5
        %v3581 = vrot.slane %v3580, 4
        %v3582 = vrot.slane %v2843, 5
        %v3583 = vsel %vm2191, %v3581, %v3582
        %v3584 = vrot.slane %v3582, 4
        %v3585 = vrot.slane %v2844, 5
        %v3586 = vsel %vm2191, %v3584, %v3585
        %v3587 = vrot.slane %v3505, 5
        %v3588 = vrot.slane %v3587, 4
        %v3589 = vrot.slane %v2846, 5
        %v3590 = vsel %vm2191, %v3588, %v3589
        %v3591 = vrot.slane %v3589, 4
        %v3592 = vrot.slane %v2847, 5
        %v3593 = vsel %vm2191, %v3591, %v3592
        %v3594 = vrot.slane %v3506, 5
        %v3595 = vrot.slane %v3594, 4
        %v3596 = vrot.slane %v2849, 5
        %v3597 = vsel %vm2191, %v3595, %v3596
        %v3598 = vrot.slane %v3596, 4
        %v3599 = vrot.slane %v2850, 5
        %v3600 = vsel %vm2191, %v3598, %v3599
        %v3601 = vrot.slane %v3507, 5
        %v3602 = vrot.slane %v3601, 4
        %v3603 = vrot.slane %v2852, 5
        %v3604 = vsel %vm2191, %v3602, %v3603
        %v3605 = vrot.slane %v3603, 4
        %v3606 = vrot.slane %v2853, 5
        %v3607 = vsel %vm2191, %v3605, %v3606
        %v3608 = vrot.slane %v3508, 5
        %v3609 = vrot.slane %v3608, 4
        %v3610 = vrot.slane %v2855, 5
        %v3611 = vsel %vm2191, %v3609, %v3610
        %v3612 = vrot.slane %v3610, 4
        %v3613 = vrot.slane %v2856, 5
        %v3614 = vsel %vm2191, %v3612, %v3613
        %v3615 = vrot.slane %v3509, 5
        %v3616 = vrot.slane %v3615, 4
        %v3617 = vrot.slane %v2858, 5
        %v3618 = vsel %vm2191, %v3616, %v3617
        %v3619 = vrot.slane %v3617, 4
        %v3620 = vrot.slane %v2859, 5
        %v3621 = vsel %vm2191, %v3619, %v3620
        %v3622 = vrot.slane %v3510, 5
        %v3623 = vrot.slane %v3622, 4
        %v3624 = vrot.slane %v2861, 5
        %v3625 = vsel %vm2191, %v3623, %v3624
        %v3626 = vrot.slane %v3624, 4
        %v3627 = vrot.slane %v2862, 5
        %v3628 = vsel %vm2191, %v3626, %v3627
        %v3629 = vrot.slane %v3511, 5
        %v3630 = vrot.slane %v3629, 4
        %v3631 = vrot.slane %v2864, 5
        %v3632 = vsel %vm2191, %v3630, %v3631
        %v3633 = vrot.slane %v3631, 4
        %v3634 = vrot.slane %v2865, 5
        %v3635 = vsel %vm2191, %v3633, %v3634
        %v3636 = vrot.slane %v3512, 5
        %v3637 = vrot.slane %v3636, 4
        %v3638 = vrot.slane %v2867, 5
        %v3639 = vsel %vm2191, %v3637, %v3638
        %v3640 = vrot.slane %v3638, 4
        %v3641 = vrot.slane %v2868, 5
        %v3642 = vsel %vm2191, %v3640, %v3641
        %v3643 = vrot.slane %v3513, 5
        %v3644 = vrot.slane %v3643, 4
        %v3645 = vrot.slane %v2870, 5
        %v3646 = vsel %vm2191, %v3644, %v3645
        %v3647 = vrot.slane %v3645, 4
        %v3648 = vrot.slane %v2871, 5
        %v3649 = vsel %vm2191, %v3647, %v3648
        %v3650 = vrot.slane %v3514, 5
        %v3651 = vrot.slane %v3650, 4
        %v3652 = vrot.slane %v2873, 5
        %v3653 = vsel %vm2191, %v3651, %v3652
        %v3654 = vrot.slane %v3652, 4
        %v3655 = vrot.slane %v2874, 5
        %v3656 = vsel %vm2191, %v3654, %v3655
        %v3657 = vrot.slane %v3515, 5
        %v3658 = vrot.slane %v3657, 4
        %v3659 = vrot.slane %v2876, 5
        %v3660 = vsel %vm2191, %v3658, %v3659
        %v3661 = vrot.slane %v3659, 4
        %v3662 = vrot.slane %v2877, 5
        %v3663 = vsel %vm2191, %v3661, %v3662
        %v3664 = vrot.slane %v3516, 5
        %v3665 = vrot.slane %v3664, 4
        %v3666 = vrot.slane %v2879, 5
        %v3667 = vsel %vm2191, %v3665, %v3666
        %v3668 = vrot.slane %v3666, 4
        %v3669 = vrot.slane %v2880, 5
        %v3670 = vsel %vm2191, %v3668, %v3669
        %v3671 = vrot.slane %v3517, 5
        %v3672 = vrot.slane %v3671, 4
        %v3673 = vrot.slane %v2882, 5
        %v3674 = vsel %vm2191, %v3672, %v3673
        %v3675 = vrot.slane %v3673, 4
        %v3676 = vrot.slane %v2883, 5
        %v3677 = vsel %vm2191, %v3675, %v3676
        %s3678 = scalar_lea.vmem %s3, 80
        %v3679 = vld [vmem:[%s3678] sm:$0xf]
        %v3680 = vld [vmem:[%s3678 + $0x4] sm:$0xf]
        %v3681 = vld [vmem:[%s3678 + $0x8] sm:$0xf]
        %v3682 = vld [vmem:[%s3678 + $0xc] sm:$0xf]
        %v3683 = vunpack.c.l.b16 %v3569
        %v3684 = vunpack.c.l.b16 %v3572
        %v3685 = vunpack.c.l.b16 %v3576
        %v3686 = vunpack.c.l.b16 %v3579
        %v3687 = vunpack.c.l.b16 %v3583
        %v3688 = vunpack.c.l.b16 %v3586
        %v3689 = vunpack.c.l.b16 %v3590
        %v3690 = vunpack.c.l.b16 %v3593
        %v3691 = vunpack.c.l.b16 %v3597
        %v3692 = vunpack.c.l.b16 %v3600
        %v3693 = vunpack.c.l.b16 %v3604
        %v3694 = vunpack.c.l.b16 %v3607
        %v3695 = vunpack.c.l.b16 %v3611
        %v3696 = vunpack.c.l.b16 %v3614
        %v3697 = vunpack.c.l.b16 %v3618
        %v3698 = vunpack.c.l.b16 %v3621
        %v3699 = vunpack.c.l.b16 %v3625
        %v3700 = vunpack.c.l.b16 %v3628
        %v3701 = vunpack.c.l.b16 %v3632
        %v3702 = vunpack.c.l.b16 %v3635
        %v3703 = vunpack.c.l.b16 %v3639
        %v3704 = vunpack.c.l.b16 %v3642
        %v3705 = vunpack.c.l.b16 %v3646
        %v3706 = vunpack.c.l.b16 %v3649
        %v3707 = vunpack.c.l.b16 %v3653
        %v3708 = vunpack.c.l.b16 %v3656
        %v3709 = vunpack.c.l.b16 %v3660
        %v3710 = vunpack.c.l.b16 %v3663
        %v3711 = vunpack.c.l.b16 %v3667
        %v3712 = vunpack.c.l.b16 %v3670
        %v3713 = vunpack.c.l.b16 %v3674
        %v3714 = vunpack.c.l.b16 %v3677
        %v3715 = vpack.c.b16 %v3684, %v3683
        %v3716 = vpack.c.b16 %v3686, %v3685
        %v3717 = vpack.c.b16 %v3688, %v3687
        %v3718 = vpack.c.b16 %v3690, %v3689
        %v3719 = vpack.c.b16 %v3692, %v3691
        %v3720 = vpack.c.b16 %v3694, %v3693
        %v3721 = vpack.c.b16 %v3696, %v3695
        %v3722 = vpack.c.b16 %v3698, %v3697
        %v3723 = vpack.c.b16 %v3700, %v3699
        %v3724 = vpack.c.b16 %v3702, %v3701
        %v3725 = vpack.c.b16 %v3704, %v3703
        %v3726 = vpack.c.b16 %v3706, %v3705
        %v3727 = vpack.c.b16 %v3708, %v3707
        %v3728 = vpack.c.b16 %v3710, %v3709
        %v3729 = vpack.c.b16 %v3712, %v3711
        %v3730 = vpack.c.b16 %v3714, %v3713
        %v3735 = vunpack.c.l.b16 %v3679
        %v3736 = vunpack.c.l.b16 %v3680
        %v3737 = vunpack.c.l.b16 %v3681
        %v3738 = vunpack.c.l.b16 %v3682
        %v3739 = vpack.c.b16 %v3736, %v3735
        %v3740 = vpack.c.b16 %v3738, %v3737
        %v3744 = vsel %vm1774, %v3715, 0
        %v3747 = vsel %vm1774, %v3716, 0
        %v3750 = vsel %vm1774, %v3717, 0
        %v3753 = vsel %vm1774, %v3718, 0
        %v3756 = vsel %vm1774, %v3719, 0
        %v3759 = vsel %vm1774, %v3720, 0
        %v3762 = vsel %vm1774, %v3721, 0
        %v3765 = vsel %vm1774, %v3722, 0
        %v3768 = vsel %vm1774, %v3723, 0
        %v3771 = vsel %vm1774, %v3724, 0
        %v3774 = vsel %vm1774, %v3725, 0
        %v3777 = vsel %vm1774, %v3726, 0
        %v3780 = vsel %vm1774, %v3727, 0
        %v3783 = vsel %vm1774, %v3728, 0
        %v3786 = vsel %vm1774, %v3729, 0
        %v3789 = vsel %vm1774, %v3730, 0
        %3791 = vmatpush.bf16.msra.mxu0 0
        %3792 = vmatpush.bf16.msra.mxu0 0
        %3793 = vmatpush.bf16.msra.mxu0 0
        %3794 = vmatpush.bf16.msra.mxu0 0
        %3795 = vmatpush.bf16.msra.mxu0 0
        %3796 = vmatpush.bf16.msra.mxu0 0
        %3797 = vmatpush.bf16.msra.mxu0 %v3740
        %3798 = vmatpush.bf16.msra.mxu0 %v3739
        %3799 = vmatmul.bf16.gmra.mxu0 %v3744
        %v3800 = vpop.f32.mrf.mxu0
        %v3801 = vadd.f32 0.0, %v3800
        %v3802 = vpop.f32.mrf.mxu0
        %v3803 = vadd.f32 0.0, %v3802
        %3804 = vmatmul.bf16.gmra.mxu0 %v3747
        %v3805 = vpop.f32.mrf.mxu0
        %v3806 = vadd.f32 0.0, %v3805
        %v3807 = vpop.f32.mrf.mxu0
        %v3808 = vadd.f32 0.0, %v3807
        %3809 = vmatmul.bf16.gmra.mxu0 %v3750
        %v3810 = vpop.f32.mrf.mxu0
        %v3811 = vadd.f32 0.0, %v3810
        %v3812 = vpop.f32.mrf.mxu0
        %v3813 = vadd.f32 0.0, %v3812
        %3814 = vmatmul.bf16.gmra.mxu0 %v3753
        %v3815 = vpop.f32.mrf.mxu0
        %v3816 = vadd.f32 0.0, %v3815
        %v3817 = vpop.f32.mrf.mxu0
        %v3818 = vadd.f32 0.0, %v3817
        %3819 = vmatmul.bf16.gmra.mxu0 %v3756
        %v3820 = vpop.f32.mrf.mxu0
        %v3821 = vadd.f32 0.0, %v3820
        %v3822 = vpop.f32.mrf.mxu0
        %v3823 = vadd.f32 0.0, %v3822
        %3824 = vmatmul.bf16.gmra.mxu0 %v3759
        %v3825 = vpop.f32.mrf.mxu0
        %v3826 = vadd.f32 0.0, %v3825
        %v3827 = vpop.f32.mrf.mxu0
        %v3828 = vadd.f32 0.0, %v3827
        %3829 = vmatmul.bf16.gmra.mxu0 %v3762
        %v3830 = vpop.f32.mrf.mxu0
        %v3831 = vadd.f32 0.0, %v3830
        %v3832 = vpop.f32.mrf.mxu0
        %v3833 = vadd.f32 0.0, %v3832
        %3834 = vmatmul.bf16.gmra.mxu0 %v3765
        %v3835 = vpop.f32.mrf.mxu0
        %v3836 = vadd.f32 0.0, %v3835
        %v3837 = vpop.f32.mrf.mxu0
        %v3838 = vadd.f32 0.0, %v3837
        %3839 = vmatmul.bf16.gmra.mxu0 %v3768
        %v3840 = vpop.f32.mrf.mxu0
        %v3841 = vadd.f32 0.0, %v3840
        %v3842 = vpop.f32.mrf.mxu0
        %v3843 = vadd.f32 0.0, %v3842
        %3844 = vmatmul.bf16.gmra.mxu0 %v3771
        %v3845 = vpop.f32.mrf.mxu0
        %v3846 = vadd.f32 0.0, %v3845
        %v3847 = vpop.f32.mrf.mxu0
        %v3848 = vadd.f32 0.0, %v3847
        %3849 = vmatmul.bf16.gmra.mxu0 %v3774
        %v3850 = vpop.f32.mrf.mxu0
        %v3851 = vadd.f32 0.0, %v3850
        %v3852 = vpop.f32.mrf.mxu0
        %v3853 = vadd.f32 0.0, %v3852
        %3854 = vmatmul.bf16.gmra.mxu0 %v3777
        %v3855 = vpop.f32.mrf.mxu0
        %v3856 = vadd.f32 0.0, %v3855
        %v3857 = vpop.f32.mrf.mxu0
        %v3858 = vadd.f32 0.0, %v3857
        %3859 = vmatmul.bf16.gmra.mxu0 %v3780
        %v3860 = vpop.f32.mrf.mxu0
        %v3861 = vadd.f32 0.0, %v3860
        %v3862 = vpop.f32.mrf.mxu0
        %v3863 = vadd.f32 0.0, %v3862
        %3864 = vmatmul.bf16.gmra.mxu0 %v3783
        %v3865 = vpop.f32.mrf.mxu0
        %v3866 = vadd.f32 0.0, %v3865
        %v3867 = vpop.f32.mrf.mxu0
        %v3868 = vadd.f32 0.0, %v3867
        %3869 = vmatmul.bf16.gmra.mxu0 %v3786
        %v3870 = vpop.f32.mrf.mxu0
        %v3871 = vadd.f32 0.0, %v3870
        %v3872 = vpop.f32.mrf.mxu0
        %v3873 = vadd.f32 0.0, %v3872
        %3874 = vmatmul.bf16.gmra.mxu0 %v3789
        %v3875 = vpop.f32.mrf.mxu0
        %v3876 = vadd.f32 0.0, %v3875
        %v3877 = vpop.f32.mrf.mxu0
        %v3878 = vadd.f32 0.0, %v3877
        %3879 = vdwg.mxu0
        %v3880 = vadd.f32 %v3470, %v3801
        %v3881 = vadd.f32 %v3471, %v3803
        %v3882 = vadd.f32 %v3472, %v3806
        %v3883 = vadd.f32 %v3473, %v3808
        %v3884 = vadd.f32 %v3474, %v3811
        %v3885 = vadd.f32 %v3475, %v3813
        %v3886 = vadd.f32 %v3476, %v3816
        %v3887 = vadd.f32 %v3477, %v3818
        %v3888 = vadd.f32 %v3478, %v3821
        %v3889 = vadd.f32 %v3479, %v3823
        %v3890 = vadd.f32 %v3480, %v3826
        %v3891 = vadd.f32 %v3481, %v3828
        %v3892 = vadd.f32 %v3482, %v3831
        %v3893 = vadd.f32 %v3483, %v3833
        %v3894 = vadd.f32 %v3484, %v3836
        %v3895 = vadd.f32 %v3485, %v3838
        %v3896 = vadd.f32 %v3486, %v3841
        %v3897 = vadd.f32 %v3487, %v3843
        %v3898 = vadd.f32 %v3488, %v3846
        %v3899 = vadd.f32 %v3489, %v3848
        %v3900 = vadd.f32 %v3490, %v3851
        %v3901 = vadd.f32 %v3491, %v3853
        %v3902 = vadd.f32 %v3492, %v3856
        %v3903 = vadd.f32 %v3493, %v3858
        %v3904 = vadd.f32 %v3494, %v3861
        %v3905 = vadd.f32 %v3495, %v3863
        %v3906 = vadd.f32 %v3496, %v3866
        %v3907 = vadd.f32 %v3497, %v3868
        %v3908 = vadd.f32 %v3498, %v3871
        %v3909 = vadd.f32 %v3499, %v3873
        %v3910 = vadd.f32 %v3500, %v3876
        %v3911 = vadd.f32 %v3501, %v3878
        %s3912 = scalar_lea.vmem [#allocation2], 24
        %v3913 = vld [vmem:[%s3912] sm:$0xf]
        %v3914 = vld [vmem:[%s3912 + $0x4] sm:$0xf]
        %v3915 = vld [vmem:[%s3912 + $0xc] sm:$0xf]
        %v3916 = vld [vmem:[%s3912 + $0x10] sm:$0xf]
        %v3917 = vld [vmem:[%s3912 + $0x18] sm:$0xf]
        %v3918 = vld [vmem:[%s3912 + $0x1c] sm:$0xf]
        %v3919 = vld [vmem:[%s3912 + $0x24] sm:$0xf]
        %v3920 = vld [vmem:[%s3912 + $0x28] sm:$0xf]
        %v3921 = vld [vmem:[%s3912 + $0x30] sm:$0xf]
        %v3922 = vld [vmem:[%s3912 + $0x34] sm:$0xf]
        %v3923 = vld [vmem:[%s3912 + $0x3c] sm:$0xf]
        %v3924 = vld [vmem:[%s3912 + $0x40] sm:$0xf]
        %v3925 = vld [vmem:[%s3912 + $0x48] sm:$0xf]
        %v3926 = vld [vmem:[%s3912 + $0x4c] sm:$0xf]
        %v3927 = vld [vmem:[%s3912 + $0x54] sm:$0xf]
        %v3928 = vld [vmem:[%s3912 + $0x58] sm:$0xf]
        %v3929 = vld [vmem:[%s3912 + $0x60] sm:$0xf]
        %v3930 = vld [vmem:[%s3912 + $0x64] sm:$0xf]
        %v3931 = vld [vmem:[%s3912 + $0x6c] sm:$0xf]
        %v3932 = vld [vmem:[%s3912 + $0x70] sm:$0xf]
        %v3933 = vld [vmem:[%s3912 + $0x78] sm:$0xf]
        %v3934 = vld [vmem:[%s3912 + $0x7c] sm:$0xf]
        %v3935 = vld [vmem:[%s3912 + $0x84] sm:$0xf]
        %v3936 = vld [vmem:[%s3912 + $0x88] sm:$0xf]
        %v3937 = vld [vmem:[%s3912 + $0x90] sm:$0xf]
        %v3938 = vld [vmem:[%s3912 + $0x94] sm:$0xf]
        %v3939 = vld [vmem:[%s3912 + $0x9c] sm:$0xf]
        %v3940 = vld [vmem:[%s3912 + $0xa0] sm:$0xf]
        %v3941 = vld [vmem:[%s3912 + $0xa8] sm:$0xf]
        %v3942 = vld [vmem:[%s3912 + $0xac] sm:$0xf]
        %v3943 = vld [vmem:[%s3912 + $0xb4] sm:$0xf]
        %v3944 = vld [vmem:[%s3912 + $0xb8] sm:$0xf]
        %s3945 = scalar_lea.vmem %s3, 96
        %v3946 = vld [vmem:[%s3945] sm:$0xf]
        %v3947 = vld [vmem:[%s3945 + $0x4] sm:$0xf]
        %v3948 = vld [vmem:[%s3945 + $0x8] sm:$0xf]
        %v3949 = vld [vmem:[%s3945 + $0xc] sm:$0xf]
        %v3982 = vunpack.c.l.b16 %v3913
        %v3983 = vunpack.c.l.b16 %v3914
        %v3984 = vunpack.c.l.b16 %v3915
        %v3985 = vunpack.c.l.b16 %v3916
        %v3986 = vunpack.c.l.b16 %v3917
        %v3987 = vunpack.c.l.b16 %v3918
        %v3988 = vunpack.c.l.b16 %v3919
        %v3989 = vunpack.c.l.b16 %v3920
        %v3990 = vunpack.c.l.b16 %v3921
        %v3991 = vunpack.c.l.b16 %v3922
        %v3992 = vunpack.c.l.b16 %v3923
        %v3993 = vunpack.c.l.b16 %v3924
        %v3994 = vunpack.c.l.b16 %v3925
        %v3995 = vunpack.c.l.b16 %v3926
        %v3996 = vunpack.c.l.b16 %v3927
        %v3997 = vunpack.c.l.b16 %v3928
        %v3998 = vunpack.c.l.b16 %v3929
        %v3999 = vunpack.c.l.b16 %v3930
        %v4000 = vunpack.c.l.b16 %v3931
        %v4001 = vunpack.c.l.b16 %v3932
        %v4002 = vunpack.c.l.b16 %v3933
        %v4003 = vunpack.c.l.b16 %v3934
        %v4004 = vunpack.c.l.b16 %v3935
        %v4005 = vunpack.c.l.b16 %v3936
        %v4006 = vunpack.c.l.b16 %v3937
        %v4007 = vunpack.c.l.b16 %v3938
        %v4008 = vunpack.c.l.b16 %v3939
        %v4009 = vunpack.c.l.b16 %v3940
        %v4010 = vunpack.c.l.b16 %v3941
        %v4011 = vunpack.c.l.b16 %v3942
        %v4012 = vunpack.c.l.b16 %v3943
        %v4013 = vunpack.c.l.b16 %v3944
        %v4014 = vpack.c.b16 %v3983, %v3982
        %v4015 = vpack.c.b16 %v3985, %v3984
        %v4016 = vpack.c.b16 %v3987, %v3986
        %v4017 = vpack.c.b16 %v3989, %v3988
        %v4018 = vpack.c.b16 %v3991, %v3990
        %v4019 = vpack.c.b16 %v3993, %v3992
        %v4020 = vpack.c.b16 %v3995, %v3994
        %v4021 = vpack.c.b16 %v3997, %v3996
        %v4022 = vpack.c.b16 %v3999, %v3998
        %v4023 = vpack.c.b16 %v4001, %v4000
        %v4024 = vpack.c.b16 %v4003, %v4002
        %v4025 = vpack.c.b16 %v4005, %v4004
        %v4026 = vpack.c.b16 %v4007, %v4006
        %v4027 = vpack.c.b16 %v4009, %v4008
        %v4028 = vpack.c.b16 %v4011, %v4010
        %v4029 = vpack.c.b16 %v4013, %v4012
        %v4034 = vunpack.c.l.b16 %v3946
        %v4035 = vunpack.c.l.b16 %v3947
        %v4036 = vunpack.c.l.b16 %v3948
        %v4037 = vunpack.c.l.b16 %v3949
        %v4038 = vpack.c.b16 %v4035, %v4034
        %v4039 = vpack.c.b16 %v4037, %v4036
        %v4043 = vsel %vm1774, %v4014, 0
        %v4046 = vsel %vm1774, %v4015, 0
        %v4049 = vsel %vm1774, %v4016, 0
        %v4052 = vsel %vm1774, %v4017, 0
        %v4055 = vsel %vm1774, %v4018, 0
        %v4058 = vsel %vm1774, %v4019, 0
        %v4061 = vsel %vm1774, %v4020, 0
        %v4064 = vsel %vm1774, %v4021, 0
        %v4067 = vsel %vm1774, %v4022, 0
        %v4070 = vsel %vm1774, %v4023, 0
        %v4073 = vsel %vm1774, %v4024, 0
        %v4076 = vsel %vm1774, %v4025, 0
        %v4079 = vsel %vm1774, %v4026, 0
        %v4082 = vsel %vm1774, %v4027, 0
        %v4085 = vsel %vm1774, %v4028, 0
        %v4088 = vsel %vm1774, %v4029, 0
        %4090 = vmatpush.bf16.msra.mxu0 0
        %4091 = vmatpush.bf16.msra.mxu0 0
        %4092 = vmatpush.bf16.msra.mxu0 0
        %4093 = vmatpush.bf16.msra.mxu0 0
        %4094 = vmatpush.bf16.msra.mxu0 0
        %4095 = vmatpush.bf16.msra.mxu0 0
        %4096 = vmatpush.bf16.msra.mxu0 %v4039
        %4097 = vmatpush.bf16.msra.mxu0 %v4038
        %4098 = vmatmul.bf16.gmra.mxu0 %v4043
        %v4099 = vpop.f32.mrf.mxu0
        %v4100 = vadd.f32 0.0, %v4099
        %v4101 = vpop.f32.mrf.mxu0
        %v4102 = vadd.f32 0.0, %v4101
        %4103 = vmatmul.bf16.gmra.mxu0 %v4046
        %v4104 = vpop.f32.mrf.mxu0
        %v4105 = vadd.f32 0.0, %v4104
        %v4106 = vpop.f32.mrf.mxu0
        %v4107 = vadd.f32 0.0, %v4106
        %4108 = vmatmul.bf16.gmra.mxu0 %v4049
        %v4109 = vpop.f32.mrf.mxu0
        %v4110 = vadd.f32 0.0, %v4109
        %v4111 = vpop.f32.mrf.mxu0
        %v4112 = vadd.f32 0.0, %v4111
        %4113 = vmatmul.bf16.gmra.mxu0 %v4052
        %v4114 = vpop.f32.mrf.mxu0
        %v4115 = vadd.f32 0.0, %v4114
        %v4116 = vpop.f32.mrf.mxu0
        %v4117 = vadd.f32 0.0, %v4116
        %4118 = vmatmul.bf16.gmra.mxu0 %v4055
        %v4119 = vpop.f32.mrf.mxu0
        %v4120 = vadd.f32 0.0, %v4119
        %v4121 = vpop.f32.mrf.mxu0
        %v4122 = vadd.f32 0.0, %v4121
        %4123 = vmatmul.bf16.gmra.mxu0 %v4058
        %v4124 = vpop.f32.mrf.mxu0
        %v4125 = vadd.f32 0.0, %v4124
        %v4126 = vpop.f32.mrf.mxu0
        %v4127 = vadd.f32 0.0, %v4126
        %4128 = vmatmul.bf16.gmra.mxu0 %v4061
        %v4129 = vpop.f32.mrf.mxu0
        %v4130 = vadd.f32 0.0, %v4129
        %v4131 = vpop.f32.mrf.mxu0
        %v4132 = vadd.f32 0.0, %v4131
        %4133 = vmatmul.bf16.gmra.mxu0 %v4064
        %v4134 = vpop.f32.mrf.mxu0
        %v4135 = vadd.f32 0.0, %v4134
        %v4136 = vpop.f32.mrf.mxu0
        %v4137 = vadd.f32 0.0, %v4136
        %4138 = vmatmul.bf16.gmra.mxu0 %v4067
        %v4139 = vpop.f32.mrf.mxu0
        %v4140 = vadd.f32 0.0, %v4139
        %v4141 = vpop.f32.mrf.mxu0
        %v4142 = vadd.f32 0.0, %v4141
        %4143 = vmatmul.bf16.gmra.mxu0 %v4070
        %v4144 = vpop.f32.mrf.mxu0
        %v4145 = vadd.f32 0.0, %v4144
        %v4146 = vpop.f32.mrf.mxu0
        %v4147 = vadd.f32 0.0, %v4146
        %4148 = vmatmul.bf16.gmra.mxu0 %v4073
        %v4149 = vpop.f32.mrf.mxu0
        %v4150 = vadd.f32 0.0, %v4149
        %v4151 = vpop.f32.mrf.mxu0
        %v4152 = vadd.f32 0.0, %v4151
        %4153 = vmatmul.bf16.gmra.mxu0 %v4076
        %v4154 = vpop.f32.mrf.mxu0
        %v4155 = vadd.f32 0.0, %v4154
        %v4156 = vpop.f32.mrf.mxu0
        %v4157 = vadd.f32 0.0, %v4156
        %4158 = vmatmul.bf16.gmra.mxu0 %v4079
        %v4159 = vpop.f32.mrf.mxu0
        %v4160 = vadd.f32 0.0, %v4159
        %v4161 = vpop.f32.mrf.mxu0
        %v4162 = vadd.f32 0.0, %v4161
        %4163 = vmatmul.bf16.gmra.mxu0 %v4082
        %v4164 = vpop.f32.mrf.mxu0
        %v4165 = vadd.f32 0.0, %v4164
        %v4166 = vpop.f32.mrf.mxu0
        %v4167 = vadd.f32 0.0, %v4166
        %4168 = vmatmul.bf16.gmra.mxu0 %v4085
        %v4169 = vpop.f32.mrf.mxu0
        %v4170 = vadd.f32 0.0, %v4169
        %v4171 = vpop.f32.mrf.mxu0
        %v4172 = vadd.f32 0.0, %v4171
        %4173 = vmatmul.bf16.gmra.mxu0 %v4088
        %v4174 = vpop.f32.mrf.mxu0
        %v4175 = vadd.f32 0.0, %v4174
        %v4176 = vpop.f32.mrf.mxu0
        %v4177 = vadd.f32 0.0, %v4176
        %4178 = vdwg.mxu0
        %v4179 = vadd.f32 %v3880, %v4100
        %v4180 = vadd.f32 %v3881, %v4102
        %v4181 = vadd.f32 %v3882, %v4105
        %v4182 = vadd.f32 %v3883, %v4107
        %v4183 = vadd.f32 %v3884, %v4110
        %v4184 = vadd.f32 %v3885, %v4112
        %v4185 = vadd.f32 %v3886, %v4115
        %v4186 = vadd.f32 %v3887, %v4117
        %v4187 = vadd.f32 %v3888, %v4120
        %v4188 = vadd.f32 %v3889, %v4122
        %v4189 = vadd.f32 %v3890, %v4125
        %v4190 = vadd.f32 %v3891, %v4127
        %v4191 = vadd.f32 %v3892, %v4130
        %v4192 = vadd.f32 %v3893, %v4132
        %v4193 = vadd.f32 %v3894, %v4135
        %v4194 = vadd.f32 %v3895, %v4137
        %v4195 = vadd.f32 %v3896, %v4140
        %v4196 = vadd.f32 %v3897, %v4142
        %v4197 = vadd.f32 %v3898, %v4145
        %v4198 = vadd.f32 %v3899, %v4147
        %v4199 = vadd.f32 %v3900, %v4150
        %v4200 = vadd.f32 %v3901, %v4152
        %v4201 = vadd.f32 %v3902, %v4155
        %v4202 = vadd.f32 %v3903, %v4157
        %v4203 = vadd.f32 %v3904, %v4160
        %v4204 = vadd.f32 %v3905, %v4162
        %v4205 = vadd.f32 %v3906, %v4165
        %v4206 = vadd.f32 %v3907, %v4167
        %v4207 = vadd.f32 %v3908, %v4170
        %v4208 = vadd.f32 %v3909, %v4172
        %v4209 = vadd.f32 %v3910, %v4175
        %v4210 = vadd.f32 %v3911, %v4177
        %v4211 = vld [vmem:[%s3912] sm:$0xf]
        %v4212 = vld [vmem:[%s3912 + $0x4] sm:$0xf]
        %v4213 = vld [vmem:[%s3912 + $0x8] sm:$0x1]
        %v4214 = vld [vmem:[%s3912 + $0xc] sm:$0xf]
        %v4215 = vld [vmem:[%s3912 + $0x10] sm:$0xf]
        %v4216 = vld [vmem:[%s3912 + $0x14] sm:$0x1]
        %v4217 = vld [vmem:[%s3912 + $0x18] sm:$0xf]
        %v4218 = vld [vmem:[%s3912 + $0x1c] sm:$0xf]
        %v4219 = vld [vmem:[%s3912 + $0x20] sm:$0x1]
        %v4220 = vld [vmem:[%s3912 + $0x24] sm:$0xf]
        %v4221 = vld [vmem:[%s3912 + $0x28] sm:$0xf]
        %v4222 = vld [vmem:[%s3912 + $0x2c] sm:$0x1]
        %v4223 = vld [vmem:[%s3912 + $0x30] sm:$0xf]
        %v4224 = vld [vmem:[%s3912 + $0x34] sm:$0xf]
        %v4225 = vld [vmem:[%s3912 + $0x38] sm:$0x1]
        %v4226 = vld [vmem:[%s3912 + $0x3c] sm:$0xf]
        %v4227 = vld [vmem:[%s3912 + $0x40] sm:$0xf]
        %v4228 = vld [vmem:[%s3912 + $0x44] sm:$0x1]
        %v4229 = vld [vmem:[%s3912 + $0x48] sm:$0xf]
        %v4230 = vld [vmem:[%s3912 + $0x4c] sm:$0xf]
        %v4231 = vld [vmem:[%s3912 + $0x50] sm:$0x1]
        %v4232 = vld [vmem:[%s3912 + $0x54] sm:$0xf]
        %v4233 = vld [vmem:[%s3912 + $0x58] sm:$0xf]
        %v4234 = vld [vmem:[%s3912 + $0x5c] sm:$0x1]
        %v4235 = vld [vmem:[%s3912 + $0x60] sm:$0xf]
        %v4236 = vld [vmem:[%s3912 + $0x64] sm:$0xf]
        %v4237 = vld [vmem:[%s3912 + $0x68] sm:$0x1]
        %v4238 = vld [vmem:[%s3912 + $0x6c] sm:$0xf]
        %v4239 = vld [vmem:[%s3912 + $0x70] sm:$0xf]
        %v4240 = vld [vmem:[%s3912 + $0x74] sm:$0x1]
        %v4241 = vld [vmem:[%s3912 + $0x78] sm:$0xf]
        %v4242 = vld [vmem:[%s3912 + $0x7c] sm:$0xf]
        %v4243 = vld [vmem:[%s3912 + $0x80] sm:$0x1]
        %v4244 = vld [vmem:[%s3912 + $0x84] sm:$0xf]
        %v4245 = vld [vmem:[%s3912 + $0x88] sm:$0xf]
        %v4246 = vld [vmem:[%s3912 + $0x8c] sm:$0x1]
        %v4247 = vld [vmem:[%s3912 + $0x90] sm:$0xf]
        %v4248 = vld [vmem:[%s3912 + $0x94] sm:$0xf]
        %v4249 = vld [vmem:[%s3912 + $0x98] sm:$0x1]
        %v4250 = vld [vmem:[%s3912 + $0x9c] sm:$0xf]
        %v4251 = vld [vmem:[%s3912 + $0xa0] sm:$0xf]
        %v4252 = vld [vmem:[%s3912 + $0xa4] sm:$0x1]
        %v4253 = vld [vmem:[%s3912 + $0xa8] sm:$0xf]
        %v4254 = vld [vmem:[%s3912 + $0xac] sm:$0xf]
        %v4255 = vld [vmem:[%s3912 + $0xb0] sm:$0x1]
        %v4256 = vld [vmem:[%s3912 + $0xb4] sm:$0xf]
        %v4257 = vld [vmem:[%s3912 + $0xb8] sm:$0xf]
        %v4258 = vld [vmem:[%s3912 + $0xbc] sm:$0x1]
        %v4260 = vshrl.u32 %v4211, 16
        %v4262 = vrot.slane %v4260, 4
        %v4263 = vshll.u32 %v4211, 16
        %v4265 = vrot.slane %v4263, 5
        %v4266 = vor.u32 %v4262, %v4265
        %v4267 = vrot.slane %v4266, 4
        %v4269 = vshll.u32 %v4212, 16
        %v4271 = vrot.slane %v4269, 5
        %v4272 = vsel %vm1324, %v4267, %v4271
        %v4273 = vshrl.u32 %v4212, 16
        %v4275 = vrot.slane %v4273, 4
        %v4276 = vor.u32 %v4275, %v4271
        %v4277 = vrot.slane %v4276, 4
        %v4279 = vshll.u32 %v4213, 16
        %v4281 = vrot.slane %v4279, 5
        %v4282 = vsel %vm1324, %v4277, %v4281
        %v4284 = vshrl.u32 %v4214, 16
        %v4286 = vrot.slane %v4284, 4
        %v4287 = vshll.u32 %v4214, 16
        %v4289 = vrot.slane %v4287, 5
        %v4290 = vor.u32 %v4286, %v4289
        %v4291 = vrot.slane %v4290, 4
        %v4293 = vshll.u32 %v4215, 16
        %v4295 = vrot.slane %v4293, 5
        %v4296 = vsel %vm1324, %v4291, %v4295
        %v4297 = vshrl.u32 %v4215, 16
        %v4299 = vrot.slane %v4297, 4
        %v4300 = vor.u32 %v4299, %v4295
        %v4301 = vrot.slane %v4300, 4
        %v4303 = vshll.u32 %v4216, 16
        %v4305 = vrot.slane %v4303, 5
        %v4306 = vsel %vm1324, %v4301, %v4305
        %v4308 = vshrl.u32 %v4217, 16
        %v4310 = vrot.slane %v4308, 4
        %v4311 = vshll.u32 %v4217, 16
        %v4313 = vrot.slane %v4311, 5
        %v4314 = vor.u32 %v4310, %v4313
        %v4315 = vrot.slane %v4314, 4
        %v4317 = vshll.u32 %v4218, 16
        %v4319 = vrot.slane %v4317, 5
        %v4320 = vsel %vm1324, %v4315, %v4319
        %v4321 = vshrl.u32 %v4218, 16
        %v4323 = vrot.slane %v4321, 4
        %v4324 = vor.u32 %v4323, %v4319
        %v4325 = vrot.slane %v4324, 4
        %v4327 = vshll.u32 %v4219, 16
        %v4329 = vrot.slane %v4327, 5
        %v4330 = vsel %vm1324, %v4325, %v4329
        %v4332 = vshrl.u32 %v4220, 16
        %v4334 = vrot.slane %v4332, 4
        %v4335 = vshll.u32 %v4220, 16
        %v4337 = vrot.slane %v4335, 5
        %v4338 = vor.u32 %v4334, %v4337
        %v4339 = vrot.slane %v4338, 4
        %v4341 = vshll.u32 %v4221, 16
        %v4343 = vrot.slane %v4341, 5
        %v4344 = vsel %vm1324, %v4339, %v4343
        %v4345 = vshrl.u32 %v4221, 16
        %v4347 = vrot.slane %v4345, 4
        %v4348 = vor.u32 %v4347, %v4343
        %v4349 = vrot.slane %v4348, 4
        %v4351 = vshll.u32 %v4222, 16
        %v4353 = vrot.slane %v4351, 5
        %v4354 = vsel %vm1324, %v4349, %v4353
        %v4356 = vshrl.u32 %v4223, 16
        %v4358 = vrot.slane %v4356, 4
        %v4359 = vshll.u32 %v4223, 16
        %v4361 = vrot.slane %v4359, 5
        %v4362 = vor.u32 %v4358, %v4361
        %v4363 = vrot.slane %v4362, 4
        %v4365 = vshll.u32 %v4224, 16
        %v4367 = vrot.slane %v4365, 5
        %v4368 = vsel %vm1324, %v4363, %v4367
        %v4369 = vshrl.u32 %v4224, 16
        %v4371 = vrot.slane %v4369, 4
        %v4372 = vor.u32 %v4371, %v4367
        %v4373 = vrot.slane %v4372, 4
        %v4375 = vshll.u32 %v4225, 16
        %v4377 = vrot.slane %v4375, 5
        %v4378 = vsel %vm1324, %v4373, %v4377
        %v4380 = vshrl.u32 %v4226, 16
        %v4382 = vrot.slane %v4380, 4
        %v4383 = vshll.u32 %v4226, 16
        %v4385 = vrot.slane %v4383, 5
        %v4386 = vor.u32 %v4382, %v4385
        %v4387 = vrot.slane %v4386, 4
        %v4389 = vshll.u32 %v4227, 16
        %v4391 = vrot.slane %v4389, 5
        %v4392 = vsel %vm1324, %v4387, %v4391
        %v4393 = vshrl.u32 %v4227, 16
        %v4395 = vrot.slane %v4393, 4
        %v4396 = vor.u32 %v4395, %v4391
        %v4397 = vrot.slane %v4396, 4
        %v4399 = vshll.u32 %v4228, 16
        %v4401 = vrot.slane %v4399, 5
        %v4402 = vsel %vm1324, %v4397, %v4401
        %v4404 = vshrl.u32 %v4229, 16
        %v4406 = vrot.slane %v4404, 4
        %v4407 = vshll.u32 %v4229, 16
        %v4409 = vrot.slane %v4407, 5
        %v4410 = vor.u32 %v4406, %v4409
        %v4411 = vrot.slane %v4410, 4
        %v4413 = vshll.u32 %v4230, 16
        %v4415 = vrot.slane %v4413, 5
        %v4416 = vsel %vm1324, %v4411, %v4415
        %v4417 = vshrl.u32 %v4230, 16
        %v4419 = vrot.slane %v4417, 4
        %v4420 = vor.u32 %v4419, %v4415
        %v4421 = vrot.slane %v4420, 4
        %v4423 = vshll.u32 %v4231, 16
        %v4425 = vrot.slane %v4423, 5
        %v4426 = vsel %vm1324, %v4421, %v4425
        %v4428 = vshrl.u32 %v4232, 16
        %v4430 = vrot.slane %v4428, 4
        %v4431 = vshll.u32 %v4232, 16
        %v4433 = vrot.slane %v4431, 5
        %v4434 = vor.u32 %v4430, %v4433
        %v4435 = vrot.slane %v4434, 4
        %v4437 = vshll.u32 %v4233, 16
        %v4439 = vrot.slane %v4437, 5
        %v4440 = vsel %vm1324, %v4435, %v4439
        %v4441 = vshrl.u32 %v4233, 16
        %v4443 = vrot.slane %v4441, 4
        %v4444 = vor.u32 %v4443, %v4439
        %v4445 = vrot.slane %v4444, 4
        %v4447 = vshll.u32 %v4234, 16
        %v4449 = vrot.slane %v4447, 5
        %v4450 = vsel %vm1324, %v4445, %v4449
        %v4452 = vshrl.u32 %v4235, 16
        %v4454 = vrot.slane %v4452, 4
        %v4455 = vshll.u32 %v4235, 16
        %v4457 = vrot.slane %v4455, 5
        %v4458 = vor.u32 %v4454, %v4457
        %v4459 = vrot.slane %v4458, 4
        %v4461 = vshll.u32 %v4236, 16
        %v4463 = vrot.slane %v4461, 5
        %v4464 = vsel %vm1324, %v4459, %v4463
        %v4465 = vshrl.u32 %v4236, 16
        %v4467 = vrot.slane %v4465, 4
        %v4468 = vor.u32 %v4467, %v4463
        %v4469 = vrot.slane %v4468, 4
        %v4471 = vshll.u32 %v4237, 16
        %v4473 = vrot.slane %v4471, 5
        %v4474 = vsel %vm1324, %v4469, %v4473
        %v4476 = vshrl.u32 %v4238, 16
        %v4478 = vrot.slane %v4476, 4
        %v4479 = vshll.u32 %v4238, 16
        %v4481 = vrot.slane %v4479, 5
        %v4482 = vor.u32 %v4478, %v4481
        %v4483 = vrot.slane %v4482, 4
        %v4485 = vshll.u32 %v4239, 16
        %v4487 = vrot.slane %v4485, 5
        %v4488 = vsel %vm1324, %v4483, %v4487
        %v4489 = vshrl.u32 %v4239, 16
        %v4491 = vrot.slane %v4489, 4
        %v4492 = vor.u32 %v4491, %v4487
        %v4493 = vrot.slane %v4492, 4
        %v4495 = vshll.u32 %v4240, 16
        %v4497 = vrot.slane %v4495, 5
        %v4498 = vsel %vm1324, %v4493, %v4497
        %v4500 = vshrl.u32 %v4241, 16
        %v4502 = vrot.slane %v4500, 4
        %v4503 = vshll.u32 %v4241, 16
        %v4505 = vrot.slane %v4503, 5
        %v4506 = vor.u32 %v4502, %v4505
        %v4507 = vrot.slane %v4506, 4
        %v4509 = vshll.u32 %v4242, 16
        %v4511 = vrot.slane %v4509, 5
        %v4512 = vsel %vm1324, %v4507, %v4511
        %v4513 = vshrl.u32 %v4242, 16
        %v4515 = vrot.slane %v4513, 4
        %v4516 = vor.u32 %v4515, %v4511
        %v4517 = vrot.slane %v4516, 4
        %v4519 = vshll.u32 %v4243, 16
        %v4521 = vrot.slane %v4519, 5
        %v4522 = vsel %vm1324, %v4517, %v4521
        %v4524 = vshrl.u32 %v4244, 16
        %v4526 = vrot.slane %v4524, 4
        %v4527 = vshll.u32 %v4244, 16
        %v4529 = vrot.slane %v4527, 5
        %v4530 = vor.u32 %v4526, %v4529
        %v4531 = vrot.slane %v4530, 4
        %v4533 = vshll.u32 %v4245, 16
        %v4535 = vrot.slane %v4533, 5
        %v4536 = vsel %vm1324, %v4531, %v4535
        %v4537 = vshrl.u32 %v4245, 16
        %v4539 = vrot.slane %v4537, 4
        %v4540 = vor.u32 %v4539, %v4535
        %v4541 = vrot.slane %v4540, 4
        %v4543 = vshll.u32 %v4246, 16
        %v4545 = vrot.slane %v4543, 5
        %v4546 = vsel %vm1324, %v4541, %v4545
        %v4548 = vshrl.u32 %v4247, 16
        %v4550 = vrot.slane %v4548, 4
        %v4551 = vshll.u32 %v4247, 16
        %v4553 = vrot.slane %v4551, 5
        %v4554 = vor.u32 %v4550, %v4553
        %v4555 = vrot.slane %v4554, 4
        %v4557 = vshll.u32 %v4248, 16
        %v4559 = vrot.slane %v4557, 5
        %v4560 = vsel %vm1324, %v4555, %v4559
        %v4561 = vshrl.u32 %v4248, 16
        %v4563 = vrot.slane %v4561, 4
        %v4564 = vor.u32 %v4563, %v4559
        %v4565 = vrot.slane %v4564, 4
        %v4567 = vshll.u32 %v4249, 16
        %v4569 = vrot.slane %v4567, 5
        %v4570 = vsel %vm1324, %v4565, %v4569
        %v4572 = vshrl.u32 %v4250, 16
        %v4574 = vrot.slane %v4572, 4
        %v4575 = vshll.u32 %v4250, 16
        %v4577 = vrot.slane %v4575, 5
        %v4578 = vor.u32 %v4574, %v4577
        %v4579 = vrot.slane %v4578, 4
        %v4581 = vshll.u32 %v4251, 16
        %v4583 = vrot.slane %v4581, 5
        %v4584 = vsel %vm1324, %v4579, %v4583
        %v4585 = vshrl.u32 %v4251, 16
        %v4587 = vrot.slane %v4585, 4
        %v4588 = vor.u32 %v4587, %v4583
        %v4589 = vrot.slane %v4588, 4
        %v4591 = vshll.u32 %v4252, 16
        %v4593 = vrot.slane %v4591, 5
        %v4594 = vsel %vm1324, %v4589, %v4593
        %v4596 = vshrl.u32 %v4253, 16
        %v4598 = vrot.slane %v4596, 4
        %v4599 = vshll.u32 %v4253, 16
        %v4601 = vrot.slane %v4599, 5
        %v4602 = vor.u32 %v4598, %v4601
        %v4603 = vrot.slane %v4602, 4
        %v4605 = vshll.u32 %v4254, 16
        %v4607 = vrot.slane %v4605, 5
        %v4608 = vsel %vm1324, %v4603, %v4607
        %v4609 = vshrl.u32 %v4254, 16
        %v4611 = vrot.slane %v4609, 4
        %v4612 = vor.u32 %v4611, %v4607
        %v4613 = vrot.slane %v4612, 4
        %v4615 = vshll.u32 %v4255, 16
        %v4617 = vrot.slane %v4615, 5
        %v4618 = vsel %vm1324, %v4613, %v4617
        %v4620 = vshrl.u32 %v4256, 16
        %v4622 = vrot.slane %v4620, 4
        %v4623 = vshll.u32 %v4256, 16
        %v4625 = vrot.slane %v4623, 5
        %v4626 = vor.u32 %v4622, %v4625
        %v4627 = vrot.slane %v4626, 4
        %v4629 = vshll.u32 %v4257, 16
        %v4631 = vrot.slane %v4629, 5
        %v4632 = vsel %vm1324, %v4627, %v4631
        %v4633 = vshrl.u32 %v4257, 16
        %v4635 = vrot.slane %v4633, 4
        %v4636 = vor.u32 %v4635, %v4631
        %v4637 = vrot.slane %v4636, 4
        %v4639 = vshll.u32 %v4258, 16
        %v4641 = vrot.slane %v4639, 5
        %v4642 = vsel %vm1324, %v4637, %v4641
        %s4643 = scalar_lea.vmem %s3, 112
        %v4644 = vld [vmem:[%s4643] sm:$0xf]
        %v4645 = vld [vmem:[%s4643 + $0x4] sm:$0xf]
        %v4646 = vld [vmem:[%s4643 + $0x8] sm:$0xf]
        %v4647 = vld [vmem:[%s4643 + $0xc] sm:$0xf]
        %v4648 = vunpack.c.l.b16 %v4272
        %v4649 = vunpack.c.l.b16 %v4282
        %v4650 = vunpack.c.l.b16 %v4296
        %v4651 = vunpack.c.l.b16 %v4306
        %v4652 = vunpack.c.l.b16 %v4320
        %v4653 = vunpack.c.l.b16 %v4330
        %v4654 = vunpack.c.l.b16 %v4344
        %v4655 = vunpack.c.l.b16 %v4354
        %v4656 = vunpack.c.l.b16 %v4368
        %v4657 = vunpack.c.l.b16 %v4378
        %v4658 = vunpack.c.l.b16 %v4392
        %v4659 = vunpack.c.l.b16 %v4402
        %v4660 = vunpack.c.l.b16 %v4416
        %v4661 = vunpack.c.l.b16 %v4426
        %v4662 = vunpack.c.l.b16 %v4440
        %v4663 = vunpack.c.l.b16 %v4450
        %v4664 = vunpack.c.l.b16 %v4464
        %v4665 = vunpack.c.l.b16 %v4474
        %v4666 = vunpack.c.l.b16 %v4488
        %v4667 = vunpack.c.l.b16 %v4498
        %v4668 = vunpack.c.l.b16 %v4512
        %v4669 = vunpack.c.l.b16 %v4522
        %v4670 = vunpack.c.l.b16 %v4536
        %v4671 = vunpack.c.l.b16 %v4546
        %v4672 = vunpack.c.l.b16 %v4560
        %v4673 = vunpack.c.l.b16 %v4570
        %v4674 = vunpack.c.l.b16 %v4584
        %v4675 = vunpack.c.l.b16 %v4594
        %v4676 = vunpack.c.l.b16 %v4608
        %v4677 = vunpack.c.l.b16 %v4618
        %v4678 = vunpack.c.l.b16 %v4632
        %v4679 = vunpack.c.l.b16 %v4642
        %v4680 = vpack.c.b16 %v4649, %v4648
        %v4681 = vpack.c.b16 %v4651, %v4650
        %v4682 = vpack.c.b16 %v4653, %v4652
        %v4683 = vpack.c.b16 %v4655, %v4654
        %v4684 = vpack.c.b16 %v4657, %v4656
        %v4685 = vpack.c.b16 %v4659, %v4658
        %v4686 = vpack.c.b16 %v4661, %v4660
        %v4687 = vpack.c.b16 %v4663, %v4662
        %v4688 = vpack.c.b16 %v4665, %v4664
        %v4689 = vpack.c.b16 %v4667, %v4666
        %v4690 = vpack.c.b16 %v4669, %v4668
        %v4691 = vpack.c.b16 %v4671, %v4670
        %v4692 = vpack.c.b16 %v4673, %v4672
        %v4693 = vpack.c.b16 %v4675, %v4674
        %v4694 = vpack.c.b16 %v4677, %v4676
        %v4695 = vpack.c.b16 %v4679, %v4678
        %v4700 = vunpack.c.l.b16 %v4644
        %v4701 = vunpack.c.l.b16 %v4645
        %v4702 = vunpack.c.l.b16 %v4646
        %v4703 = vunpack.c.l.b16 %v4647
        %v4704 = vpack.c.b16 %v4701, %v4700
        %v4705 = vpack.c.b16 %v4703, %v4702
        %v4709 = vsel %vm1774, %v4680, 0
        %v4712 = vsel %vm1774, %v4681, 0
        %v4715 = vsel %vm1774, %v4682, 0
        %v4718 = vsel %vm1774, %v4683, 0
        %v4721 = vsel %vm1774, %v4684, 0
        %v4724 = vsel %vm1774, %v4685, 0
        %v4727 = vsel %vm1774, %v4686, 0
        %v4730 = vsel %vm1774, %v4687, 0
        %v4733 = vsel %vm1774, %v4688, 0
        %v4736 = vsel %vm1774, %v4689, 0
        %v4739 = vsel %vm1774, %v4690, 0
        %v4742 = vsel %vm1774, %v4691, 0
        %v4745 = vsel %vm1774, %v4692, 0
        %v4748 = vsel %vm1774, %v4693, 0
        %v4751 = vsel %vm1774, %v4694, 0
        %v4754 = vsel %vm1774, %v4695, 0
        %4756 = vmatpush.bf16.msra.mxu0 0
        %4757 = vmatpush.bf16.msra.mxu0 0
        %4758 = vmatpush.bf16.msra.mxu0 0
        %4759 = vmatpush.bf16.msra.mxu0 0
        %4760 = vmatpush.bf16.msra.mxu0 0
        %4761 = vmatpush.bf16.msra.mxu0 0
        %4762 = vmatpush.bf16.msra.mxu0 %v4705
        %4763 = vmatpush.bf16.msra.mxu0 %v4704
        %4764 = vmatmul.bf16.gmra.mxu0 %v4709
        %v4765 = vpop.f32.mrf.mxu0
        %v4766 = vadd.f32 0.0, %v4765
        %v4767 = vpop.f32.mrf.mxu0
        %v4768 = vadd.f32 0.0, %v4767
        %4769 = vmatmul.bf16.gmra.mxu0 %v4712
        %v4770 = vpop.f32.mrf.mxu0
        %v4771 = vadd.f32 0.0, %v4770
        %v4772 = vpop.f32.mrf.mxu0
        %v4773 = vadd.f32 0.0, %v4772
        %4774 = vmatmul.bf16.gmra.mxu0 %v4715
        %v4775 = vpop.f32.mrf.mxu0
        %v4776 = vadd.f32 0.0, %v4775
        %v4777 = vpop.f32.mrf.mxu0
        %v4778 = vadd.f32 0.0, %v4777
        %4779 = vmatmul.bf16.gmra.mxu0 %v4718
        %v4780 = vpop.f32.mrf.mxu0
        %v4781 = vadd.f32 0.0, %v4780
        %v4782 = vpop.f32.mrf.mxu0
        %v4783 = vadd.f32 0.0, %v4782
        %4784 = vmatmul.bf16.gmra.mxu0 %v4721
        %v4785 = vpop.f32.mrf.mxu0
        %v4786 = vadd.f32 0.0, %v4785
        %v4787 = vpop.f32.mrf.mxu0
        %v4788 = vadd.f32 0.0, %v4787
        %4789 = vmatmul.bf16.gmra.mxu0 %v4724
        %v4790 = vpop.f32.mrf.mxu0
        %v4791 = vadd.f32 0.0, %v4790
        %v4792 = vpop.f32.mrf.mxu0
        %v4793 = vadd.f32 0.0, %v4792
        %4794 = vmatmul.bf16.gmra.mxu0 %v4727
        %v4795 = vpop.f32.mrf.mxu0
        %v4796 = vadd.f32 0.0, %v4795
        %v4797 = vpop.f32.mrf.mxu0
        %v4798 = vadd.f32 0.0, %v4797
        %4799 = vmatmul.bf16.gmra.mxu0 %v4730
        %v4800 = vpop.f32.mrf.mxu0
        %v4801 = vadd.f32 0.0, %v4800
        %v4802 = vpop.f32.mrf.mxu0
        %v4803 = vadd.f32 0.0, %v4802
        %4804 = vmatmul.bf16.gmra.mxu0 %v4733
        %v4805 = vpop.f32.mrf.mxu0
        %v4806 = vadd.f32 0.0, %v4805
        %v4807 = vpop.f32.mrf.mxu0
        %v4808 = vadd.f32 0.0, %v4807
        %4809 = vmatmul.bf16.gmra.mxu0 %v4736
        %v4810 = vpop.f32.mrf.mxu0
        %v4811 = vadd.f32 0.0, %v4810
        %v4812 = vpop.f32.mrf.mxu0
        %v4813 = vadd.f32 0.0, %v4812
        %4814 = vmatmul.bf16.gmra.mxu0 %v4739
        %v4815 = vpop.f32.mrf.mxu0
        %v4816 = vadd.f32 0.0, %v4815
        %v4817 = vpop.f32.mrf.mxu0
        %v4818 = vadd.f32 0.0, %v4817
        %4819 = vmatmul.bf16.gmra.mxu0 %v4742
        %v4820 = vpop.f32.mrf.mxu0
        %v4821 = vadd.f32 0.0, %v4820
        %v4822 = vpop.f32.mrf.mxu0
        %v4823 = vadd.f32 0.0, %v4822
        %4824 = vmatmul.bf16.gmra.mxu0 %v4745
        %v4825 = vpop.f32.mrf.mxu0
        %v4826 = vadd.f32 0.0, %v4825
        %v4827 = vpop.f32.mrf.mxu0
        %v4828 = vadd.f32 0.0, %v4827
        %4829 = vmatmul.bf16.gmra.mxu0 %v4748
        %v4830 = vpop.f32.mrf.mxu0
        %v4831 = vadd.f32 0.0, %v4830
        %v4832 = vpop.f32.mrf.mxu0
        %v4833 = vadd.f32 0.0, %v4832
        %4834 = vmatmul.bf16.gmra.mxu0 %v4751
        %v4835 = vpop.f32.mrf.mxu0
        %v4836 = vadd.f32 0.0, %v4835
        %v4837 = vpop.f32.mrf.mxu0
        %v4838 = vadd.f32 0.0, %v4837
        %4839 = vmatmul.bf16.gmra.mxu0 %v4754
        %v4840 = vpop.f32.mrf.mxu0
        %v4841 = vadd.f32 0.0, %v4840
        %v4842 = vpop.f32.mrf.mxu0
        %v4843 = vadd.f32 0.0, %v4842
        %4844 = vdwg.mxu0
        %v4845 = vadd.f32 %v4179, %v4766
        %v4846 = vadd.f32 %v4180, %v4768
        %v4847 = vadd.f32 %v4181, %v4771
        %v4848 = vadd.f32 %v4182, %v4773
        %v4849 = vadd.f32 %v4183, %v4776
        %v4850 = vadd.f32 %v4184, %v4778
        %v4851 = vadd.f32 %v4185, %v4781
        %v4852 = vadd.f32 %v4186, %v4783
        %v4853 = vadd.f32 %v4187, %v4786
        %v4854 = vadd.f32 %v4188, %v4788
        %v4855 = vadd.f32 %v4189, %v4791
        %v4856 = vadd.f32 %v4190, %v4793
        %v4857 = vadd.f32 %v4191, %v4796
        %v4858 = vadd.f32 %v4192, %v4798
        %v4859 = vadd.f32 %v4193, %v4801
        %v4860 = vadd.f32 %v4194, %v4803
        %v4861 = vadd.f32 %v4195, %v4806
        %v4862 = vadd.f32 %v4196, %v4808
        %v4863 = vadd.f32 %v4197, %v4811
        %v4864 = vadd.f32 %v4198, %v4813
        %v4865 = vadd.f32 %v4199, %v4816
        %v4866 = vadd.f32 %v4200, %v4818
        %v4867 = vadd.f32 %v4201, %v4821
        %v4868 = vadd.f32 %v4202, %v4823
        %v4869 = vadd.f32 %v4203, %v4826
        %v4870 = vadd.f32 %v4204, %v4828
        %v4871 = vadd.f32 %v4205, %v4831
        %v4872 = vadd.f32 %v4206, %v4833
        %v4873 = vadd.f32 %v4207, %v4836
        %v4874 = vadd.f32 %v4208, %v4838
        %v4875 = vadd.f32 %v4209, %v4841
        %v4876 = vadd.f32 %v4210, %v4843
        %v4877 = vld [vmem:[%s3912] sm:$0xe]
        %v4878 = vld [vmem:[%s3912 + $0xc] sm:$0xe]
        %v4879 = vld [vmem:[%s3912 + $0x18] sm:$0xe]
        %v4880 = vld [vmem:[%s3912 + $0x24] sm:$0xe]
        %v4881 = vld [vmem:[%s3912 + $0x30] sm:$0xe]
        %v4882 = vld [vmem:[%s3912 + $0x3c] sm:$0xe]
        %v4883 = vld [vmem:[%s3912 + $0x48] sm:$0xe]
        %v4884 = vld [vmem:[%s3912 + $0x54] sm:$0xe]
        %v4885 = vld [vmem:[%s3912 + $0x60] sm:$0xe]
        %v4886 = vld [vmem:[%s3912 + $0x6c] sm:$0xe]
        %v4887 = vld [vmem:[%s3912 + $0x78] sm:$0xe]
        %v4888 = vld [vmem:[%s3912 + $0x84] sm:$0xe]
        %v4889 = vld [vmem:[%s3912 + $0x90] sm:$0xe]
        %v4890 = vld [vmem:[%s3912 + $0x9c] sm:$0xe]
        %v4891 = vld [vmem:[%s3912 + $0xa8] sm:$0xe]
        %v4892 = vld [vmem:[%s3912 + $0xb4] sm:$0xe]
        %v4941 = vrot.slane %v4877, 5
        %v4942 = vrot.slane %v4941, 4
        %v4943 = vrot.slane %v4212, 5
        %v4944 = vsel %vm2191, %v4942, %v4943
        %v4945 = vrot.slane %v4943, 4
        %v4946 = vrot.slane %v4213, 5
        %v4947 = vsel %vm2191, %v4945, %v4946
        %v4948 = vrot.slane %v4878, 5
        %v4949 = vrot.slane %v4948, 4
        %v4950 = vrot.slane %v4215, 5
        %v4951 = vsel %vm2191, %v4949, %v4950
        %v4952 = vrot.slane %v4950, 4
        %v4953 = vrot.slane %v4216, 5
        %v4954 = vsel %vm2191, %v4952, %v4953
        %v4955 = vrot.slane %v4879, 5
        %v4956 = vrot.slane %v4955, 4
        %v4957 = vrot.slane %v4218, 5
        %v4958 = vsel %vm2191, %v4956, %v4957
        %v4959 = vrot.slane %v4957, 4
        %v4960 = vrot.slane %v4219, 5
        %v4961 = vsel %vm2191, %v4959, %v4960
        %v4962 = vrot.slane %v4880, 5
        %v4963 = vrot.slane %v4962, 4
        %v4964 = vrot.slane %v4221, 5
        %v4965 = vsel %vm2191, %v4963, %v4964
        %v4966 = vrot.slane %v4964, 4
        %v4967 = vrot.slane %v4222, 5
        %v4968 = vsel %vm2191, %v4966, %v4967
        %v4969 = vrot.slane %v4881, 5
        %v4970 = vrot.slane %v4969, 4
        %v4971 = vrot.slane %v4224, 5
        %v4972 = vsel %vm2191, %v4970, %v4971
        %v4973 = vrot.slane %v4971, 4
        %v4974 = vrot.slane %v4225, 5
        %v4975 = vsel %vm2191, %v4973, %v4974
        %v4976 = vrot.slane %v4882, 5
        %v4977 = vrot.slane %v4976, 4
        %v4978 = vrot.slane %v4227, 5
        %v4979 = vsel %vm2191, %v4977, %v4978
        %v4980 = vrot.slane %v4978, 4
        %v4981 = vrot.slane %v4228, 5
        %v4982 = vsel %vm2191, %v4980, %v4981
        %v4983 = vrot.slane %v4883, 5
        %v4984 = vrot.slane %v4983, 4
        %v4985 = vrot.slane %v4230, 5
        %v4986 = vsel %vm2191, %v4984, %v4985
        %v4987 = vrot.slane %v4985, 4
        %v4988 = vrot.slane %v4231, 5
        %v4989 = vsel %vm2191, %v4987, %v4988
        %v4990 = vrot.slane %v4884, 5
        %v4991 = vrot.slane %v4990, 4
        %v4992 = vrot.slane %v4233, 5
        %v4993 = vsel %vm2191, %v4991, %v4992
        %v4994 = vrot.slane %v4992, 4
        %v4995 = vrot.slane %v4234, 5
        %v4996 = vsel %vm2191, %v4994, %v4995
        %v4997 = vrot.slane %v4885, 5
        %v4998 = vrot.slane %v4997, 4
        %v4999 = vrot.slane %v4236, 5
        %v5000 = vsel %vm2191, %v4998, %v4999
        %v5001 = vrot.slane %v4999, 4
        %v5002 = vrot.slane %v4237, 5
        %v5003 = vsel %vm2191, %v5001, %v5002
        %v5004 = vrot.slane %v4886, 5
        %v5005 = vrot.slane %v5004, 4
        %v5006 = vrot.slane %v4239, 5
        %v5007 = vsel %vm2191, %v5005, %v5006
        %v5008 = vrot.slane %v5006, 4
        %v5009 = vrot.slane %v4240, 5
        %v5010 = vsel %vm2191, %v5008, %v5009
        %v5011 = vrot.slane %v4887, 5
        %v5012 = vrot.slane %v5011, 4
        %v5013 = vrot.slane %v4242, 5
        %v5014 = vsel %vm2191, %v5012, %v5013
        %v5015 = vrot.slane %v5013, 4
        %v5016 = vrot.slane %v4243, 5
        %v5017 = vsel %vm2191, %v5015, %v5016
        %v5018 = vrot.slane %v4888, 5
        %v5019 = vrot.slane %v5018, 4
        %v5020 = vrot.slane %v4245, 5
        %v5021 = vsel %vm2191, %v5019, %v5020
        %v5022 = vrot.slane %v5020, 4
        %v5023 = vrot.slane %v4246, 5
        %v5024 = vsel %vm2191, %v5022, %v5023
        %v5025 = vrot.slane %v4889, 5
        %v5026 = vrot.slane %v5025, 4
        %v5027 = vrot.slane %v4248, 5
        %v5028 = vsel %vm2191, %v5026, %v5027
        %v5029 = vrot.slane %v5027, 4
        %v5030 = vrot.slane %v4249, 5
        %v5031 = vsel %vm2191, %v5029, %v5030
        %v5032 = vrot.slane %v4890, 5
        %v5033 = vrot.slane %v5032, 4
        %v5034 = vrot.slane %v4251, 5
        %v5035 = vsel %vm2191, %v5033, %v5034
        %v5036 = vrot.slane %v5034, 4
        %v5037 = vrot.slane %v4252, 5
        %v5038 = vsel %vm2191, %v5036, %v5037
        %v5039 = vrot.slane %v4891, 5
        %v5040 = vrot.slane %v5039, 4
        %v5041 = vrot.slane %v4254, 5
        %v5042 = vsel %vm2191, %v5040, %v5041
        %v5043 = vrot.slane %v5041, 4
        %v5044 = vrot.slane %v4255, 5
        %v5045 = vsel %vm2191, %v5043, %v5044
        %v5046 = vrot.slane %v4892, 5
        %v5047 = vrot.slane %v5046, 4
        %v5048 = vrot.slane %v4257, 5
        %v5049 = vsel %vm2191, %v5047, %v5048
        %v5050 = vrot.slane %v5048, 4
        %v5051 = vrot.slane %v4258, 5
        %v5052 = vsel %vm2191, %v5050, %v5051
        %s5053 = scalar_lea.vmem %s3, 128
        %v5054 = vld [vmem:[%s5053] sm:$0xf]
        %v5055 = vld [vmem:[%s5053 + $0x4] sm:$0xf]
        %v5056 = vld [vmem:[%s5053 + $0x8] sm:$0xf]
        %v5057 = vld [vmem:[%s5053 + $0xc] sm:$0xf]
        %v5058 = vunpack.c.l.b16 %v4944
        %v5059 = vunpack.c.l.b16 %v4947
        %v5060 = vunpack.c.l.b16 %v4951
        %v5061 = vunpack.c.l.b16 %v4954
        %v5062 = vunpack.c.l.b16 %v4958
        %v5063 = vunpack.c.l.b16 %v4961
        %v5064 = vunpack.c.l.b16 %v4965
        %v5065 = vunpack.c.l.b16 %v4968
        %v5066 = vunpack.c.l.b16 %v4972
        %v5067 = vunpack.c.l.b16 %v4975
        %v5068 = vunpack.c.l.b16 %v4979
        %v5069 = vunpack.c.l.b16 %v4982
        %v5070 = vunpack.c.l.b16 %v4986
        %v5071 = vunpack.c.l.b16 %v4989
        %v5072 = vunpack.c.l.b16 %v4993
        %v5073 = vunpack.c.l.b16 %v4996
        %v5074 = vunpack.c.l.b16 %v5000
        %v5075 = vunpack.c.l.b16 %v5003
        %v5076 = vunpack.c.l.b16 %v5007
        %v5077 = vunpack.c.l.b16 %v5010
        %v5078 = vunpack.c.l.b16 %v5014
        %v5079 = vunpack.c.l.b16 %v5017
        %v5080 = vunpack.c.l.b16 %v5021
        %v5081 = vunpack.c.l.b16 %v5024
        %v5082 = vunpack.c.l.b16 %v5028
        %v5083 = vunpack.c.l.b16 %v5031
        %v5084 = vunpack.c.l.b16 %v5035
        %v5085 = vunpack.c.l.b16 %v5038
        %v5086 = vunpack.c.l.b16 %v5042
        %v5087 = vunpack.c.l.b16 %v5045
        %v5088 = vunpack.c.l.b16 %v5049
        %v5089 = vunpack.c.l.b16 %v5052
        %v5090 = vpack.c.b16 %v5059, %v5058
        %v5091 = vpack.c.b16 %v5061, %v5060
        %v5092 = vpack.c.b16 %v5063, %v5062
        %v5093 = vpack.c.b16 %v5065, %v5064
        %v5094 = vpack.c.b16 %v5067, %v5066
        %v5095 = vpack.c.b16 %v5069, %v5068
        %v5096 = vpack.c.b16 %v5071, %v5070
        %v5097 = vpack.c.b16 %v5073, %v5072
        %v5098 = vpack.c.b16 %v5075, %v5074
        %v5099 = vpack.c.b16 %v5077, %v5076
        %v5100 = vpack.c.b16 %v5079, %v5078
        %v5101 = vpack.c.b16 %v5081, %v5080
        %v5102 = vpack.c.b16 %v5083, %v5082
        %v5103 = vpack.c.b16 %v5085, %v5084
        %v5104 = vpack.c.b16 %v5087, %v5086
        %v5105 = vpack.c.b16 %v5089, %v5088
        %v5110 = vunpack.c.l.b16 %v5054
        %v5111 = vunpack.c.l.b16 %v5055
        %v5112 = vunpack.c.l.b16 %v5056
        %v5113 = vunpack.c.l.b16 %v5057
        %v5114 = vpack.c.b16 %v5111, %v5110
        %v5115 = vpack.c.b16 %v5113, %v5112
        %v5119 = vsel %vm1774, %v5090, 0
        %v5122 = vsel %vm1774, %v5091, 0
        %v5125 = vsel %vm1774, %v5092, 0
        %v5128 = vsel %vm1774, %v5093, 0
        %v5131 = vsel %vm1774, %v5094, 0
        %v5134 = vsel %vm1774, %v5095, 0
        %v5137 = vsel %vm1774, %v5096, 0
        %v5140 = vsel %vm1774, %v5097, 0
        %v5143 = vsel %vm1774, %v5098, 0
        %v5146 = vsel %vm1774, %v5099, 0
        %v5149 = vsel %vm1774, %v5100, 0
        %v5152 = vsel %vm1774, %v5101, 0
        %v5155 = vsel %vm1774, %v5102, 0
        %v5158 = vsel %vm1774, %v5103, 0
        %v5161 = vsel %vm1774, %v5104, 0
        %v5164 = vsel %vm1774, %v5105, 0
        %5166 = vmatpush.bf16.msra.mxu0 0
        %5167 = vmatpush.bf16.msra.mxu0 0
        %5168 = vmatpush.bf16.msra.mxu0 0
        %5169 = vmatpush.bf16.msra.mxu0 0
        %5170 = vmatpush.bf16.msra.mxu0 0
        %5171 = vmatpush.bf16.msra.mxu0 0
        %5172 = vmatpush.bf16.msra.mxu0 %v5115
        %5173 = vmatpush.bf16.msra.mxu0 %v5114
        %5174 = vmatmul.bf16.gmra.mxu0 %v5119
        %v5175 = vpop.f32.mrf.mxu0
        %v5176 = vadd.f32 0.0, %v5175
        %v5177 = vpop.f32.mrf.mxu0
        %v5178 = vadd.f32 0.0, %v5177
        %5179 = vmatmul.bf16.gmra.mxu0 %v5122
        %v5180 = vpop.f32.mrf.mxu0
        %v5181 = vadd.f32 0.0, %v5180
        %v5182 = vpop.f32.mrf.mxu0
        %v5183 = vadd.f32 0.0, %v5182
        %5184 = vmatmul.bf16.gmra.mxu0 %v5125
        %v5185 = vpop.f32.mrf.mxu0
        %v5186 = vadd.f32 0.0, %v5185
        %v5187 = vpop.f32.mrf.mxu0
        %v5188 = vadd.f32 0.0, %v5187
        %5189 = vmatmul.bf16.gmra.mxu0 %v5128
        %v5190 = vpop.f32.mrf.mxu0
        %v5191 = vadd.f32 0.0, %v5190
        %v5192 = vpop.f32.mrf.mxu0
        %v5193 = vadd.f32 0.0, %v5192
        %5194 = vmatmul.bf16.gmra.mxu0 %v5131
        %v5195 = vpop.f32.mrf.mxu0
        %v5196 = vadd.f32 0.0, %v5195
        %v5197 = vpop.f32.mrf.mxu0
        %v5198 = vadd.f32 0.0, %v5197
        %5199 = vmatmul.bf16.gmra.mxu0 %v5134
        %v5200 = vpop.f32.mrf.mxu0
        %v5201 = vadd.f32 0.0, %v5200
        %v5202 = vpop.f32.mrf.mxu0
        %v5203 = vadd.f32 0.0, %v5202
        %5204 = vmatmul.bf16.gmra.mxu0 %v5137
        %v5205 = vpop.f32.mrf.mxu0
        %v5206 = vadd.f32 0.0, %v5205
        %v5207 = vpop.f32.mrf.mxu0
        %v5208 = vadd.f32 0.0, %v5207
        %5209 = vmatmul.bf16.gmra.mxu0 %v5140
        %v5210 = vpop.f32.mrf.mxu0
        %v5211 = vadd.f32 0.0, %v5210
        %v5212 = vpop.f32.mrf.mxu0
        %v5213 = vadd.f32 0.0, %v5212
        %5214 = vmatmul.bf16.gmra.mxu0 %v5143
        %v5215 = vpop.f32.mrf.mxu0
        %v5216 = vadd.f32 0.0, %v5215
        %v5217 = vpop.f32.mrf.mxu0
        %v5218 = vadd.f32 0.0, %v5217
        %5219 = vmatmul.bf16.gmra.mxu0 %v5146
        %v5220 = vpop.f32.mrf.mxu0
        %v5221 = vadd.f32 0.0, %v5220
        %v5222 = vpop.f32.mrf.mxu0
        %v5223 = vadd.f32 0.0, %v5222
        %5224 = vmatmul.bf16.gmra.mxu0 %v5149
        %v5225 = vpop.f32.mrf.mxu0
        %v5226 = vadd.f32 0.0, %v5225
        %v5227 = vpop.f32.mrf.mxu0
        %v5228 = vadd.f32 0.0, %v5227
        %5229 = vmatmul.bf16.gmra.mxu0 %v5152
        %v5230 = vpop.f32.mrf.mxu0
        %v5231 = vadd.f32 0.0, %v5230
        %v5232 = vpop.f32.mrf.mxu0
        %v5233 = vadd.f32 0.0, %v5232
        %5234 = vmatmul.bf16.gmra.mxu0 %v5155
        %v5235 = vpop.f32.mrf.mxu0
        %v5236 = vadd.f32 0.0, %v5235
        %v5237 = vpop.f32.mrf.mxu0
        %v5238 = vadd.f32 0.0, %v5237
        %5239 = vmatmul.bf16.gmra.mxu0 %v5158
        %v5240 = vpop.f32.mrf.mxu0
        %v5241 = vadd.f32 0.0, %v5240
        %v5242 = vpop.f32.mrf.mxu0
        %v5243 = vadd.f32 0.0, %v5242
        %5244 = vmatmul.bf16.gmra.mxu0 %v5161
        %v5245 = vpop.f32.mrf.mxu0
        %v5246 = vadd.f32 0.0, %v5245
        %v5247 = vpop.f32.mrf.mxu0
        %v5248 = vadd.f32 0.0, %v5247
        %5249 = vmatmul.bf16.gmra.mxu0 %v5164
        %v5250 = vpop.f32.mrf.mxu0
        %v5251 = vadd.f32 0.0, %v5250
        %v5252 = vpop.f32.mrf.mxu0
        %v5253 = vadd.f32 0.0, %v5252
        %5254 = vdwg.mxu0
        %v5255 = vadd.f32 %v4845, %v5176
        %v5256 = vadd.f32 %v4846, %v5178
        %v5257 = vadd.f32 %v4847, %v5181
        %v5258 = vadd.f32 %v4848, %v5183
        %v5259 = vadd.f32 %v4849, %v5186
        %v5260 = vadd.f32 %v4850, %v5188
        %v5261 = vadd.f32 %v4851, %v5191
        %v5262 = vadd.f32 %v4852, %v5193
        %v5263 = vadd.f32 %v4853, %v5196
        %v5264 = vadd.f32 %v4854, %v5198
        %v5265 = vadd.f32 %v4855, %v5201
        %v5266 = vadd.f32 %v4856, %v5203
        %v5267 = vadd.f32 %v4857, %v5206
        %v5268 = vadd.f32 %v4858, %v5208
        %v5269 = vadd.f32 %v4859, %v5211
        %v5270 = vadd.f32 %v4860, %v5213
        %v5271 = vadd.f32 %v4861, %v5216
        %v5272 = vadd.f32 %v4862, %v5218
        %v5273 = vadd.f32 %v4863, %v5221
        %v5274 = vadd.f32 %v4864, %v5223
        %v5275 = vadd.f32 %v4865, %v5226
        %v5276 = vadd.f32 %v4866, %v5228
        %v5277 = vadd.f32 %v4867, %v5231
        %v5278 = vadd.f32 %v4868, %v5233
        %v5279 = vadd.f32 %v4869, %v5236
        %v5280 = vadd.f32 %v4870, %v5238
        %v5281 = vadd.f32 %v4871, %v5241
        %v5282 = vadd.f32 %v4872, %v5243
        %v5283 = vadd.f32 %v4873, %v5246
        %v5284 = vadd.f32 %v4874, %v5248
        %v5285 = vadd.f32 %v4875, %v5251
        %v5286 = vadd.f32 %v4876, %v5253
        %v5287 = vld [vmem:[%s4] sm:$0x1]
        %v5288 = vperm.slane %v5287, 0
        %v5289 = vmul.f32 %v5255, %v5288
        %v5290 = vmul.f32 %v5256, %v5288
        %v5291 = vmul.f32 %v5257, %v5288
        %v5292 = vmul.f32 %v5258, %v5288
        %v5293 = vmul.f32 %v5259, %v5288
        %v5294 = vmul.f32 %v5260, %v5288
        %v5295 = vmul.f32 %v5261, %v5288
        %v5296 = vmul.f32 %v5262, %v5288
        %v5297 = vmul.f32 %v5263, %v5288
        %v5298 = vmul.f32 %v5264, %v5288
        %v5299 = vmul.f32 %v5265, %v5288
        %v5300 = vmul.f32 %v5266, %v5288
        %v5301 = vmul.f32 %v5267, %v5288
        %v5302 = vmul.f32 %v5268, %v5288
        %v5303 = vmul.f32 %v5269, %v5288
        %v5304 = vmul.f32 %v5270, %v5288
        %v5305 = vmul.f32 %v5271, %v5288
        %v5306 = vmul.f32 %v5272, %v5288
        %v5307 = vmul.f32 %v5273, %v5288
        %v5308 = vmul.f32 %v5274, %v5288
        %v5309 = vmul.f32 %v5275, %v5288
        %v5310 = vmul.f32 %v5276, %v5288
        %v5311 = vmul.f32 %v5277, %v5288
        %v5312 = vmul.f32 %v5278, %v5288
        %v5313 = vmul.f32 %v5279, %v5288
        %v5314 = vmul.f32 %v5280, %v5288
        %v5315 = vmul.f32 %v5281, %v5288
        %v5316 = vmul.f32 %v5282, %v5288
        %v5317 = vmul.f32 %v5283, %v5288
        %v5318 = vmul.f32 %v5284, %v5288
        %v5319 = vmul.f32 %v5285, %v5288
        %v5320 = vmul.f32 %v5286, %v5288
        %v5321 = vld [vmem:[%s4 + $0x1] sm:$0x1]
        %v5322 = vperm.slane %v5321, 0
        %v5323 = vadd.f32 %v5289, %v5322
        %v5324 = vadd.f32 %v5290, %v5322
        %v5325 = vadd.f32 %v5291, %v5322
        %v5326 = vadd.f32 %v5292, %v5322
        %v5327 = vadd.f32 %v5293, %v5322
        %v5328 = vadd.f32 %v5294, %v5322
        %v5329 = vadd.f32 %v5295, %v5322
        %v5330 = vadd.f32 %v5296, %v5322
        %v5331 = vadd.f32 %v5297, %v5322
        %v5332 = vadd.f32 %v5298, %v5322
        %v5333 = vadd.f32 %v5299, %v5322
        %v5334 = vadd.f32 %v5300, %v5322
        %v5335 = vadd.f32 %v5301, %v5322
        %v5336 = vadd.f32 %v5302, %v5322
        %v5337 = vadd.f32 %v5303, %v5322
        %v5338 = vadd.f32 %v5304, %v5322
        %v5339 = vadd.f32 %v5305, %v5322
        %v5340 = vadd.f32 %v5306, %v5322
        %v5341 = vadd.f32 %v5307, %v5322
        %v5342 = vadd.f32 %v5308, %v5322
        %v5343 = vadd.f32 %v5309, %v5322
        %v5344 = vadd.f32 %v5310, %v5322
        %v5345 = vadd.f32 %v5311, %v5322
        %v5346 = vadd.f32 %v5312, %v5322
        %v5347 = vadd.f32 %v5313, %v5322
        %v5348 = vadd.f32 %v5314, %v5322
        %v5349 = vadd.f32 %v5315, %v5322
        %v5350 = vadd.f32 %v5316, %v5322
        %v5351 = vadd.f32 %v5317, %v5322
        %v5352 = vadd.f32 %v5318, %v5322
        %v5353 = vadd.f32 %v5319, %v5322
        %v5354 = vadd.f32 %v5320, %v5322
        %v5355 = vmax.f32 %v5323, 0.0
        %v5356 = vmax.f32 %v5324, 0.0
        %v5357 = vmax.f32 %v5325, 0.0
        %v5358 = vmax.f32 %v5326, 0.0
        %v5359 = vmax.f32 %v5327, 0.0
        %v5360 = vmax.f32 %v5328, 0.0
        %v5361 = vmax.f32 %v5329, 0.0
        %v5362 = vmax.f32 %v5330, 0.0
        %v5363 = vmax.f32 %v5331, 0.0
        %v5364 = vmax.f32 %v5332, 0.0
        %v5365 = vmax.f32 %v5333, 0.0
        %v5366 = vmax.f32 %v5334, 0.0
        %v5367 = vmax.f32 %v5335, 0.0
        %v5368 = vmax.f32 %v5336, 0.0
        %v5369 = vmax.f32 %v5337, 0.0
        %v5370 = vmax.f32 %v5338, 0.0
        %v5371 = vmax.f32 %v5339, 0.0
        %v5372 = vmax.f32 %v5340, 0.0
        %v5373 = vmax.f32 %v5341, 0.0
        %v5374 = vmax.f32 %v5342, 0.0
        %v5375 = vmax.f32 %v5343, 0.0
        %v5376 = vmax.f32 %v5344, 0.0
        %v5377 = vmax.f32 %v5345, 0.0
        %v5378 = vmax.f32 %v5346, 0.0
        %v5379 = vmax.f32 %v5347, 0.0
        %v5380 = vmax.f32 %v5348, 0.0
        %v5381 = vmax.f32 %v5349, 0.0
        %v5382 = vmax.f32 %v5350, 0.0
        %v5383 = vmax.f32 %v5351, 0.0
        %v5384 = vmax.f32 %v5352, 0.0
        %v5385 = vmax.f32 %v5353, 0.0
        %v5386 = vmax.f32 %v5354, 0.0
        %v5387 = vpack.c.bf16 %v5356, %v5355
        %v5388 = vpack.c.bf16 %v5358, %v5357
        %v5389 = vpack.c.bf16 %v5360, %v5359
        %v5390 = vpack.c.bf16 %v5362, %v5361
        %v5391 = vpack.c.bf16 %v5364, %v5363
        %v5392 = vpack.c.bf16 %v5366, %v5365
        %v5393 = vpack.c.bf16 %v5368, %v5367
        %v5394 = vpack.c.bf16 %v5370, %v5369
        %v5395 = vpack.c.bf16 %v5372, %v5371
        %v5396 = vpack.c.bf16 %v5374, %v5373
        %v5397 = vpack.c.bf16 %v5376, %v5375
        %v5398 = vpack.c.bf16 %v5378, %v5377
        %v5399 = vpack.c.bf16 %v5380, %v5379
        %v5400 = vpack.c.bf16 %v5382, %v5381
        %v5401 = vpack.c.bf16 %v5384, %v5383
        %v5402 = vpack.c.bf16 %v5386, %v5385
        %v5403 = vld [vmem:[%s7] sm:$0xff]
        %v5404 = vld [vmem:[%s7 + $0x8] sm:$0xff]
        %v5405 = vld [vmem:[%s7 + $0x10] sm:$0xff]
        %v5406 = vld [vmem:[%s7 + $0x18] sm:$0xff]
        %v5407 = vld [vmem:[%s7 + $0x20] sm:$0xff]
        %v5408 = vld [vmem:[%s7 + $0x28] sm:$0xff]
        %v5409 = vld [vmem:[%s7 + $0x30] sm:$0xff]
        %v5410 = vld [vmem:[%s7 + $0x38] sm:$0xff]
        %v5419 = vunpack.c.l.b16 %v5403
        %v5420 = vunpack.c.h.b16 %v5403
        %v5421 = vunpack.c.l.b16 %v5404
        %v5422 = vunpack.c.h.b16 %v5404
        %v5423 = vunpack.c.l.b16 %v5405
        %v5424 = vunpack.c.h.b16 %v5405
        %v5425 = vunpack.c.l.b16 %v5406
        %v5426 = vunpack.c.h.b16 %v5406
        %v5427 = vunpack.c.l.b16 %v5407
        %v5428 = vunpack.c.h.b16 %v5407
        %v5429 = vunpack.c.l.b16 %v5408
        %v5430 = vunpack.c.h.b16 %v5408
        %v5431 = vunpack.c.l.b16 %v5409
        %v5432 = vunpack.c.h.b16 %v5409
        %v5433 = vunpack.c.l.b16 %v5410
        %v5434 = vunpack.c.h.b16 %v5410
        %v5435 = vpack.c.b16 %v5421, %v5419
        %v5436 = vpack.c.b16 %v5422, %v5420
        %v5437 = vpack.c.b16 %v5425, %v5423
        %v5438 = vpack.c.b16 %v5426, %v5424
        %v5439 = vpack.c.b16 %v5429, %v5427
        %v5440 = vpack.c.b16 %v5430, %v5428
        %v5441 = vpack.c.b16 %v5433, %v5431
        %v5442 = vpack.c.b16 %v5434, %v5432
        %5451 = vmatpush.bf16.msra.mxu0 %v5394
        %5452 = vmatpush.bf16.msra.mxu0 %v5393
        %5453 = vmatpush.bf16.msra.mxu0 %v5392
        %5454 = vmatpush.bf16.msra.mxu0 %v5391
        %5455 = vmatpush.bf16.msra.mxu0 %v5390
        %5456 = vmatpush.bf16.msra.mxu0 %v5389
        %5457 = vmatpush.bf16.msra.mxu0 %v5388
        %5458 = vmatpush.bf16.msra.mxu0 %v5387
        %5459 = vmatmul.bf16.gmra.mxu0 %v5435
        %v5460 = vpop.f32.mrf.mxu0
        %v5461 = vadd.f32 0.0, %v5460
        %v5462 = vpop.f32.mrf.mxu0
        %v5463 = vadd.f32 0.0, %v5462
        %5464 = vmatmul.bf16.gmra.mxu0 %v5437
        %v5465 = vpop.f32.mrf.mxu0
        %v5466 = vadd.f32 0.0, %v5465
        %v5467 = vpop.f32.mrf.mxu0
        %v5468 = vadd.f32 0.0, %v5467
        %5469 = vmatmul.bf16.gmra.mxu0 %v5439
        %v5470 = vpop.f32.mrf.mxu0
        %v5471 = vadd.f32 0.0, %v5470
        %v5472 = vpop.f32.mrf.mxu0
        %v5473 = vadd.f32 0.0, %v5472
        %5474 = vmatmul.bf16.gmra.mxu0 %v5441
        %v5475 = vpop.f32.mrf.mxu0
        %v5476 = vadd.f32 0.0, %v5475
        %v5477 = vpop.f32.mrf.mxu0
        %v5478 = vadd.f32 0.0, %v5477
        %5479 = vdwg.mxu0
        %5480 = vmatpush.bf16.msra.mxu0 %v5402
        %5481 = vmatpush.bf16.msra.mxu0 %v5401
        %5482 = vmatpush.bf16.msra.mxu0 %v5400
        %5483 = vmatpush.bf16.msra.mxu0 %v5399
        %5484 = vmatpush.bf16.msra.mxu0 %v5398
        %5485 = vmatpush.bf16.msra.mxu0 %v5397
        %5486 = vmatpush.bf16.msra.mxu0 %v5396
        %5487 = vmatpush.bf16.msra.mxu0 %v5395
        %5488 = vmatmul.bf16.gmra.mxu0 %v5436
        %v5489 = vpop.f32.mrf.mxu0
        %v5490 = vadd.f32 %v5461, %v5489
        %v5491 = vpop.f32.mrf.mxu0
        %v5492 = vadd.f32 %v5463, %v5491
        %5493 = vmatmul.bf16.gmra.mxu0 %v5438
        %v5494 = vpop.f32.mrf.mxu0
        %v5495 = vadd.f32 %v5466, %v5494
        %v5496 = vpop.f32.mrf.mxu0
        %v5497 = vadd.f32 %v5468, %v5496
        %5498 = vmatmul.bf16.gmra.mxu0 %v5440
        %v5499 = vpop.f32.mrf.mxu0
        %v5500 = vadd.f32 %v5471, %v5499
        %v5501 = vpop.f32.mrf.mxu0
        %v5502 = vadd.f32 %v5473, %v5501
        %5503 = vmatmul.bf16.gmra.mxu0 %v5442
        %v5504 = vpop.f32.mrf.mxu0
        %v5505 = vadd.f32 %v5476, %v5504
        %v5506 = vpop.f32.mrf.mxu0
        %v5507 = vadd.f32 %v5478, %v5506
        %5508 = vdwg.mxu0
        %v5509 = vpack.c.bf16 %v5492, %v5490
        %v5510 = vpack.c.bf16 %v5497, %v5495
        %v5511 = vpack.c.bf16 %v5502, %v5500
        %v5512 = vpack.c.bf16 %v5507, %v5505
        %v5513 = vld [vmem:[%s5] sm:$0xf]
        %v5514 = vld [vmem:[%s5 + $0x4] sm:$0xf]
        %v5515 = vld [vmem:[%s5 + $0x8] sm:$0xf]
        %v5516 = vld [vmem:[%s5 + $0xc] sm:$0xf]
        %v5521 = vunpack.c.l.b16 %v5513
        %v5522 = vunpack.c.l.b16 %v5514
        %v5523 = vunpack.c.l.b16 %v5515
        %v5524 = vunpack.c.l.b16 %v5516
        %v5525 = vpack.c.b16 %v5522, %v5521
        %v5526 = vpack.c.b16 %v5524, %v5523
        %v5530 = vsel %vm1774, %v5509, 0
        %v5533 = vsel %vm1774, %v5510, 0
        %v5536 = vsel %vm1774, %v5511, 0
        %v5539 = vsel %vm1774, %v5512, 0
        %5541 = vmatpush.bf16.msra.mxu0 0
        %5542 = vmatpush.bf16.msra.mxu0 0
        %5543 = vmatpush.bf16.msra.mxu0 0
        %5544 = vmatpush.bf16.msra.mxu0 0
        %5545 = vmatpush.bf16.msra.mxu0 0
        %5546 = vmatpush.bf16.msra.mxu0 0
        %5547 = vmatpush.bf16.msra.mxu0 %v5526
        %5548 = vmatpush.bf16.msra.mxu0 %v5525
        %5549 = vmatmul.bf16.gmra.mxu0 %v5530
        %v5550 = vpop.f32.mrf.mxu0
        %v5551 = vadd.f32 0.0, %v5550
        %v5552 = vpop.f32.mrf.mxu0
        %v5553 = vadd.f32 0.0, %v5552
        %5554 = vmatmul.bf16.gmra.mxu0 %v5533
        %v5555 = vpop.f32.mrf.mxu0
        %v5556 = vadd.f32 0.0, %v5555
        %v5557 = vpop.f32.mrf.mxu0
        %v5558 = vadd.f32 0.0, %v5557
        %5559 = vmatmul.bf16.gmra.mxu0 %v5536
        %v5560 = vpop.f32.mrf.mxu0
        %v5561 = vadd.f32 0.0, %v5560
        %v5562 = vpop.f32.mrf.mxu0
        %v5563 = vadd.f32 0.0, %v5562
        %5564 = vmatmul.bf16.gmra.mxu0 %v5539
        %v5565 = vpop.f32.mrf.mxu0
        %v5566 = vadd.f32 0.0, %v5565
        %v5567 = vpop.f32.mrf.mxu0
        %v5568 = vadd.f32 0.0, %v5567
        %5569 = vdwg.mxu0
        %v5570 = vld [vmem:[%s6] sm:$0x1]
        %v5571 = vperm.slane %v5570, 0
        %v5572 = vmul.f32 %v5551, %v5571
        %v5573 = vmul.f32 %v5553, %v5571
        %v5574 = vmul.f32 %v5556, %v5571
        %v5575 = vmul.f32 %v5558, %v5571
        %v5576 = vmul.f32 %v5561, %v5571
        %v5577 = vmul.f32 %v5563, %v5571
        %v5578 = vmul.f32 %v5566, %v5571
        %v5579 = vmul.f32 %v5568, %v5571
        %v5580 = vld [vmem:[%s6 + $0x1] sm:$0x1]
        %v5581 = vperm.slane %v5580, 0
        %v5582 = vadd.f32 %v5572, %v5581
        %v5583 = vadd.f32 %v5573, %v5581
        %v5584 = vadd.f32 %v5574, %v5581
        %v5585 = vadd.f32 %v5575, %v5581
        %v5586 = vadd.f32 %v5576, %v5581
        %v5587 = vadd.f32 %v5577, %v5581
        %v5588 = vadd.f32 %v5578, %v5581
        %v5589 = vadd.f32 %v5579, %v5581
        %5606 = vmatpush.bf16.msra.mxu0 %v470
        %5607 = vmatpush.bf16.msra.mxu0 %v469
        %5608 = vmatpush.bf16.msra.mxu0 %v468
        %5609 = vmatpush.bf16.msra.mxu0 %v467
        %5610 = vmatpush.bf16.msra.mxu0 %v466
        %5611 = vmatpush.bf16.msra.mxu0 %v465
        %5612 = vmatpush.bf16.msra.mxu0 %v464
        %5613 = vmatpush.bf16.msra.mxu0 %v463
        %5614 = vmatmul.bf16.gmra.mxu0 %v5435
        %v5615 = vpop.f32.mrf.mxu0
        %v5616 = vadd.f32 0.0, %v5615
        %v5617 = vpop.f32.mrf.mxu0
        %v5618 = vadd.f32 0.0, %v5617
        %5619 = vmatmul.bf16.gmra.mxu0 %v5437
        %v5620 = vpop.f32.mrf.mxu0
        %v5621 = vadd.f32 0.0, %v5620
        %v5622 = vpop.f32.mrf.mxu0
        %v5623 = vadd.f32 0.0, %v5622
        %5624 = vmatmul.bf16.gmra.mxu0 %v5439
        %v5625 = vpop.f32.mrf.mxu0
        %v5626 = vadd.f32 0.0, %v5625
        %v5627 = vpop.f32.mrf.mxu0
        %v5628 = vadd.f32 0.0, %v5627
        %5629 = vmatmul.bf16.gmra.mxu0 %v5441
        %v5630 = vpop.f32.mrf.mxu0
        %v5631 = vadd.f32 0.0, %v5630
        %v5632 = vpop.f32.mrf.mxu0
        %v5633 = vadd.f32 0.0, %v5632
        %5634 = vdwg.mxu0
        %5635 = vmatpush.bf16.msra.mxu0 %v478
        %5636 = vmatpush.bf16.msra.mxu0 %v477
        %5637 = vmatpush.bf16.msra.mxu0 %v476
        %5638 = vmatpush.bf16.msra.mxu0 %v475
        %5639 = vmatpush.bf16.msra.mxu0 %v474
        %5640 = vmatpush.bf16.msra.mxu0 %v473
        %5641 = vmatpush.bf16.msra.mxu0 %v472
        %5642 = vmatpush.bf16.msra.mxu0 %v471
        %5643 = vmatmul.bf16.gmra.mxu0 %v5436
        %v5644 = vpop.f32.mrf.mxu0
        %v5645 = vadd.f32 %v5616, %v5644
        %v5646 = vpop.f32.mrf.mxu0
        %v5647 = vadd.f32 %v5618, %v5646
        %5648 = vmatmul.bf16.gmra.mxu0 %v5438
        %v5649 = vpop.f32.mrf.mxu0
        %v5650 = vadd.f32 %v5621, %v5649
        %v5651 = vpop.f32.mrf.mxu0
        %v5652 = vadd.f32 %v5623, %v5651
        %5653 = vmatmul.bf16.gmra.mxu0 %v5440
        %v5654 = vpop.f32.mrf.mxu0
        %v5655 = vadd.f32 %v5626, %v5654
        %v5656 = vpop.f32.mrf.mxu0
        %v5657 = vadd.f32 %v5628, %v5656
        %5658 = vmatmul.bf16.gmra.mxu0 %v5442
        %v5659 = vpop.f32.mrf.mxu0
        %v5660 = vadd.f32 %v5631, %v5659
        %v5661 = vpop.f32.mrf.mxu0
        %v5662 = vadd.f32 %v5633, %v5661
        %5663 = vdwg.mxu0
        %v5664 = vpack.c.bf16 %v5647, %v5645
        %v5665 = vpack.c.bf16 %v5652, %v5650
        %v5666 = vpack.c.bf16 %v5657, %v5655
        %v5667 = vpack.c.bf16 %v5662, %v5660
        %v5668 = vld [vmem:[%s8] sm:$0xf]
        %v5669 = vld [vmem:[%s8 + $0x4] sm:$0xf]
        %v5670 = vld [vmem:[%s8 + $0x8] sm:$0xf]
        %v5671 = vld [vmem:[%s8 + $0xc] sm:$0xf]
        %v5672 = vld [vmem:[%s8 + $0x10] sm:$0xf]
        %v5673 = vld [vmem:[%s8 + $0x14] sm:$0xf]
        %v5674 = vld [vmem:[%s8 + $0x18] sm:$0xf]
        %v5675 = vld [vmem:[%s8 + $0x1c] sm:$0xf]
        %v5684 = vunpack.c.l.b16 %v5668
        %v5685 = vunpack.c.l.b16 %v5669
        %v5686 = vunpack.c.l.b16 %v5670
        %v5687 = vunpack.c.l.b16 %v5671
        %v5688 = vunpack.c.l.b16 %v5672
        %v5689 = vunpack.c.l.b16 %v5673
        %v5690 = vunpack.c.l.b16 %v5674
        %v5691 = vunpack.c.l.b16 %v5675
        %v5692 = vpack.c.b16 %v5685, %v5684
        %v5693 = vpack.c.b16 %v5687, %v5686
        %v5694 = vpack.c.b16 %v5689, %v5688
        %v5695 = vpack.c.b16 %v5691, %v5690
        %v5701 = vsel %vm503, %v5664, 0
        %v5704 = vsel %vm503, %v5665, 0
        %v5707 = vsel %vm503, %v5666, 0
        %v5710 = vsel %vm503, %v5667, 0
        %5712 = vmatpush.bf16.msra.mxu0 0
        %5713 = vmatpush.bf16.msra.mxu0 0
        %5714 = vmatpush.bf16.msra.mxu0 0
        %5715 = vmatpush.bf16.msra.mxu0 0
        %5716 = vmatpush.bf16.msra.mxu0 %v5695
        %5717 = vmatpush.bf16.msra.mxu0 %v5694
        %5718 = vmatpush.bf16.msra.mxu0 %v5693
        %5719 = vmatpush.bf16.msra.mxu0 %v5692
        %5720 = vmatmul.bf16.gmra.mxu0 %v5701
        %v5721 = vpop.f32.mrf.mxu0
        %v5722 = vadd.f32 0.0, %v5721
        %v5723 = vpop.f32.mrf.mxu0
        %v5724 = vadd.f32 0.0, %v5723
        %5725 = vmatmul.bf16.gmra.mxu0 %v5704
        %v5726 = vpop.f32.mrf.mxu0
        %v5727 = vadd.f32 0.0, %v5726
        %v5728 = vpop.f32.mrf.mxu0
        %v5729 = vadd.f32 0.0, %v5728
        %5730 = vmatmul.bf16.gmra.mxu0 %v5707
        %v5731 = vpop.f32.mrf.mxu0
        %v5732 = vadd.f32 0.0, %v5731
        %v5733 = vpop.f32.mrf.mxu0
        %v5734 = vadd.f32 0.0, %v5733
        %5735 = vmatmul.bf16.gmra.mxu0 %v5710
        %v5736 = vpop.f32.mrf.mxu0
        %v5737 = vadd.f32 0.0, %v5736
        %v5738 = vpop.f32.mrf.mxu0
        %v5739 = vadd.f32 0.0, %v5738
        %5740 = vdwg.mxu0
        %v5741 = vld [vmem:[%s9] sm:$0x1]
        %v5742 = vperm.slane %v5741, 0
        %v5743 = vmul.f32 %v5722, %v5742
        %v5744 = vmul.f32 %v5724, %v5742
        %v5745 = vmul.f32 %v5727, %v5742
        %v5746 = vmul.f32 %v5729, %v5742
        %v5747 = vmul.f32 %v5732, %v5742
        %v5748 = vmul.f32 %v5734, %v5742
        %v5749 = vmul.f32 %v5737, %v5742
        %v5750 = vmul.f32 %v5739, %v5742
        %v5751 = vld [vmem:[%s9 + $0x1] sm:$0x1]
        %v5752 = vperm.slane %v5751, 0
        %v5753 = vadd.f32 %v5743, %v5752
        %v5754 = vadd.f32 %v5744, %v5752
        %v5755 = vadd.f32 %v5745, %v5752
        %v5756 = vadd.f32 %v5746, %v5752
        %v5757 = vadd.f32 %v5747, %v5752
        %v5758 = vadd.f32 %v5748, %v5752
        %v5759 = vadd.f32 %v5749, %v5752
        %v5760 = vadd.f32 %v5750, %v5752
        %v5761 = vadd.f32 %v5582, %v5753
        %v5762 = vadd.f32 %v5583, %v5754
        %v5763 = vadd.f32 %v5584, %v5755
        %v5764 = vadd.f32 %v5585, %v5756
        %v5765 = vadd.f32 %v5586, %v5757
        %v5766 = vadd.f32 %v5587, %v5758
        %v5767 = vadd.f32 %v5588, %v5759
        %v5768 = vadd.f32 %v5589, %v5760
        %v5769 = vmax.f32 %v5761, 0.0
        %v5770 = vmax.f32 %v5762, 0.0
        %v5771 = vmax.f32 %v5763, 0.0
        %v5772 = vmax.f32 %v5764, 0.0
        %v5773 = vmax.f32 %v5765, 0.0
        %v5774 = vmax.f32 %v5766, 0.0
        %v5775 = vmax.f32 %v5767, 0.0
        %v5776 = vmax.f32 %v5768, 0.0
        %5777 = vst [vmem:[%s352] sm:$0xff] %v5769
        %5778 = vst [vmem:[%s352 + $0x8] sm:$0xff] %v5770
        %5779 = vst [vmem:[%s352 + $0x10] sm:$0xff] %v5771
        %5780 = vst [vmem:[%s352 + $0x18] sm:$0xff] %v5772
        %5781 = vst [vmem:[%s352 + $0x20] sm:$0xff] %v5773
        %5782 = vst [vmem:[%s352 + $0x28] sm:$0xff] %v5774
        %5783 = vst [vmem:[%s352 + $0x30] sm:$0xff] %v5775
        %5784 = vst [vmem:[%s352 + $0x38] sm:$0xff] %v5776
        %s5785 = sand.u32 %s247, 1
        %s5786 = scalar_lea.sflag [#allocation4], %s5785
        %s5787 = sand.u32 %s247, 1
        %s5788 = smul.addr %s5787, 64
        %s5789 = scalar_lea.vmem [#allocation3], %s5788
        // Predicated region
        $region61: #{bottleneck_forward.1} parent=59 // pred_check
          %p5790 = pneg %p257
        $region62: #{bottleneck_forward.1} parent=59 // pred_check_branch
          %5792 = sbr.rel (%p5790) target = $region64
        $region63: #{bottleneck_forward.1} parent=59 // pred_region
          %5794 = vsyncadd %s5786, 0
          %s5795 = smul.addr %s24, 8
          %s5796 = smul.addr %s5795, 8
          %s5797 = scalar_lea.hbm %s10, %s5796
          %s5798 = sshll.u32 %s5789, 4
          %s5799 = int_to_ptr.vmem [resolvable:$true] %s5798
          %s5800 = sshll.u32 %s5797, 4
          %s5801 = int_to_ptr.hbm [resolvable:$true] %s5800
          %5806 = dma.vmem_to_hbm [thread:$0]  %s5799, 1024, %s5801, %s5786, 128, 128, 8
        $region64: #{bottleneck_forward.1} parent=59 // pred_fallthru
          _
      $region60: #{bottleneck_forward.1} parent=5 // pred_fallthru
        _
      %p5807 = scmp.le.s32.totalorder 2, %s19
      // Predicated region
      $region65: #{bottleneck_forward.1} parent=5 // pred_check
        %p5808 = pneg %p5807
      $region66: #{bottleneck_forward.1} parent=5 // pred_check_branch
        %5810 = sbr.rel (%p5808) target = $region68
      $region67: #{bottleneck_forward.1} parent=5 // pred_region
        %s5811 = ssub.s32 %s19, 2
        // Predicated region
        $region69: #{bottleneck_forward.1} parent=67 // pred_check
          %p5812 = pneg %p263
        $region70: #{bottleneck_forward.1} parent=67 // pred_check_branch
          %5814 = sbr.rel (%p5812) target = $region72
        $region71: #{bottleneck_forward.1} parent=67 // pred_region
          %s5815 = sand.u32 %s248, 1
          %s5816 = scalar_lea.sflag [#allocation4], %s5815
          %s5817 = sand.u32 %s248, 1
          %s5818 = smul.addr %s5817, 64
          %s5819 = scalar_lea.vmem [#allocation3], %s5818
          %5821 = dma.done %s5816, 1024
        $region72: #{bottleneck_forward.1} parent=67 // pred_fallthru
          _
      $region68: #{bottleneck_forward.1} parent=5 // pred_fallthru
        _
    $region6: #{bottleneck_forward.1} parent=1 // loop_footer
      %s23 = sadd.s32 1, %s19
    $region7: #{bottleneck_forward.1} parent=1 // loop_footer_branch
      %18 = sbr.rel target = $region3
    $region8: #{bottleneck_forward.1} parent=1 // loop_exit
      _
    %5822 = vsyncpa [#allocation4], 1
    %s5823 = scalar_lea.sflag [#allocation4], 1
    %5824 = vsyncpa %s5823, 1

</llo_original>
